<compile_context>
chip_gen: v5e
topology: v5e:2x2
jax: 0.10.0
libtpu: 0.0.40
codegen_flags: <defaults>
</compile_context>

<pallas_src>
import functools
import numpy as np
import jax
import jax.numpy as jnp
from jax import lax
from jax.experimental import pallas as pl
from jax.experimental.pallas import tpu as pltpu

CH = 64                    # hidden channels (fixed by the module definition)
CIN_PAD = 8                # 2 real in/out channels padded to 8 for sublane alignment
CCHUNK = 32                # channel chunk for the depthwise loop (vreg-pressure control)
SHIFTS = tuple((dy, dx) for dy in (-1, 0, 1) for dx in (-1, 0, 1))   # k = (dy+1)*3 + (dx+1)


def _denoiser_kernel(x_ref, zmask_ref, cbad_ref, w1_ref, b1_ref,
                     dw_ref, pw_ref, pwb_ref, wl_ref, bl_ref, out_ref,
                     *, H, W, nres):
    HW = H * W
    f32 = jnp.float32

    x = x_ref[...]                               # (8, HW): rows 0..1 real, 2..7 zero

    def roll_l(a, s):
        # lane roll on the flattened spatial axis (XLU vrot via pltpu.roll)
        s = s % HW
        if s == 0:
            return a
        return pltpu.roll(a, s, axis=1)

    def shift_zero(a, k):
        # a[:, p] -> a[:, p + dy*W + dx], zero where (h+dy, w+dx) falls outside the image
        dy, dx = SHIFTS[k]
        r = roll_l(a, -(dy * W + dx))
        return r * zmask_ref[k]                  # (1, HW) validity mask

    def shift_circ(a, k):
        # circular (wrap) padding in both h and w; flat HW roll already handles h-wrap,
        # the w-wrap columns are fixed with a second roll + single select.
        dy, dx = SHIFTS[k]
        s1 = -(dy * W + dx)
        r1 = roll_l(a, s1)
        if dx == 0:
            return r1
        s2 = s1 + (W if dx == 1 else -W)
        r2 = roll_l(a, s2)
        bad = cbad_ref[k] != 0.0                 # (1, HW) indicator of w-wrap columns
        return jnp.where(bad, r2, r1)

    # ---- conv3x3 (2->64, zero pad) + folded BN/bias + ReLU -----------------------
    # Mask is applied per-tap on the tiny padded input (2 vregs/tap); it cannot be
    # commuted past this matmul because the mask differs per tap inside one K=72 dot.
    xcat = jnp.concatenate([shift_zero(x, k) for k in range(9)], axis=0)   # (72, HW)
    h = jnp.dot(w1_ref[...], xcat, preferred_element_type=f32)             # (64, HW)
    h = jnp.maximum(h + b1_ref[...], 0.0)

    # ---- ResBlocks: depthwise 3x3 (circular) -> 1x1 -> BN -> ReLU, + identity ----
    # Python unroll kept: nres is small (<=3); use lax.fori_loop for deep nets.
    for r in range(nres):
        dww = dw_ref[r]                                                    # (64, 9)
        t_parts = []
        for c0 in range(0, CH, CCHUNK):                                    # 32-ch halves
            hc = h[c0:c0 + CCHUNK]                                         # (32, HW)
            tc = dww[c0:c0 + CCHUNK, 0:1] * shift_circ(hc, 0)
            for k in range(1, 9):
                tc = tc + dww[c0:c0 + CCHUNK, k:k + 1] * shift_circ(hc, k)
            t_parts.append(tc)
        t = jnp.concatenate(t_parts, axis=0)                               # (64, HW)
        t = jnp.dot(pw_ref[r], t, preferred_element_type=f32) + pwb_ref[r]
        h = jnp.maximum(t, 0.0) + h

    # ---- conv3x3 (64->2, zero pad) + folded BN + global residual -----------------
    # Zero-pad mask commuted past the matmul: mask the (8, HW) result, not the operand.
    acc = x + bl_ref[...]                                                  # (8, HW)
    for k in range(9):
        dy, dx = SHIFTS[k]
        hk = roll_l(h, -(dy * W + dx))
        acc = acc + jnp.dot(wl_ref[k], hk, preferred_element_type=f32) * zmask_ref[k]
    out_ref[...] = acc


def _fold_bn(w, b, bn, eps=1e-5):
    """Fold inference BatchNorm (and conv bias) into conv weight/bias."""
    gamma, beta, mean, var = bn
    scale = gamma / jnp.sqrt(var + eps)
    w_f = w * scale.reshape((-1,) + (1,) * (w.ndim - 1))
    b0 = b if b is not None else jnp.zeros_like(mean)
    b_f = scale * (b0 - mean) + beta
    return w_f, b_f


def cnn_denoiser_forward(x, params, eps=1e-5):
    """x: (B, 2, H, W) float32.  Returns (B, 2, H, W) float32."""
    B, cin, H, W = x.shape
    assert cin == 2
    HW = H * W
    nres = len(params["dw"])
    assert nres >= 1
    f32 = jnp.float32

    # ---- host-side weight preparation: BN folding + kernel-friendly layouts ----
    w1f, b1f = _fold_bn(params["w1"], params["b1"], params["bn1"], eps)
    w1p = jnp.zeros((CH, CIN_PAD, 3, 3), f32).at[:, :2].set(w1f)
    w1_k = w1p.transpose(0, 2, 3, 1).reshape(CH, 9 * CIN_PAD)      # (64, 72): [o, k*8+c]
    b1_k = b1f.reshape(CH, 1)

    dw_k = jnp.stack([params["dw"][r].reshape(CH, 9) for r in range(nres)])  # (nres,64,9)
    pw_list, pwb_list = [], []
    for r in range(nres):
        pwf, pwbf = _fold_bn(params["pw"][r].reshape(CH, CH), None,
                             params["bn_res"][r], eps)
        pw_list.append(pwf)
        pwb_list.append(pwbf.reshape(CH, 1))
    pw_k = jnp.stack(pw_list)                                      # (nres, 64, 64)
    pwb_k = jnp.stack(pwb_list)                                    # (nres, 64, 1)

    wlf, blf = _fold_bn(params["wl"], params["bl"], params["bnl"], eps)
    wlp = jnp.zeros((CIN_PAD, CH, 3, 3), f32).at[:2].set(wlf)
    wl_k = wlp.transpose(2, 3, 0, 1).reshape(9, CIN_PAD, CH)       # (9, 8, 64): [k, o, i]
    bl_k = jnp.zeros((CIN_PAD, 1), f32).at[:2, 0].set(blf)

    # ---- host-precomputed shift masks on the flattened spatial axis ----
    hh = np.arange(HW) // W
    ww = np.arange(HW) % W
    zmask = np.zeros((9, 1, HW), np.float32)
    cbad = np.zeros((9, 1, HW), np.float32)
    for k, (dy, dx) in enumerate(SHIFTS):
        zmask[k, 0] = ((hh + dy >= 0) & (hh + dy < H)
                       & (ww + dx >= 0) & (ww + dx < W)).astype(np.float32)
        cbad[k, 0] = ((ww + dx < 0) | (ww + dx >= W)).astype(np.float32)
    zmask = jnp.asarray(zmask)
    cbad = jnp.asarray(cbad)

    # ---- padded, flattened input: (B, 8, H*W), spatial axis lane-dense ----
    x_k = jnp.zeros((B, CIN_PAD, HW), f32).at[:, :2].set(x.reshape(B, 2, HW).astype(f32))

    kernel = functools.partial(_denoiser_kernel, H=H, W=W, nres=nres)

    def full_spec(shape):
        return pl.BlockSpec(shape, lambda b, _s=len(shape): (0,) * _s)

    out = pl.pallas_call(
        kernel,
        out_shape=jax.ShapeDtypeStruct((B, CIN_PAD, HW), f32),
        grid_spec=pltpu.PrefetchScalarGridSpec(
            num_scalar_prefetch=0,
            grid=(B,),
            in_specs=[
                pl.BlockSpec((None, CIN_PAD, HW), lambda b: (b, 0, 0)),   # x
                full_spec((9, 1, HW)),                                    # zero-pad masks
                full_spec((9, 1, HW)),                                    # circular fix masks
                full_spec((CH, 9 * CIN_PAD)),                             # conv1 weight
                full_spec((CH, 1)),                                       # conv1 bias
                full_spec((nres, CH, 9)),                                 # depthwise weights
                full_spec((nres, CH, CH)),                                # pointwise weights
                full_spec((nres, CH, 1)),                                 # pointwise biases
                full_spec((9, CIN_PAD, CH)),                              # last conv weight
                full_spec((CIN_PAD, 1)),                                  # last conv bias
            ],
            out_specs=pl.BlockSpec((None, CIN_PAD, HW), lambda b: (b, 0, 0)),
        ),
        compiler_params=pltpu.CompilerParams(dimension_semantics=("parallel",)),
    )(x_k, zmask, cbad, w1_k, b1_k, dw_k, pw_k, pwb_k, wl_k, bl_k)

    return out[:, :2].reshape(B, 2, H, W)


# ------------------------- pure-JAX reference (eval-mode PyTorch semantics) -------------------------
def cnn_denoiser_reference(x, params, eps=1e-5):
    HI = lax.Precision.HIGHEST

    def bn(y, stats):
        g, b, m, v = stats
        return (g[None, :, None, None] * (y - m[None, :, None, None])
                / jnp.sqrt(v[None, :, None, None] + eps) + b[None, :, None, None])

    def conv3x3_zero(y, w, b=None):
        o = lax.conv_general_dilated(y, w, (1, 1), ((1, 1), (1, 1)),
                                     dimension_numbers=("NCHW", "OIHW", "NCHW"),
                                     precision=HI)
        if b is not None:
            o = o + b[None, :, None, None]
        return o

    h = jax.nn.relu(bn(conv3x3_zero(x, params["w1"], params["b1"]), params["bn1"]))

    for r in range(len(params["dw"])):
        hp = jnp.pad(h, ((0, 0), (0, 0), (1, 1), (1, 1)), mode="wrap")
        t = lax.conv_general_dilated(hp, params["dw"][r], (1, 1), "VALID",
                                     dimension_numbers=("NCHW", "OIHW", "NCHW"),
                                     feature_group_count=CH, precision=HI)
        t = lax.conv_general_dilated(t, params["pw"][r], (1, 1), "VALID",
                                     dimension_numbers=("NCHW", "OIHW", "NCHW"),
                                     precision=HI)
        h = jax.nn.relu(bn(t, params["bn_res"][r])) + h

    out = bn(conv3x3_zero(h, params["wl"], params["bl"]), params["bnl"])
    return out + x


def make_params(key, n_layers):
    nres = n_layers - 2
    assert nres >= 1
    keys = iter(jax.random.split(key, 16 + 8 * nres))

    def nrm(shape, scale):
        return scale * jax.random.normal(next(keys), shape, jnp.float32)

    def bn_stats(c):
        return (1.0 + 0.1 * jax.random.normal(next(keys), (c,), jnp.float32),   # gamma
                0.1 * jax.random.normal(next(keys), (c,), jnp.float32),          # beta
                0.1 * jax.random.normal(next(keys), (c,), jnp.float32),          # running mean
                jax.random.uniform(next(keys), (c,), jnp.float32, 0.5, 1.5))     # running var

    return {
        "w1": nrm((CH, 2, 3, 3), 0.2),
        "b1": nrm((CH,), 0.1),
        "bn1": bn_stats(CH),
        "dw": [nrm((CH, 1, 3, 3), 0.2) for _ in range(nres)],
        "pw": [nrm((CH, CH, 1, 1), 0.1) for _ in range(nres)],
        "bn_res": [bn_stats(CH) for _ in range(nres)],
        "wl": nrm((2, CH, 3, 3), 0.1),
        "bl": nrm((2,), 0.1),
        "bnl": bn_stats(2),
    }


if __name__ == "__main__":
    B, H, W = 2, 16, 16
    n_layers = 4                     # conv_block + 2 ResBlocks + final conv/BN

    key = jax.random.PRNGKey(0)
    kx, kp = jax.random.split(key)
    x = jax.random.normal(kx, (B, 2, H, W), jnp.float32)
    params = make_params(kp, n_layers)

    out = cnn_denoiser_forward(x, params)
    out = jax.block_until_ready(out)

    ref = cnn_denoiser_reference(x, params)
    np.testing.assert_allclose(np.asarray(out), np.asarray(ref), rtol=2e-3, atol=2e-3)

    print("KERNEL_OK")
</pallas_src>

<mosaic_0001>
module attributes {stable_mosaic.version = 11 : i64} {
  func.func @_denoiser_kernel(%arg0: i32, %arg1: memref<1x8x256xf32, #tpu.memory_space<vmem>>, %arg2: memref<9x1x256xf32, #tpu.memory_space<vmem>>, %arg3: memref<9x1x256xf32, #tpu.memory_space<vmem>>, %arg4: memref<64x72xf32, #tpu.memory_space<vmem>>, %arg5: memref<64x1xf32, #tpu.memory_space<vmem>>, %arg6: memref<2x64x9xf32, #tpu.memory_space<vmem>>, %arg7: memref<2x64x64xf32, #tpu.memory_space<vmem>>, %arg8: memref<2x64x1xf32, #tpu.memory_space<vmem>>, %arg9: memref<9x8x64xf32, #tpu.memory_space<vmem>>, %arg10: memref<8x1xf32, #tpu.memory_space<vmem>>, %arg11: memref<1x8x256xf32, #tpu.memory_space<vmem>>) attributes {dimension_semantics = [#tpu.dimension_semantics<parallel>], iteration_bounds = array<i64: 2>, scalar_prefetch = 0 : i64, scratch_operands = 0 : i64, tpu.core_type = #tpu.core_type<tc>, window_params = [{transform_indices = @transform_0, window_bounds = array<i64: 1, 8, 256>}, {pipeline_mode = #tpu.pipeline_mode<synchronous>, transform_indices = @transform_1, window_bounds = array<i64: 9, 1, 256>}, {pipeline_mode = #tpu.pipeline_mode<synchronous>, transform_indices = @transform_2, window_bounds = array<i64: 9, 1, 256>}, {pipeline_mode = #tpu.pipeline_mode<synchronous>, transform_indices = @transform_3, window_bounds = array<i64: 64, 72>}, {pipeline_mode = #tpu.pipeline_mode<synchronous>, transform_indices = @transform_4, window_bounds = array<i64: 64, 1>}, {pipeline_mode = #tpu.pipeline_mode<synchronous>, transform_indices = @transform_5, window_bounds = array<i64: 2, 64, 9>}, {pipeline_mode = #tpu.pipeline_mode<synchronous>, transform_indices = @transform_6, window_bounds = array<i64: 2, 64, 64>}, {pipeline_mode = #tpu.pipeline_mode<synchronous>, transform_indices = @transform_7, window_bounds = array<i64: 2, 64, 1>}, {pipeline_mode = #tpu.pipeline_mode<synchronous>, transform_indices = @transform_8, window_bounds = array<i64: 9, 8, 64>}, {pipeline_mode = #tpu.pipeline_mode<synchronous>, transform_indices = @transform_9, window_bounds = array<i64: 8, 1>}, {transform_indices = @transform_10, window_bounds = array<i64: 1, 8, 256>}]} {
    %c0 = arith.constant 0 : index
    %c0_0 = arith.constant 0 : index
    %c0_1 = arith.constant 0 : index
    %0 = vector.load %arg1[%c0, %c0_0, %c0_1] : memref<1x8x256xf32, #tpu.memory_space<vmem>>, vector<1x8x256xf32>
    %1 = vector.shape_cast %0 : vector<1x8x256xf32> to vector<8x256xf32>
    %c17_i32 = arith.constant 17 : i32
    %2 = tpu.dynamic_rotate %1 by %c17_i32 dim 1 : vector<8x256xf32>, i32 -> vector<8x256xf32>
    %c0_2 = arith.constant 0 : index
    %c0_3 = arith.constant 0 : index
    %c0_4 = arith.constant 0 : index
    %3 = vector.load %arg2[%c0_2, %c0_3, %c0_4] : memref<9x1x256xf32, #tpu.memory_space<vmem>>, vector<1x1x256xf32>
    %4 = vector.shape_cast %3 : vector<1x1x256xf32> to vector<1x256xf32>
    %5 = vector.broadcast %4 : vector<1x256xf32> to vector<8x256xf32>
    %6 = arith.mulf %2, %5 : vector<8x256xf32>
    %c16_i32 = arith.constant 16 : i32
    %7 = tpu.dynamic_rotate %1 by %c16_i32 dim 1 : vector<8x256xf32>, i32 -> vector<8x256xf32>
    %c1 = arith.constant 1 : index
    %c0_5 = arith.constant 0 : index
    %c0_6 = arith.constant 0 : index
    %8 = vector.load %arg2[%c1, %c0_5, %c0_6] : memref<9x1x256xf32, #tpu.memory_space<vmem>>, vector<1x1x256xf32>
    %9 = vector.shape_cast %8 : vector<1x1x256xf32> to vector<1x256xf32>
    %10 = vector.broadcast %9 : vector<1x256xf32> to vector<8x256xf32>
    %11 = arith.mulf %7, %10 : vector<8x256xf32>
    %c15_i32 = arith.constant 15 : i32
    %12 = tpu.dynamic_rotate %1 by %c15_i32 dim 1 : vector<8x256xf32>, i32 -> vector<8x256xf32>
    %c2 = arith.constant 2 : index
    %c0_7 = arith.constant 0 : index
    %c0_8 = arith.constant 0 : index
    %13 = vector.load %arg2[%c2, %c0_7, %c0_8] : memref<9x1x256xf32, #tpu.memory_space<vmem>>, vector<1x1x256xf32>
    %14 = vector.shape_cast %13 : vector<1x1x256xf32> to vector<1x256xf32>
    %15 = vector.broadcast %14 : vector<1x256xf32> to vector<8x256xf32>
    %16 = arith.mulf %12, %15 : vector<8x256xf32>
    %c1_i32 = arith.constant 1 : i32
    %17 = tpu.dynamic_rotate %1 by %c1_i32 dim 1 : vector<8x256xf32>, i32 -> vector<8x256xf32>
    %c3 = arith.constant 3 : index
    %c0_9 = arith.constant 0 : index
    %c0_10 = arith.constant 0 : index
    %18 = vector.load %arg2[%c3, %c0_9, %c0_10] : memref<9x1x256xf32, #tpu.memory_space<vmem>>, vector<1x1x256xf32>
    %19 = vector.shape_cast %18 : vector<1x1x256xf32> to vector<1x256xf32>
    %20 = vector.broadcast %19 : vector<1x256xf32> to vector<8x256xf32>
    %21 = arith.mulf %17, %20 : vector<8x256xf32>
    %c4 = arith.constant 4 : index
    %c0_11 = arith.constant 0 : index
    %c0_12 = arith.constant 0 : index
    %22 = vector.load %arg2[%c4, %c0_11, %c0_12] : memref<9x1x256xf32, #tpu.memory_space<vmem>>, vector<1x1x256xf32>
    %23 = vector.shape_cast %22 : vector<1x1x256xf32> to vector<1x256xf32>
    %24 = vector.broadcast %23 : vector<1x256xf32> to vector<8x256xf32>
    %25 = arith.mulf %1, %24 : vector<8x256xf32>
    %c255_i32 = arith.constant 255 : i32
    %26 = tpu.dynamic_rotate %1 by %c255_i32 dim 1 : vector<8x256xf32>, i32 -> vector<8x256xf32>
    %c5 = arith.constant 5 : index
    %c0_13 = arith.constant 0 : index
    %c0_14 = arith.constant 0 : index
    %27 = vector.load %arg2[%c5, %c0_13, %c0_14] : memref<9x1x256xf32, #tpu.memory_space<vmem>>, vector<1x1x256xf32>
    %28 = vector.shape_cast %27 : vector<1x1x256xf32> to vector<1x256xf32>
    %29 = vector.broadcast %28 : vector<1x256xf32> to vector<8x256xf32>
    %30 = arith.mulf %26, %29 : vector<8x256xf32>
    %c241_i32 = arith.constant 241 : i32
    %31 = tpu.dynamic_rotate %1 by %c241_i32 dim 1 : vector<8x256xf32>, i32 -> vector<8x256xf32>
    %c6 = arith.constant 6 : index
    %c0_15 = arith.constant 0 : index
    %c0_16 = arith.constant 0 : index
    %32 = vector.load %arg2[%c6, %c0_15, %c0_16] : memref<9x1x256xf32, #tpu.memory_space<vmem>>, vector<1x1x256xf32>
    %33 = vector.shape_cast %32 : vector<1x1x256xf32> to vector<1x256xf32>
    %34 = vector.broadcast %33 : vector<1x256xf32> to vector<8x256xf32>
    %35 = arith.mulf %31, %34 : vector<8x256xf32>
    %c240_i32 = arith.constant 240 : i32
    %36 = tpu.dynamic_rotate %1 by %c240_i32 dim 1 : vector<8x256xf32>, i32 -> vector<8x256xf32>
    %c7 = arith.constant 7 : index
    %c0_17 = arith.constant 0 : index
    %c0_18 = arith.constant 0 : index
    %37 = vector.load %arg2[%c7, %c0_17, %c0_18] : memref<9x1x256xf32, #tpu.memory_space<vmem>>, vector<1x1x256xf32>
    %38 = vector.shape_cast %37 : vector<1x1x256xf32> to vector<1x256xf32>
    %39 = vector.broadcast %38 : vector<1x256xf32> to vector<8x256xf32>
    %40 = arith.mulf %36, %39 : vector<8x256xf32>
    %c239_i32 = arith.constant 239 : i32
    %41 = tpu.dynamic_rotate %1 by %c239_i32 dim 1 : vector<8x256xf32>, i32 -> vector<8x256xf32>
    %c8 = arith.constant 8 : index
    %c0_19 = arith.constant 0 : index
    %c0_20 = arith.constant 0 : index
    %42 = vector.load %arg2[%c8, %c0_19, %c0_20] : memref<9x1x256xf32, #tpu.memory_space<vmem>>, vector<1x1x256xf32>
    %43 = vector.shape_cast %42 : vector<1x1x256xf32> to vector<1x256xf32>
    %44 = vector.broadcast %43 : vector<1x256xf32> to vector<8x256xf32>
    %45 = arith.mulf %41, %44 : vector<8x256xf32>
    %46 = tpu.concatenate %6, %11, %16, %21, %25, %30, %35, %40, %45 in 0 : vector<8x256xf32>, vector<8x256xf32>, vector<8x256xf32>, vector<8x256xf32>, vector<8x256xf32>, vector<8x256xf32>, vector<8x256xf32>, vector<8x256xf32>, vector<8x256xf32> -> vector<72x256xf32>
    %c0_21 = arith.constant 0 : index
    %c0_22 = arith.constant 0 : index
    %47 = vector.load %arg4[%c0_21, %c0_22] : memref<64x72xf32, #tpu.memory_space<vmem>>, vector<64x72xf32>
    %cst = arith.constant dense<0.000000e+00> : vector<64x256xf32>
    %48 = tpu.matmul %47, %46, %cst {dimension_numbers = #tpu.dot_dimension_numbers<[1], [0], [0], [1], [0, 0, 1, 1], [], []>} : vector<64x72xf32>, vector<72x256xf32>, vector<64x256xf32> -> vector<64x256xf32>
    %c0_23 = arith.constant 0 : index
    %c0_24 = arith.constant 0 : index
    %49 = vector.load %arg5[%c0_23, %c0_24] : memref<64x1xf32, #tpu.memory_space<vmem>>, vector<64x1xf32>
    %50 = vector.broadcast %49 : vector<64x1xf32> to vector<64x256xf32>
    %51 = arith.addf %48, %50 : vector<64x256xf32>
    %cst_25 = arith.constant 0.000000e+00 : f32
    %52 = vector.broadcast %cst_25 : f32 to vector<64x256xf32>
    %53 = arith.maximumf %51, %52 : vector<64x256xf32>
    %c0_26 = arith.constant 0 : index
    %c0_27 = arith.constant 0 : index
    %c0_28 = arith.constant 0 : index
    %54 = vector.load %arg6[%c0_26, %c0_27, %c0_28] : memref<2x64x9xf32, #tpu.memory_space<vmem>>, vector<1x64x9xf32>
    %55 = vector.shape_cast %54 : vector<1x64x9xf32> to vector<64x9xf32>
    %56 = vector.extract_strided_slice %53 {offsets = [0, 0], sizes = [32, 256], strides = [1, 1]} : vector<64x256xf32> to vector<32x256xf32>
    %57 = vector.extract_strided_slice %55 {offsets = [0, 0], sizes = [32, 1], strides = [1, 1]} : vector<64x9xf32> to vector<32x1xf32>
    %c17_i32_29 = arith.constant 17 : i32
    %58 = tpu.dynamic_rotate %56 by %c17_i32_29 dim 1 : vector<32x256xf32>, i32 -> vector<32x256xf32>
    %c1_i32_30 = arith.constant 1 : i32
    %59 = tpu.dynamic_rotate %56 by %c1_i32_30 dim 1 : vector<32x256xf32>, i32 -> vector<32x256xf32>
    %c0_31 = arith.constant 0 : index
    %c0_32 = arith.constant 0 : index
    %c0_33 = arith.constant 0 : index
    %60 = vector.load %arg3[%c0_31, %c0_32, %c0_33] : memref<9x1x256xf32, #tpu.memory_space<vmem>>, vector<1x1x256xf32>
    %61 = vector.shape_cast %60 : vector<1x1x256xf32> to vector<1x256xf32>
    %cst_34 = arith.constant 0.000000e+00 : f32
    %62 = vector.broadcast %cst_34 : f32 to vector<1x256xf32>
    %63 = arith.cmpf one, %61, %62 : vector<1x256xf32>
    %64 = vector.shape_cast %63 : vector<1x256xi1> to vector<1x256xi1>
    %65 = vector.broadcast %64 : vector<1x256xi1> to vector<32x256xi1>
    %66 = arith.select %65, %59, %58 : vector<32x256xi1>, vector<32x256xf32>
    %67 = vector.broadcast %57 : vector<32x1xf32> to vector<32x256xf32>
    %68 = arith.mulf %67, %66 : vector<32x256xf32>
    %69 = vector.extract_strided_slice %55 {offsets = [0, 1], sizes = [32, 1], strides = [1, 1]} : vector<64x9xf32> to vector<32x1xf32>
    %c16_i32_35 = arith.constant 16 : i32
    %70 = tpu.dynamic_rotate %56 by %c16_i32_35 dim 1 : vector<32x256xf32>, i32 -> vector<32x256xf32>
    %71 = vector.broadcast %69 : vector<32x1xf32> to vector<32x256xf32>
    %72 = arith.mulf %71, %70 : vector<32x256xf32>
    %73 = arith.addf %68, %72 : vector<32x256xf32>
    %74 = vector.extract_strided_slice %55 {offsets = [0, 2], sizes = [32, 1], strides = [1, 1]} : vector<64x9xf32> to vector<32x1xf32>
    %c15_i32_36 = arith.constant 15 : i32
    %75 = tpu.dynamic_rotate %56 by %c15_i32_36 dim 1 : vector<32x256xf32>, i32 -> vector<32x256xf32>
    %c31_i32 = arith.constant 31 : i32
    %76 = tpu.dynamic_rotate %56 by %c31_i32 dim 1 : vector<32x256xf32>, i32 -> vector<32x256xf32>
    %c2_37 = arith.constant 2 : index
    %c0_38 = arith.constant 0 : index
    %c0_39 = arith.constant 0 : index
    %77 = vector.load %arg3[%c2_37, %c0_38, %c0_39] : memref<9x1x256xf32, #tpu.memory_space<vmem>>, vector<1x1x256xf32>
    %78 = vector.shape_cast %77 : vector<1x1x256xf32> to vector<1x256xf32>
    %cst_40 = arith.constant 0.000000e+00 : f32
    %79 = vector.broadcast %cst_40 : f32 to vector<1x256xf32>
    %80 = arith.cmpf one, %78, %79 : vector<1x256xf32>
    %81 = vector.shape_cast %80 : vector<1x256xi1> to vector<1x256xi1>
    %82 = vector.broadcast %81 : vector<1x256xi1> to vector<32x256xi1>
    %83 = arith.select %82, %76, %75 : vector<32x256xi1>, vector<32x256xf32>
    %84 = vector.broadcast %74 : vector<32x1xf32> to vector<32x256xf32>
    %85 = arith.mulf %84, %83 : vector<32x256xf32>
    %86 = arith.addf %73, %85 : vector<32x256xf32>
    %87 = vector.extract_strided_slice %55 {offsets = [0, 3], sizes = [32, 1], strides = [1, 1]} : vector<64x9xf32> to vector<32x1xf32>
    %c1_i32_41 = arith.constant 1 : i32
    %88 = tpu.dynamic_rotate %56 by %c1_i32_41 dim 1 : vector<32x256xf32>, i32 -> vector<32x256xf32>
    %c241_i32_42 = arith.constant 241 : i32
    %89 = tpu.dynamic_rotate %56 by %c241_i32_42 dim 1 : vector<32x256xf32>, i32 -> vector<32x256xf32>
    %c3_43 = arith.constant 3 : index
    %c0_44 = arith.constant 0 : index
    %c0_45 = arith.constant 0 : index
    %90 = vector.load %arg3[%c3_43, %c0_44, %c0_45] : memref<9x1x256xf32, #tpu.memory_space<vmem>>, vector<1x1x256xf32>
    %91 = vector.shape_cast %90 : vector<1x1x256xf32> to vector<1x256xf32>
    %cst_46 = arith.constant 0.000000e+00 : f32
    %92 = vector.broadcast %cst_46 : f32 to vector<1x256xf32>
    %93 = arith.cmpf one, %91, %92 : vector<1x256xf32>
    %94 = vector.shape_cast %93 : vector<1x256xi1> to vector<1x256xi1>
    %95 = vector.broadcast %94 : vector<1x256xi1> to vector<32x256xi1>
    %96 = arith.select %95, %89, %88 : vector<32x256xi1>, vector<32x256xf32>
    %97 = vector.broadcast %87 : vector<32x1xf32> to vector<32x256xf32>
    %98 = arith.mulf %97, %96 : vector<32x256xf32>
    %99 = arith.addf %86, %98 : vector<32x256xf32>
    %100 = vector.extract_strided_slice %55 {offsets = [0, 4], sizes = [32, 1], strides = [1, 1]} : vector<64x9xf32> to vector<32x1xf32>
    %101 = vector.broadcast %100 : vector<32x1xf32> to vector<32x256xf32>
    %102 = arith.mulf %101, %56 : vector<32x256xf32>
    %103 = arith.addf %99, %102 : vector<32x256xf32>
    %104 = vector.extract_strided_slice %55 {offsets = [0, 5], sizes = [32, 1], strides = [1, 1]} : vector<64x9xf32> to vector<32x1xf32>
    %c255_i32_47 = arith.constant 255 : i32
    %105 = tpu.dynamic_rotate %56 by %c255_i32_47 dim 1 : vector<32x256xf32>, i32 -> vector<32x256xf32>
    %c15_i32_48 = arith.constant 15 : i32
    %106 = tpu.dynamic_rotate %56 by %c15_i32_48 dim 1 : vector<32x256xf32>, i32 -> vector<32x256xf32>
    %c5_49 = arith.constant 5 : index
    %c0_50 = arith.constant 0 : index
    %c0_51 = arith.constant 0 : index
    %107 = vector.load %arg3[%c5_49, %c0_50, %c0_51] : memref<9x1x256xf32, #tpu.memory_space<vmem>>, vector<1x1x256xf32>
    %108 = vector.shape_cast %107 : vector<1x1x256xf32> to vector<1x256xf32>
    %cst_52 = arith.constant 0.000000e+00 : f32
    %109 = vector.broadcast %cst_52 : f32 to vector<1x256xf32>
    %110 = arith.cmpf one, %108, %109 : vector<1x256xf32>
    %111 = vector.shape_cast %110 : vector<1x256xi1> to vector<1x256xi1>
    %112 = vector.broadcast %111 : vector<1x256xi1> to vector<32x256xi1>
    %113 = arith.select %112, %106, %105 : vector<32x256xi1>, vector<32x256xf32>
    %114 = vector.broadcast %104 : vector<32x1xf32> to vector<32x256xf32>
    %115 = arith.mulf %114, %113 : vector<32x256xf32>
    %116 = arith.addf %103, %115 : vector<32x256xf32>
    %117 = vector.extract_strided_slice %55 {offsets = [0, 6], sizes = [32, 1], strides = [1, 1]} : vector<64x9xf32> to vector<32x1xf32>
    %c241_i32_53 = arith.constant 241 : i32
    %118 = tpu.dynamic_rotate %56 by %c241_i32_53 dim 1 : vector<32x256xf32>, i32 -> vector<32x256xf32>
    %c225_i32 = arith.constant 225 : i32
    %119 = tpu.dynamic_rotate %56 by %c225_i32 dim 1 : vector<32x256xf32>, i32 -> vector<32x256xf32>
    %c6_54 = arith.constant 6 : index
    %c0_55 = arith.constant 0 : index
    %c0_56 = arith.constant 0 : index
    %120 = vector.load %arg3[%c6_54, %c0_55, %c0_56] : memref<9x1x256xf32, #tpu.memory_space<vmem>>, vector<1x1x256xf32>
    %121 = vector.shape_cast %120 : vector<1x1x256xf32> to vector<1x256xf32>
    %cst_57 = arith.constant 0.000000e+00 : f32
    %122 = vector.broadcast %cst_57 : f32 to vector<1x256xf32>
    %123 = arith.cmpf one, %121, %122 : vector<1x256xf32>
    %124 = vector.shape_cast %123 : vector<1x256xi1> to vector<1x256xi1>
    %125 = vector.broadcast %124 : vector<1x256xi1> to vector<32x256xi1>
    %126 = arith.select %125, %119, %118 : vector<32x256xi1>, vector<32x256xf32>
    %127 = vector.broadcast %117 : vector<32x1xf32> to vector<32x256xf32>
    %128 = arith.mulf %127, %126 : vector<32x256xf32>
    %129 = arith.addf %116, %128 : vector<32x256xf32>
    %130 = vector.extract_strided_slice %55 {offsets = [0, 7], sizes = [32, 1], strides = [1, 1]} : vector<64x9xf32> to vector<32x1xf32>
    %c240_i32_58 = arith.constant 240 : i32
    %131 = tpu.dynamic_rotate %56 by %c240_i32_58 dim 1 : vector<32x256xf32>, i32 -> vector<32x256xf32>
    %132 = vector.broadcast %130 : vector<32x1xf32> to vector<32x256xf32>
    %133 = arith.mulf %132, %131 : vector<32x256xf32>
    %134 = arith.addf %129, %133 : vector<32x256xf32>
    %135 = vector.extract_strided_slice %55 {offsets = [0, 8], sizes = [32, 1], strides = [1, 1]} : vector<64x9xf32> to vector<32x1xf32>
    %c239_i32_59 = arith.constant 239 : i32
    %136 = tpu.dynamic_rotate %56 by %c239_i32_59 dim 1 : vector<32x256xf32>, i32 -> vector<32x256xf32>
    %c255_i32_60 = arith.constant 255 : i32
    %137 = tpu.dynamic_rotate %56 by %c255_i32_60 dim 1 : vector<32x256xf32>, i32 -> vector<32x256xf32>
    %c8_61 = arith.constant 8 : index
    %c0_62 = arith.constant 0 : index
    %c0_63 = arith.constant 0 : index
    %138 = vector.load %arg3[%c8_61, %c0_62, %c0_63] : memref<9x1x256xf32, #tpu.memory_space<vmem>>, vector<1x1x256xf32>
    %139 = vector.shape_cast %138 : vector<1x1x256xf32> to vector<1x256xf32>
    %cst_64 = arith.constant 0.000000e+00 : f32
    %140 = vector.broadcast %cst_64 : f32 to vector<1x256xf32>
    %141 = arith.cmpf one, %139, %140 : vector<1x256xf32>
    %142 = vector.shape_cast %141 : vector<1x256xi1> to vector<1x256xi1>
    %143 = vector.broadcast %142 : vector<1x256xi1> to vector<32x256xi1>
    %144 = arith.select %143, %137, %136 : vector<32x256xi1>, vector<32x256xf32>
    %145 = vector.broadcast %135 : vector<32x1xf32> to vector<32x256xf32>
    %146 = arith.mulf %145, %144 : vector<32x256xf32>
    %147 = arith.addf %134, %146 : vector<32x256xf32>
    %148 = vector.extract_strided_slice %53 {offsets = [32, 0], sizes = [32, 256], strides = [1, 1]} : vector<64x256xf32> to vector<32x256xf32>
    %149 = vector.extract_strided_slice %55 {offsets = [32, 0], sizes = [32, 1], strides = [1, 1]} : vector<64x9xf32> to vector<32x1xf32>
    %c17_i32_65 = arith.constant 17 : i32
    %150 = tpu.dynamic_rotate %148 by %c17_i32_65 dim 1 : vector<32x256xf32>, i32 -> vector<32x256xf32>
    %c1_i32_66 = arith.constant 1 : i32
    %151 = tpu.dynamic_rotate %148 by %c1_i32_66 dim 1 : vector<32x256xf32>, i32 -> vector<32x256xf32>
    %c0_67 = arith.constant 0 : index
    %c0_68 = arith.constant 0 : index
    %c0_69 = arith.constant 0 : index
    %152 = vector.load %arg3[%c0_67, %c0_68, %c0_69] : memref<9x1x256xf32, #tpu.memory_space<vmem>>, vector<1x1x256xf32>
    %153 = vector.shape_cast %152 : vector<1x1x256xf32> to vector<1x256xf32>
    %cst_70 = arith.constant 0.000000e+00 : f32
    %154 = vector.broadcast %cst_70 : f32 to vector<1x256xf32>
    %155 = arith.cmpf one, %153, %154 : vector<1x256xf32>
    %156 = vector.shape_cast %155 : vector<1x256xi1> to vector<1x256xi1>
    %157 = vector.broadcast %156 : vector<1x256xi1> to vector<32x256xi1>
    %158 = arith.select %157, %151, %150 : vector<32x256xi1>, vector<32x256xf32>
    %159 = vector.broadcast %149 : vector<32x1xf32> to vector<32x256xf32>
    %160 = arith.mulf %159, %158 : vector<32x256xf32>
    %161 = vector.extract_strided_slice %55 {offsets = [32, 1], sizes = [32, 1], strides = [1, 1]} : vector<64x9xf32> to vector<32x1xf32>
    %c16_i32_71 = arith.constant 16 : i32
    %162 = tpu.dynamic_rotate %148 by %c16_i32_71 dim 1 : vector<32x256xf32>, i32 -> vector<32x256xf32>
    %163 = vector.broadcast %161 : vector<32x1xf32> to vector<32x256xf32>
    %164 = arith.mulf %163, %162 : vector<32x256xf32>
    %165 = arith.addf %160, %164 : vector<32x256xf32>
    %166 = vector.extract_strided_slice %55 {offsets = [32, 2], sizes = [32, 1], strides = [1, 1]} : vector<64x9xf32> to vector<32x1xf32>
    %c15_i32_72 = arith.constant 15 : i32
    %167 = tpu.dynamic_rotate %148 by %c15_i32_72 dim 1 : vector<32x256xf32>, i32 -> vector<32x256xf32>
    %c31_i32_73 = arith.constant 31 : i32
    %168 = tpu.dynamic_rotate %148 by %c31_i32_73 dim 1 : vector<32x256xf32>, i32 -> vector<32x256xf32>
    %c2_74 = arith.constant 2 : index
    %c0_75 = arith.constant 0 : index
    %c0_76 = arith.constant 0 : index
    %169 = vector.load %arg3[%c2_74, %c0_75, %c0_76] : memref<9x1x256xf32, #tpu.memory_space<vmem>>, vector<1x1x256xf32>
    %170 = vector.shape_cast %169 : vector<1x1x256xf32> to vector<1x256xf32>
    %cst_77 = arith.constant 0.000000e+00 : f32
    %171 = vector.broadcast %cst_77 : f32 to vector<1x256xf32>
    %172 = arith.cmpf one, %170, %171 : vector<1x256xf32>
    %173 = vector.shape_cast %172 : vector<1x256xi1> to vector<1x256xi1>
    %174 = vector.broadcast %173 : vector<1x256xi1> to vector<32x256xi1>
    %175 = arith.select %174, %168, %167 : vector<32x256xi1>, vector<32x256xf32>
    %176 = vector.broadcast %166 : vector<32x1xf32> to vector<32x256xf32>
    %177 = arith.mulf %176, %175 : vector<32x256xf32>
    %178 = arith.addf %165, %177 : vector<32x256xf32>
    %179 = vector.extract_strided_slice %55 {offsets = [32, 3], sizes = [32, 1], strides = [1, 1]} : vector<64x9xf32> to vector<32x1xf32>
    %c1_i32_78 = arith.constant 1 : i32
    %180 = tpu.dynamic_rotate %148 by %c1_i32_78 dim 1 : vector<32x256xf32>, i32 -> vector<32x256xf32>
    %c241_i32_79 = arith.constant 241 : i32
    %181 = tpu.dynamic_rotate %148 by %c241_i32_79 dim 1 : vector<32x256xf32>, i32 -> vector<32x256xf32>
    %c3_80 = arith.constant 3 : index
    %c0_81 = arith.constant 0 : index
    %c0_82 = arith.constant 0 : index
    %182 = vector.load %arg3[%c3_80, %c0_81, %c0_82] : memref<9x1x256xf32, #tpu.memory_space<vmem>>, vector<1x1x256xf32>
    %183 = vector.shape_cast %182 : vector<1x1x256xf32> to vector<1x256xf32>
    %cst_83 = arith.constant 0.000000e+00 : f32
    %184 = vector.broadcast %cst_83 : f32 to vector<1x256xf32>
    %185 = arith.cmpf one, %183, %184 : vector<1x256xf32>
    %186 = vector.shape_cast %185 : vector<1x256xi1> to vector<1x256xi1>
    %187 = vector.broadcast %186 : vector<1x256xi1> to vector<32x256xi1>
    %188 = arith.select %187, %181, %180 : vector<32x256xi1>, vector<32x256xf32>
    %189 = vector.broadcast %179 : vector<32x1xf32> to vector<32x256xf32>
    %190 = arith.mulf %189, %188 : vector<32x256xf32>
    %191 = arith.addf %178, %190 : vector<32x256xf32>
    %192 = vector.extract_strided_slice %55 {offsets = [32, 4], sizes = [32, 1], strides = [1, 1]} : vector<64x9xf32> to vector<32x1xf32>
    %193 = vector.broadcast %192 : vector<32x1xf32> to vector<32x256xf32>
    %194 = arith.mulf %193, %148 : vector<32x256xf32>
    %195 = arith.addf %191, %194 : vector<32x256xf32>
    %196 = vector.extract_strided_slice %55 {offsets = [32, 5], sizes = [32, 1], strides = [1, 1]} : vector<64x9xf32> to vector<32x1xf32>
    %c255_i32_84 = arith.constant 255 : i32
    %197 = tpu.dynamic_rotate %148 by %c255_i32_84 dim 1 : vector<32x256xf32>, i32 -> vector<32x256xf32>
    %c15_i32_85 = arith.constant 15 : i32
    %198 = tpu.dynamic_rotate %148 by %c15_i32_85 dim 1 : vector<32x256xf32>, i32 -> vector<32x256xf32>
    %c5_86 = arith.constant 5 : index
    %c0_87 = arith.constant 0 : index
    %c0_88 = arith.constant 0 : index
    %199 = vector.load %arg3[%c5_86, %c0_87, %c0_88] : memref<9x1x256xf32, #tpu.memory_space<vmem>>, vector<1x1x256xf32>
    %200 = vector.shape_cast %199 : vector<1x1x256xf32> to vector<1x256xf32>
    %cst_89 = arith.constant 0.000000e+00 : f32
    %201 = vector.broadcast %cst_89 : f32 to vector<1x256xf32>
    %202 = arith.cmpf one, %200, %201 : vector<1x256xf32>
    %203 = vector.shape_cast %202 : vector<1x256xi1> to vector<1x256xi1>
    %204 = vector.broadcast %203 : vector<1x256xi1> to vector<32x256xi1>
    %205 = arith.select %204, %198, %197 : vector<32x256xi1>, vector<32x256xf32>
    %206 = vector.broadcast %196 : vector<32x1xf32> to vector<32x256xf32>
    %207 = arith.mulf %206, %205 : vector<32x256xf32>
    %208 = arith.addf %195, %207 : vector<32x256xf32>
    %209 = vector.extract_strided_slice %55 {offsets = [32, 6], sizes = [32, 1], strides = [1, 1]} : vector<64x9xf32> to vector<32x1xf32>
    %c241_i32_90 = arith.constant 241 : i32
    %210 = tpu.dynamic_rotate %148 by %c241_i32_90 dim 1 : vector<32x256xf32>, i32 -> vector<32x256xf32>
    %c225_i32_91 = arith.constant 225 : i32
    %211 = tpu.dynamic_rotate %148 by %c225_i32_91 dim 1 : vector<32x256xf32>, i32 -> vector<32x256xf32>
    %c6_92 = arith.constant 6 : index
    %c0_93 = arith.constant 0 : index
    %c0_94 = arith.constant 0 : index
    %212 = vector.load %arg3[%c6_92, %c0_93, %c0_94] : memref<9x1x256xf32, #tpu.memory_space<vmem>>, vector<1x1x256xf32>
    %213 = vector.shape_cast %212 : vector<1x1x256xf32> to vector<1x256xf32>
    %cst_95 = arith.constant 0.000000e+00 : f32
    %214 = vector.broadcast %cst_95 : f32 to vector<1x256xf32>
    %215 = arith.cmpf one, %213, %214 : vector<1x256xf32>
    %216 = vector.shape_cast %215 : vector<1x256xi1> to vector<1x256xi1>
    %217 = vector.broadcast %216 : vector<1x256xi1> to vector<32x256xi1>
    %218 = arith.select %217, %211, %210 : vector<32x256xi1>, vector<32x256xf32>
    %219 = vector.broadcast %209 : vector<32x1xf32> to vector<32x256xf32>
    %220 = arith.mulf %219, %218 : vector<32x256xf32>
    %221 = arith.addf %208, %220 : vector<32x256xf32>
    %222 = vector.extract_strided_slice %55 {offsets = [32, 7], sizes = [32, 1], strides = [1, 1]} : vector<64x9xf32> to vector<32x1xf32>
    %c240_i32_96 = arith.constant 240 : i32
    %223 = tpu.dynamic_rotate %148 by %c240_i32_96 dim 1 : vector<32x256xf32>, i32 -> vector<32x256xf32>
    %224 = vector.broadcast %222 : vector<32x1xf32> to vector<32x256xf32>
    %225 = arith.mulf %224, %223 : vector<32x256xf32>
    %226 = arith.addf %221, %225 : vector<32x256xf32>
    %227 = vector.extract_strided_slice %55 {offsets = [32, 8], sizes = [32, 1], strides = [1, 1]} : vector<64x9xf32> to vector<32x1xf32>
    %c239_i32_97 = arith.constant 239 : i32
    %228 = tpu.dynamic_rotate %148 by %c239_i32_97 dim 1 : vector<32x256xf32>, i32 -> vector<32x256xf32>
    %c255_i32_98 = arith.constant 255 : i32
    %229 = tpu.dynamic_rotate %148 by %c255_i32_98 dim 1 : vector<32x256xf32>, i32 -> vector<32x256xf32>
    %c8_99 = arith.constant 8 : index
    %c0_100 = arith.constant 0 : index
    %c0_101 = arith.constant 0 : index
    %230 = vector.load %arg3[%c8_99, %c0_100, %c0_101] : memref<9x1x256xf32, #tpu.memory_space<vmem>>, vector<1x1x256xf32>
    %231 = vector.shape_cast %230 : vector<1x1x256xf32> to vector<1x256xf32>
    %cst_102 = arith.constant 0.000000e+00 : f32
    %232 = vector.broadcast %cst_102 : f32 to vector<1x256xf32>
    %233 = arith.cmpf one, %231, %232 : vector<1x256xf32>
    %234 = vector.shape_cast %233 : vector<1x256xi1> to vector<1x256xi1>
    %235 = vector.broadcast %234 : vector<1x256xi1> to vector<32x256xi1>
    %236 = arith.select %235, %229, %228 : vector<32x256xi1>, vector<32x256xf32>
    %237 = vector.broadcast %227 : vector<32x1xf32> to vector<32x256xf32>
    %238 = arith.mulf %237, %236 : vector<32x256xf32>
    %239 = arith.addf %226, %238 : vector<32x256xf32>
    %240 = tpu.concatenate %147, %239 in 0 : vector<32x256xf32>, vector<32x256xf32> -> vector<64x256xf32>
    %c0_103 = arith.constant 0 : index
    %c0_104 = arith.constant 0 : index
    %c0_105 = arith.constant 0 : index
    %241 = vector.load %arg7[%c0_103, %c0_104, %c0_105] : memref<2x64x64xf32, #tpu.memory_space<vmem>>, vector<1x64x64xf32>
    %242 = vector.shape_cast %241 : vector<1x64x64xf32> to vector<64x64xf32>
    %cst_106 = arith.constant dense<0.000000e+00> : vector<64x256xf32>
    %243 = tpu.matmul %242, %240, %cst_106 {dimension_numbers = #tpu.dot_dimension_numbers<[1], [0], [0], [1], [0, 0, 1, 1], [], []>} : vector<64x64xf32>, vector<64x256xf32>, vector<64x256xf32> -> vector<64x256xf32>
    %c0_107 = arith.constant 0 : index
    %c0_108 = arith.constant 0 : index
    %c0_109 = arith.constant 0 : index
    %244 = vector.load %arg8[%c0_107, %c0_108, %c0_109] : memref<2x64x1xf32, #tpu.memory_space<vmem>>, vector<1x64x1xf32>
    %245 = vector.shape_cast %244 : vector<1x64x1xf32> to vector<64x1xf32>
    %246 = vector.broadcast %245 : vector<64x1xf32> to vector<64x256xf32>
    %247 = arith.addf %243, %246 : vector<64x256xf32>
    %cst_110 = arith.constant 0.000000e+00 : f32
    %248 = vector.broadcast %cst_110 : f32 to vector<64x256xf32>
    %249 = arith.maximumf %247, %248 : vector<64x256xf32>
    %250 = arith.addf %249, %53 : vector<64x256xf32>
    %c1_111 = arith.constant 1 : index
    %c0_112 = arith.constant 0 : index
    %c0_113 = arith.constant 0 : index
    %251 = vector.load %arg6[%c1_111, %c0_112, %c0_113] : memref<2x64x9xf32, #tpu.memory_space<vmem>>, vector<1x64x9xf32>
    %252 = vector.shape_cast %251 : vector<1x64x9xf32> to vector<64x9xf32>
    %253 = vector.extract_strided_slice %250 {offsets = [0, 0], sizes = [32, 256], strides = [1, 1]} : vector<64x256xf32> to vector<32x256xf32>
    %254 = vector.extract_strided_slice %252 {offsets = [0, 0], sizes = [32, 1], strides = [1, 1]} : vector<64x9xf32> to vector<32x1xf32>
    %c17_i32_114 = arith.constant 17 : i32
    %255 = tpu.dynamic_rotate %253 by %c17_i32_114 dim 1 : vector<32x256xf32>, i32 -> vector<32x256xf32>
    %c1_i32_115 = arith.constant 1 : i32
    %256 = tpu.dynamic_rotate %253 by %c1_i32_115 dim 1 : vector<32x256xf32>, i32 -> vector<32x256xf32>
    %c0_116 = arith.constant 0 : index
    %c0_117 = arith.constant 0 : index
    %c0_118 = arith.constant 0 : index
    %257 = vector.load %arg3[%c0_116, %c0_117, %c0_118] : memref<9x1x256xf32, #tpu.memory_space<vmem>>, vector<1x1x256xf32>
    %258 = vector.shape_cast %257 : vector<1x1x256xf32> to vector<1x256xf32>
    %cst_119 = arith.constant 0.000000e+00 : f32
    %259 = vector.broadcast %cst_119 : f32 to vector<1x256xf32>
    %260 = arith.cmpf one, %258, %259 : vector<1x256xf32>
    %261 = vector.shape_cast %260 : vector<1x256xi1> to vector<1x256xi1>
    %262 = vector.broadcast %261 : vector<1x256xi1> to vector<32x256xi1>
    %263 = arith.select %262, %256, %255 : vector<32x256xi1>, vector<32x256xf32>
    %264 = vector.broadcast %254 : vector<32x1xf32> to vector<32x256xf32>
    %265 = arith.mulf %264, %263 : vector<32x256xf32>
    %266 = vector.extract_strided_slice %252 {offsets = [0, 1], sizes = [32, 1], strides = [1, 1]} : vector<64x9xf32> to vector<32x1xf32>
    %c16_i32_120 = arith.constant 16 : i32
    %267 = tpu.dynamic_rotate %253 by %c16_i32_120 dim 1 : vector<32x256xf32>, i32 -> vector<32x256xf32>
    %268 = vector.broadcast %266 : vector<32x1xf32> to vector<32x256xf32>
    %269 = arith.mulf %268, %267 : vector<32x256xf32>
    %270 = arith.addf %265, %269 : vector<32x256xf32>
    %271 = vector.extract_strided_slice %252 {offsets = [0, 2], sizes = [32, 1], strides = [1, 1]} : vector<64x9xf32> to vector<32x1xf32>
    %c15_i32_121 = arith.constant 15 : i32
    %272 = tpu.dynamic_rotate %253 by %c15_i32_121 dim 1 : vector<32x256xf32>, i32 -> vector<32x256xf32>
    %c31_i32_122 = arith.constant 31 : i32
    %273 = tpu.dynamic_rotate %253 by %c31_i32_122 dim 1 : vector<32x256xf32>, i32 -> vector<32x256xf32>
    %c2_123 = arith.constant 2 : index
    %c0_124 = arith.constant 0 : index
    %c0_125 = arith.constant 0 : index
    %274 = vector.load %arg3[%c2_123, %c0_124, %c0_125] : memref<9x1x256xf32, #tpu.memory_space<vmem>>, vector<1x1x256xf32>
    %275 = vector.shape_cast %274 : vector<1x1x256xf32> to vector<1x256xf32>
    %cst_126 = arith.constant 0.000000e+00 : f32
    %276 = vector.broadcast %cst_126 : f32 to vector<1x256xf32>
    %277 = arith.cmpf one, %275, %276 : vector<1x256xf32>
    %278 = vector.shape_cast %277 : vector<1x256xi1> to vector<1x256xi1>
    %279 = vector.broadcast %278 : vector<1x256xi1> to vector<32x256xi1>
    %280 = arith.select %279, %273, %272 : vector<32x256xi1>, vector<32x256xf32>
    %281 = vector.broadcast %271 : vector<32x1xf32> to vector<32x256xf32>
    %282 = arith.mulf %281, %280 : vector<32x256xf32>
    %283 = arith.addf %270, %282 : vector<32x256xf32>
    %284 = vector.extract_strided_slice %252 {offsets = [0, 3], sizes = [32, 1], strides = [1, 1]} : vector<64x9xf32> to vector<32x1xf32>
    %c1_i32_127 = arith.constant 1 : i32
    %285 = tpu.dynamic_rotate %253 by %c1_i32_127 dim 1 : vector<32x256xf32>, i32 -> vector<32x256xf32>
    %c241_i32_128 = arith.constant 241 : i32
    %286 = tpu.dynamic_rotate %253 by %c241_i32_128 dim 1 : vector<32x256xf32>, i32 -> vector<32x256xf32>
    %c3_129 = arith.constant 3 : index
    %c0_130 = arith.constant 0 : index
    %c0_131 = arith.constant 0 : index
    %287 = vector.load %arg3[%c3_129, %c0_130, %c0_131] : memref<9x1x256xf32, #tpu.memory_space<vmem>>, vector<1x1x256xf32>
    %288 = vector.shape_cast %287 : vector<1x1x256xf32> to vector<1x256xf32>
    %cst_132 = arith.constant 0.000000e+00 : f32
    %289 = vector.broadcast %cst_132 : f32 to vector<1x256xf32>
    %290 = arith.cmpf one, %288, %289 : vector<1x256xf32>
    %291 = vector.shape_cast %290 : vector<1x256xi1> to vector<1x256xi1>
    %292 = vector.broadcast %291 : vector<1x256xi1> to vector<32x256xi1>
    %293 = arith.select %292, %286, %285 : vector<32x256xi1>, vector<32x256xf32>
    %294 = vector.broadcast %284 : vector<32x1xf32> to vector<32x256xf32>
    %295 = arith.mulf %294, %293 : vector<32x256xf32>
    %296 = arith.addf %283, %295 : vector<32x256xf32>
    %297 = vector.extract_strided_slice %252 {offsets = [0, 4], sizes = [32, 1], strides = [1, 1]} : vector<64x9xf32> to vector<32x1xf32>
    %298 = vector.broadcast %297 : vector<32x1xf32> to vector<32x256xf32>
    %299 = arith.mulf %298, %253 : vector<32x256xf32>
    %300 = arith.addf %296, %299 : vector<32x256xf32>
    %301 = vector.extract_strided_slice %252 {offsets = [0, 5], sizes = [32, 1], strides = [1, 1]} : vector<64x9xf32> to vector<32x1xf32>
    %c255_i32_133 = arith.constant 255 : i32
    %302 = tpu.dynamic_rotate %253 by %c255_i32_133 dim 1 : vector<32x256xf32>, i32 -> vector<32x256xf32>
    %c15_i32_134 = arith.constant 15 : i32
    %303 = tpu.dynamic_rotate %253 by %c15_i32_134 dim 1 : vector<32x256xf32>, i32 -> vector<32x256xf32>
    %c5_135 = arith.constant 5 : index
    %c0_136 = arith.constant 0 : index
    %c0_137 = arith.constant 0 : index
    %304 = vector.load %arg3[%c5_135, %c0_136, %c0_137] : memref<9x1x256xf32, #tpu.memory_space<vmem>>, vector<1x1x256xf32>
    %305 = vector.shape_cast %304 : vector<1x1x256xf32> to vector<1x256xf32>
    %cst_138 = arith.constant 0.000000e+00 : f32
    %306 = vector.broadcast %cst_138 : f32 to vector<1x256xf32>
    %307 = arith.cmpf one, %305, %306 : vector<1x256xf32>
    %308 = vector.shape_cast %307 : vector<1x256xi1> to vector<1x256xi1>
    %309 = vector.broadcast %308 : vector<1x256xi1> to vector<32x256xi1>
    %310 = arith.select %309, %303, %302 : vector<32x256xi1>, vector<32x256xf32>
    %311 = vector.broadcast %301 : vector<32x1xf32> to vector<32x256xf32>
    %312 = arith.mulf %311, %310 : vector<32x256xf32>
    %313 = arith.addf %300, %312 : vector<32x256xf32>
    %314 = vector.extract_strided_slice %252 {offsets = [0, 6], sizes = [32, 1], strides = [1, 1]} : vector<64x9xf32> to vector<32x1xf32>
    %c241_i32_139 = arith.constant 241 : i32
    %315 = tpu.dynamic_rotate %253 by %c241_i32_139 dim 1 : vector<32x256xf32>, i32 -> vector<32x256xf32>
    %c225_i32_140 = arith.constant 225 : i32
    %316 = tpu.dynamic_rotate %253 by %c225_i32_140 dim 1 : vector<32x256xf32>, i32 -> vector<32x256xf32>
    %c6_141 = arith.constant 6 : index
    %c0_142 = arith.constant 0 : index
    %c0_143 = arith.constant 0 : index
    %317 = vector.load %arg3[%c6_141, %c0_142, %c0_143] : memref<9x1x256xf32, #tpu.memory_space<vmem>>, vector<1x1x256xf32>
    %318 = vector.shape_cast %317 : vector<1x1x256xf32> to vector<1x256xf32>
    %cst_144 = arith.constant 0.000000e+00 : f32
    %319 = vector.broadcast %cst_144 : f32 to vector<1x256xf32>
    %320 = arith.cmpf one, %318, %319 : vector<1x256xf32>
    %321 = vector.shape_cast %320 : vector<1x256xi1> to vector<1x256xi1>
    %322 = vector.broadcast %321 : vector<1x256xi1> to vector<32x256xi1>
    %323 = arith.select %322, %316, %315 : vector<32x256xi1>, vector<32x256xf32>
    %324 = vector.broadcast %314 : vector<32x1xf32> to vector<32x256xf32>
    %325 = arith.mulf %324, %323 : vector<32x256xf32>
    %326 = arith.addf %313, %325 : vector<32x256xf32>
    %327 = vector.extract_strided_slice %252 {offsets = [0, 7], sizes = [32, 1], strides = [1, 1]} : vector<64x9xf32> to vector<32x1xf32>
    %c240_i32_145 = arith.constant 240 : i32
    %328 = tpu.dynamic_rotate %253 by %c240_i32_145 dim 1 : vector<32x256xf32>, i32 -> vector<32x256xf32>
    %329 = vector.broadcast %327 : vector<32x1xf32> to vector<32x256xf32>
    %330 = arith.mulf %329, %328 : vector<32x256xf32>
    %331 = arith.addf %326, %330 : vector<32x256xf32>
    %332 = vector.extract_strided_slice %252 {offsets = [0, 8], sizes = [32, 1], strides = [1, 1]} : vector<64x9xf32> to vector<32x1xf32>
    %c239_i32_146 = arith.constant 239 : i32
    %333 = tpu.dynamic_rotate %253 by %c239_i32_146 dim 1 : vector<32x256xf32>, i32 -> vector<32x256xf32>
    %c255_i32_147 = arith.constant 255 : i32
    %334 = tpu.dynamic_rotate %253 by %c255_i32_147 dim 1 : vector<32x256xf32>, i32 -> vector<32x256xf32>
    %c8_148 = arith.constant 8 : index
    %c0_149 = arith.constant 0 : index
    %c0_150 = arith.constant 0 : index
    %335 = vector.load %arg3[%c8_148, %c0_149, %c0_150] : memref<9x1x256xf32, #tpu.memory_space<vmem>>, vector<1x1x256xf32>
    %336 = vector.shape_cast %335 : vector<1x1x256xf32> to vector<1x256xf32>
    %cst_151 = arith.constant 0.000000e+00 : f32
    %337 = vector.broadcast %cst_151 : f32 to vector<1x256xf32>
    %338 = arith.cmpf one, %336, %337 : vector<1x256xf32>
    %339 = vector.shape_cast %338 : vector<1x256xi1> to vector<1x256xi1>
    %340 = vector.broadcast %339 : vector<1x256xi1> to vector<32x256xi1>
    %341 = arith.select %340, %334, %333 : vector<32x256xi1>, vector<32x256xf32>
    %342 = vector.broadcast %332 : vector<32x1xf32> to vector<32x256xf32>
    %343 = arith.mulf %342, %341 : vector<32x256xf32>
    %344 = arith.addf %331, %343 : vector<32x256xf32>
    %345 = vector.extract_strided_slice %250 {offsets = [32, 0], sizes = [32, 256], strides = [1, 1]} : vector<64x256xf32> to vector<32x256xf32>
    %346 = vector.extract_strided_slice %252 {offsets = [32, 0], sizes = [32, 1], strides = [1, 1]} : vector<64x9xf32> to vector<32x1xf32>
    %c17_i32_152 = arith.constant 17 : i32
    %347 = tpu.dynamic_rotate %345 by %c17_i32_152 dim 1 : vector<32x256xf32>, i32 -> vector<32x256xf32>
    %c1_i32_153 = arith.constant 1 : i32
    %348 = tpu.dynamic_rotate %345 by %c1_i32_153 dim 1 : vector<32x256xf32>, i32 -> vector<32x256xf32>
    %c0_154 = arith.constant 0 : index
    %c0_155 = arith.constant 0 : index
    %c0_156 = arith.constant 0 : index
    %349 = vector.load %arg3[%c0_154, %c0_155, %c0_156] : memref<9x1x256xf32, #tpu.memory_space<vmem>>, vector<1x1x256xf32>
    %350 = vector.shape_cast %349 : vector<1x1x256xf32> to vector<1x256xf32>
    %cst_157 = arith.constant 0.000000e+00 : f32
    %351 = vector.broadcast %cst_157 : f32 to vector<1x256xf32>
    %352 = arith.cmpf one, %350, %351 : vector<1x256xf32>
    %353 = vector.shape_cast %352 : vector<1x256xi1> to vector<1x256xi1>
    %354 = vector.broadcast %353 : vector<1x256xi1> to vector<32x256xi1>
    %355 = arith.select %354, %348, %347 : vector<32x256xi1>, vector<32x256xf32>
    %356 = vector.broadcast %346 : vector<32x1xf32> to vector<32x256xf32>
    %357 = arith.mulf %356, %355 : vector<32x256xf32>
    %358 = vector.extract_strided_slice %252 {offsets = [32, 1], sizes = [32, 1], strides = [1, 1]} : vector<64x9xf32> to vector<32x1xf32>
    %c16_i32_158 = arith.constant 16 : i32
    %359 = tpu.dynamic_rotate %345 by %c16_i32_158 dim 1 : vector<32x256xf32>, i32 -> vector<32x256xf32>
    %360 = vector.broadcast %358 : vector<32x1xf32> to vector<32x256xf32>
    %361 = arith.mulf %360, %359 : vector<32x256xf32>
    %362 = arith.addf %357, %361 : vector<32x256xf32>
    %363 = vector.extract_strided_slice %252 {offsets = [32, 2], sizes = [32, 1], strides = [1, 1]} : vector<64x9xf32> to vector<32x1xf32>
    %c15_i32_159 = arith.constant 15 : i32
    %364 = tpu.dynamic_rotate %345 by %c15_i32_159 dim 1 : vector<32x256xf32>, i32 -> vector<32x256xf32>
    %c31_i32_160 = arith.constant 31 : i32
    %365 = tpu.dynamic_rotate %345 by %c31_i32_160 dim 1 : vector<32x256xf32>, i32 -> vector<32x256xf32>
    %c2_161 = arith.constant 2 : index
    %c0_162 = arith.constant 0 : index
    %c0_163 = arith.constant 0 : index
    %366 = vector.load %arg3[%c2_161, %c0_162, %c0_163] : memref<9x1x256xf32, #tpu.memory_space<vmem>>, vector<1x1x256xf32>
    %367 = vector.shape_cast %366 : vector<1x1x256xf32> to vector<1x256xf32>
    %cst_164 = arith.constant 0.000000e+00 : f32
    %368 = vector.broadcast %cst_164 : f32 to vector<1x256xf32>
    %369 = arith.cmpf one, %367, %368 : vector<1x256xf32>
    %370 = vector.shape_cast %369 : vector<1x256xi1> to vector<1x256xi1>
    %371 = vector.broadcast %370 : vector<1x256xi1> to vector<32x256xi1>
    %372 = arith.select %371, %365, %364 : vector<32x256xi1>, vector<32x256xf32>
    %373 = vector.broadcast %363 : vector<32x1xf32> to vector<32x256xf32>
    %374 = arith.mulf %373, %372 : vector<32x256xf32>
    %375 = arith.addf %362, %374 : vector<32x256xf32>
    %376 = vector.extract_strided_slice %252 {offsets = [32, 3], sizes = [32, 1], strides = [1, 1]} : vector<64x9xf32> to vector<32x1xf32>
    %c1_i32_165 = arith.constant 1 : i32
    %377 = tpu.dynamic_rotate %345 by %c1_i32_165 dim 1 : vector<32x256xf32>, i32 -> vector<32x256xf32>
    %c241_i32_166 = arith.constant 241 : i32
    %378 = tpu.dynamic_rotate %345 by %c241_i32_166 dim 1 : vector<32x256xf32>, i32 -> vector<32x256xf32>
    %c3_167 = arith.constant 3 : index
    %c0_168 = arith.constant 0 : index
    %c0_169 = arith.constant 0 : index
    %379 = vector.load %arg3[%c3_167, %c0_168, %c0_169] : memref<9x1x256xf32, #tpu.memory_space<vmem>>, vector<1x1x256xf32>
    %380 = vector.shape_cast %379 : vector<1x1x256xf32> to vector<1x256xf32>
    %cst_170 = arith.constant 0.000000e+00 : f32
    %381 = vector.broadcast %cst_170 : f32 to vector<1x256xf32>
    %382 = arith.cmpf one, %380, %381 : vector<1x256xf32>
    %383 = vector.shape_cast %382 : vector<1x256xi1> to vector<1x256xi1>
    %384 = vector.broadcast %383 : vector<1x256xi1> to vector<32x256xi1>
    %385 = arith.select %384, %378, %377 : vector<32x256xi1>, vector<32x256xf32>
    %386 = vector.broadcast %376 : vector<32x1xf32> to vector<32x256xf32>
    %387 = arith.mulf %386, %385 : vector<32x256xf32>
    %388 = arith.addf %375, %387 : vector<32x256xf32>
    %389 = vector.extract_strided_slice %252 {offsets = [32, 4], sizes = [32, 1], strides = [1, 1]} : vector<64x9xf32> to vector<32x1xf32>
    %390 = vector.broadcast %389 : vector<32x1xf32> to vector<32x256xf32>
    %391 = arith.mulf %390, %345 : vector<32x256xf32>
    %392 = arith.addf %388, %391 : vector<32x256xf32>
    %393 = vector.extract_strided_slice %252 {offsets = [32, 5], sizes = [32, 1], strides = [1, 1]} : vector<64x9xf32> to vector<32x1xf32>
    %c255_i32_171 = arith.constant 255 : i32
    %394 = tpu.dynamic_rotate %345 by %c255_i32_171 dim 1 : vector<32x256xf32>, i32 -> vector<32x256xf32>
    %c15_i32_172 = arith.constant 15 : i32
    %395 = tpu.dynamic_rotate %345 by %c15_i32_172 dim 1 : vector<32x256xf32>, i32 -> vector<32x256xf32>
    %c5_173 = arith.constant 5 : index
    %c0_174 = arith.constant 0 : index
    %c0_175 = arith.constant 0 : index
    %396 = vector.load %arg3[%c5_173, %c0_174, %c0_175] : memref<9x1x256xf32, #tpu.memory_space<vmem>>, vector<1x1x256xf32>
    %397 = vector.shape_cast %396 : vector<1x1x256xf32> to vector<1x256xf32>
    %cst_176 = arith.constant 0.000000e+00 : f32
    %398 = vector.broadcast %cst_176 : f32 to vector<1x256xf32>
    %399 = arith.cmpf one, %397, %398 : vector<1x256xf32>
    %400 = vector.shape_cast %399 : vector<1x256xi1> to vector<1x256xi1>
    %401 = vector.broadcast %400 : vector<1x256xi1> to vector<32x256xi1>
    %402 = arith.select %401, %395, %394 : vector<32x256xi1>, vector<32x256xf32>
    %403 = vector.broadcast %393 : vector<32x1xf32> to vector<32x256xf32>
    %404 = arith.mulf %403, %402 : vector<32x256xf32>
    %405 = arith.addf %392, %404 : vector<32x256xf32>
    %406 = vector.extract_strided_slice %252 {offsets = [32, 6], sizes = [32, 1], strides = [1, 1]} : vector<64x9xf32> to vector<32x1xf32>
    %c241_i32_177 = arith.constant 241 : i32
    %407 = tpu.dynamic_rotate %345 by %c241_i32_177 dim 1 : vector<32x256xf32>, i32 -> vector<32x256xf32>
    %c225_i32_178 = arith.constant 225 : i32
    %408 = tpu.dynamic_rotate %345 by %c225_i32_178 dim 1 : vector<32x256xf32>, i32 -> vector<32x256xf32>
    %c6_179 = arith.constant 6 : index
    %c0_180 = arith.constant 0 : index
    %c0_181 = arith.constant 0 : index
    %409 = vector.load %arg3[%c6_179, %c0_180, %c0_181] : memref<9x1x256xf32, #tpu.memory_space<vmem>>, vector<1x1x256xf32>
    %410 = vector.shape_cast %409 : vector<1x1x256xf32> to vector<1x256xf32>
    %cst_182 = arith.constant 0.000000e+00 : f32
    %411 = vector.broadcast %cst_182 : f32 to vector<1x256xf32>
    %412 = arith.cmpf one, %410, %411 : vector<1x256xf32>
    %413 = vector.shape_cast %412 : vector<1x256xi1> to vector<1x256xi1>
    %414 = vector.broadcast %413 : vector<1x256xi1> to vector<32x256xi1>
    %415 = arith.select %414, %408, %407 : vector<32x256xi1>, vector<32x256xf32>
    %416 = vector.broadcast %406 : vector<32x1xf32> to vector<32x256xf32>
    %417 = arith.mulf %416, %415 : vector<32x256xf32>
    %418 = arith.addf %405, %417 : vector<32x256xf32>
    %419 = vector.extract_strided_slice %252 {offsets = [32, 7], sizes = [32, 1], strides = [1, 1]} : vector<64x9xf32> to vector<32x1xf32>
    %c240_i32_183 = arith.constant 240 : i32
    %420 = tpu.dynamic_rotate %345 by %c240_i32_183 dim 1 : vector<32x256xf32>, i32 -> vector<32x256xf32>
    %421 = vector.broadcast %419 : vector<32x1xf32> to vector<32x256xf32>
    %422 = arith.mulf %421, %420 : vector<32x256xf32>
    %423 = arith.addf %418, %422 : vector<32x256xf32>
    %424 = vector.extract_strided_slice %252 {offsets = [32, 8], sizes = [32, 1], strides = [1, 1]} : vector<64x9xf32> to vector<32x1xf32>
    %c239_i32_184 = arith.constant 239 : i32
    %425 = tpu.dynamic_rotate %345 by %c239_i32_184 dim 1 : vector<32x256xf32>, i32 -> vector<32x256xf32>
    %c255_i32_185 = arith.constant 255 : i32
    %426 = tpu.dynamic_rotate %345 by %c255_i32_185 dim 1 : vector<32x256xf32>, i32 -> vector<32x256xf32>
    %c8_186 = arith.constant 8 : index
    %c0_187 = arith.constant 0 : index
    %c0_188 = arith.constant 0 : index
    %427 = vector.load %arg3[%c8_186, %c0_187, %c0_188] : memref<9x1x256xf32, #tpu.memory_space<vmem>>, vector<1x1x256xf32>
    %428 = vector.shape_cast %427 : vector<1x1x256xf32> to vector<1x256xf32>
    %cst_189 = arith.constant 0.000000e+00 : f32
    %429 = vector.broadcast %cst_189 : f32 to vector<1x256xf32>
    %430 = arith.cmpf one, %428, %429 : vector<1x256xf32>
    %431 = vector.shape_cast %430 : vector<1x256xi1> to vector<1x256xi1>
    %432 = vector.broadcast %431 : vector<1x256xi1> to vector<32x256xi1>
    %433 = arith.select %432, %426, %425 : vector<32x256xi1>, vector<32x256xf32>
    %434 = vector.broadcast %424 : vector<32x1xf32> to vector<32x256xf32>
    %435 = arith.mulf %434, %433 : vector<32x256xf32>
    %436 = arith.addf %423, %435 : vector<32x256xf32>
    %437 = tpu.concatenate %344, %436 in 0 : vector<32x256xf32>, vector<32x256xf32> -> vector<64x256xf32>
    %c1_190 = arith.constant 1 : index
    %c0_191 = arith.constant 0 : index
    %c0_192 = arith.constant 0 : index
    %438 = vector.load %arg7[%c1_190, %c0_191, %c0_192] : memref<2x64x64xf32, #tpu.memory_space<vmem>>, vector<1x64x64xf32>
    %439 = vector.shape_cast %438 : vector<1x64x64xf32> to vector<64x64xf32>
    %cst_193 = arith.constant dense<0.000000e+00> : vector<64x256xf32>
    %440 = tpu.matmul %439, %437, %cst_193 {dimension_numbers = #tpu.dot_dimension_numbers<[1], [0], [0], [1], [0, 0, 1, 1], [], []>} : vector<64x64xf32>, vector<64x256xf32>, vector<64x256xf32> -> vector<64x256xf32>
    %c1_194 = arith.constant 1 : index
    %c0_195 = arith.constant 0 : index
    %c0_196 = arith.constant 0 : index
    %441 = vector.load %arg8[%c1_194, %c0_195, %c0_196] : memref<2x64x1xf32, #tpu.memory_space<vmem>>, vector<1x64x1xf32>
    %442 = vector.shape_cast %441 : vector<1x64x1xf32> to vector<64x1xf32>
    %443 = vector.broadcast %442 : vector<64x1xf32> to vector<64x256xf32>
    %444 = arith.addf %440, %443 : vector<64x256xf32>
    %cst_197 = arith.constant 0.000000e+00 : f32
    %445 = vector.broadcast %cst_197 : f32 to vector<64x256xf32>
    %446 = arith.maximumf %444, %445 : vector<64x256xf32>
    %447 = arith.addf %446, %250 : vector<64x256xf32>
    %c0_198 = arith.constant 0 : index
    %c0_199 = arith.constant 0 : index
    %448 = vector.load %arg10[%c0_198, %c0_199] : memref<8x1xf32, #tpu.memory_space<vmem>>, vector<8x1xf32>
    %449 = vector.broadcast %448 : vector<8x1xf32> to vector<8x256xf32>
    %450 = arith.addf %1, %449 : vector<8x256xf32>
    %c17_i32_200 = arith.constant 17 : i32
    %451 = tpu.dynamic_rotate %447 by %c17_i32_200 dim 1 : vector<64x256xf32>, i32 -> vector<64x256xf32>
    %c0_201 = arith.constant 0 : index
    %c0_202 = arith.constant 0 : index
    %c0_203 = arith.constant 0 : index
    %452 = vector.load %arg9[%c0_201, %c0_202, %c0_203] : memref<9x8x64xf32, #tpu.memory_space<vmem>>, vector<1x8x64xf32>
    %453 = vector.shape_cast %452 : vector<1x8x64xf32> to vector<8x64xf32>
    %cst_204 = arith.constant dense<0.000000e+00> : vector<8x256xf32>
    %454 = tpu.matmul %453, %451, %cst_204 {dimension_numbers = #tpu.dot_dimension_numbers<[1], [0], [0], [1], [0, 0, 1, 1], [], []>} : vector<8x64xf32>, vector<64x256xf32>, vector<8x256xf32> -> vector<8x256xf32>
    %c0_205 = arith.constant 0 : index
    %c0_206 = arith.constant 0 : index
    %c0_207 = arith.constant 0 : index
    %455 = vector.load %arg2[%c0_205, %c0_206, %c0_207] : memref<9x1x256xf32, #tpu.memory_space<vmem>>, vector<1x1x256xf32>
    %456 = vector.shape_cast %455 : vector<1x1x256xf32> to vector<1x256xf32>
    %457 = vector.broadcast %456 : vector<1x256xf32> to vector<8x256xf32>
    %458 = arith.mulf %454, %457 : vector<8x256xf32>
    %459 = arith.addf %450, %458 : vector<8x256xf32>
    %c16_i32_208 = arith.constant 16 : i32
    %460 = tpu.dynamic_rotate %447 by %c16_i32_208 dim 1 : vector<64x256xf32>, i32 -> vector<64x256xf32>
    %c1_209 = arith.constant 1 : index
    %c0_210 = arith.constant 0 : index
    %c0_211 = arith.constant 0 : index
    %461 = vector.load %arg9[%c1_209, %c0_210, %c0_211] : memref<9x8x64xf32, #tpu.memory_space<vmem>>, vector<1x8x64xf32>
    %462 = vector.shape_cast %461 : vector<1x8x64xf32> to vector<8x64xf32>
    %cst_212 = arith.constant dense<0.000000e+00> : vector<8x256xf32>
    %463 = tpu.matmul %462, %460, %cst_212 {dimension_numbers = #tpu.dot_dimension_numbers<[1], [0], [0], [1], [0, 0, 1, 1], [], []>} : vector<8x64xf32>, vector<64x256xf32>, vector<8x256xf32> -> vector<8x256xf32>
    %c1_213 = arith.constant 1 : index
    %c0_214 = arith.constant 0 : index
    %c0_215 = arith.constant 0 : index
    %464 = vector.load %arg2[%c1_213, %c0_214, %c0_215] : memref<9x1x256xf32, #tpu.memory_space<vmem>>, vector<1x1x256xf32>
    %465 = vector.shape_cast %464 : vector<1x1x256xf32> to vector<1x256xf32>
    %466 = vector.broadcast %465 : vector<1x256xf32> to vector<8x256xf32>
    %467 = arith.mulf %463, %466 : vector<8x256xf32>
    %468 = arith.addf %459, %467 : vector<8x256xf32>
    %c15_i32_216 = arith.constant 15 : i32
    %469 = tpu.dynamic_rotate %447 by %c15_i32_216 dim 1 : vector<64x256xf32>, i32 -> vector<64x256xf32>
    %c2_217 = arith.constant 2 : index
    %c0_218 = arith.constant 0 : index
    %c0_219 = arith.constant 0 : index
    %470 = vector.load %arg9[%c2_217, %c0_218, %c0_219] : memref<9x8x64xf32, #tpu.memory_space<vmem>>, vector<1x8x64xf32>
    %471 = vector.shape_cast %470 : vector<1x8x64xf32> to vector<8x64xf32>
    %cst_220 = arith.constant dense<0.000000e+00> : vector<8x256xf32>
    %472 = tpu.matmul %471, %469, %cst_220 {dimension_numbers = #tpu.dot_dimension_numbers<[1], [0], [0], [1], [0, 0, 1, 1], [], []>} : vector<8x64xf32>, vector<64x256xf32>, vector<8x256xf32> -> vector<8x256xf32>
    %c2_221 = arith.constant 2 : index
    %c0_222 = arith.constant 0 : index
    %c0_223 = arith.constant 0 : index
    %473 = vector.load %arg2[%c2_221, %c0_222, %c0_223] : memref<9x1x256xf32, #tpu.memory_space<vmem>>, vector<1x1x256xf32>
    %474 = vector.shape_cast %473 : vector<1x1x256xf32> to vector<1x256xf32>
    %475 = vector.broadcast %474 : vector<1x256xf32> to vector<8x256xf32>
    %476 = arith.mulf %472, %475 : vector<8x256xf32>
    %477 = arith.addf %468, %476 : vector<8x256xf32>
    %c1_i32_224 = arith.constant 1 : i32
    %478 = tpu.dynamic_rotate %447 by %c1_i32_224 dim 1 : vector<64x256xf32>, i32 -> vector<64x256xf32>
    %c3_225 = arith.constant 3 : index
    %c0_226 = arith.constant 0 : index
    %c0_227 = arith.constant 0 : index
    %479 = vector.load %arg9[%c3_225, %c0_226, %c0_227] : memref<9x8x64xf32, #tpu.memory_space<vmem>>, vector<1x8x64xf32>
    %480 = vector.shape_cast %479 : vector<1x8x64xf32> to vector<8x64xf32>
    %cst_228 = arith.constant dense<0.000000e+00> : vector<8x256xf32>
    %481 = tpu.matmul %480, %478, %cst_228 {dimension_numbers = #tpu.dot_dimension_numbers<[1], [0], [0], [1], [0, 0, 1, 1], [], []>} : vector<8x64xf32>, vector<64x256xf32>, vector<8x256xf32> -> vector<8x256xf32>
    %c3_229 = arith.constant 3 : index
    %c0_230 = arith.constant 0 : index
    %c0_231 = arith.constant 0 : index
    %482 = vector.load %arg2[%c3_229, %c0_230, %c0_231] : memref<9x1x256xf32, #tpu.memory_space<vmem>>, vector<1x1x256xf32>
    %483 = vector.shape_cast %482 : vector<1x1x256xf32> to vector<1x256xf32>
    %484 = vector.broadcast %483 : vector<1x256xf32> to vector<8x256xf32>
    %485 = arith.mulf %481, %484 : vector<8x256xf32>
    %486 = arith.addf %477, %485 : vector<8x256xf32>
    %c4_232 = arith.constant 4 : index
    %c0_233 = arith.constant 0 : index
    %c0_234 = arith.constant 0 : index
    %487 = vector.load %arg9[%c4_232, %c0_233, %c0_234] : memref<9x8x64xf32, #tpu.memory_space<vmem>>, vector<1x8x64xf32>
    %488 = vector.shape_cast %487 : vector<1x8x64xf32> to vector<8x64xf32>
    %cst_235 = arith.constant dense<0.000000e+00> : vector<8x256xf32>
    %489 = tpu.matmul %488, %447, %cst_235 {dimension_numbers = #tpu.dot_dimension_numbers<[1], [0], [0], [1], [0, 0, 1, 1], [], []>} : vector<8x64xf32>, vector<64x256xf32>, vector<8x256xf32> -> vector<8x256xf32>
    %c4_236 = arith.constant 4 : index
    %c0_237 = arith.constant 0 : index
    %c0_238 = arith.constant 0 : index
    %490 = vector.load %arg2[%c4_236, %c0_237, %c0_238] : memref<9x1x256xf32, #tpu.memory_space<vmem>>, vector<1x1x256xf32>
    %491 = vector.shape_cast %490 : vector<1x1x256xf32> to vector<1x256xf32>
    %492 = vector.broadcast %491 : vector<1x256xf32> to vector<8x256xf32>
    %493 = arith.mulf %489, %492 : vector<8x256xf32>
    %494 = arith.addf %486, %493 : vector<8x256xf32>
    %c255_i32_239 = arith.constant 255 : i32
    %495 = tpu.dynamic_rotate %447 by %c255_i32_239 dim 1 : vector<64x256xf32>, i32 -> vector<64x256xf32>
    %c5_240 = arith.constant 5 : index
    %c0_241 = arith.constant 0 : index
    %c0_242 = arith.constant 0 : index
    %496 = vector.load %arg9[%c5_240, %c0_241, %c0_242] : memref<9x8x64xf32, #tpu.memory_space<vmem>>, vector<1x8x64xf32>
    %497 = vector.shape_cast %496 : vector<1x8x64xf32> to vector<8x64xf32>
    %cst_243 = arith.constant dense<0.000000e+00> : vector<8x256xf32>
    %498 = tpu.matmul %497, %495, %cst_243 {dimension_numbers = #tpu.dot_dimension_numbers<[1], [0], [0], [1], [0, 0, 1, 1], [], []>} : vector<8x64xf32>, vector<64x256xf32>, vector<8x256xf32> -> vector<8x256xf32>
    %c5_244 = arith.constant 5 : index
    %c0_245 = arith.constant 0 : index
    %c0_246 = arith.constant 0 : index
    %499 = vector.load %arg2[%c5_244, %c0_245, %c0_246] : memref<9x1x256xf32, #tpu.memory_space<vmem>>, vector<1x1x256xf32>
    %500 = vector.shape_cast %499 : vector<1x1x256xf32> to vector<1x256xf32>
    %501 = vector.broadcast %500 : vector<1x256xf32> to vector<8x256xf32>
    %502 = arith.mulf %498, %501 : vector<8x256xf32>
    %503 = arith.addf %494, %502 : vector<8x256xf32>
    %c241_i32_247 = arith.constant 241 : i32
    %504 = tpu.dynamic_rotate %447 by %c241_i32_247 dim 1 : vector<64x256xf32>, i32 -> vector<64x256xf32>
    %c6_248 = arith.constant 6 : index
    %c0_249 = arith.constant 0 : index
    %c0_250 = arith.constant 0 : index
    %505 = vector.load %arg9[%c6_248, %c0_249, %c0_250] : memref<9x8x64xf32, #tpu.memory_space<vmem>>, vector<1x8x64xf32>
    %506 = vector.shape_cast %505 : vector<1x8x64xf32> to vector<8x64xf32>
    %cst_251 = arith.constant dense<0.000000e+00> : vector<8x256xf32>
    %507 = tpu.matmul %506, %504, %cst_251 {dimension_numbers = #tpu.dot_dimension_numbers<[1], [0], [0], [1], [0, 0, 1, 1], [], []>} : vector<8x64xf32>, vector<64x256xf32>, vector<8x256xf32> -> vector<8x256xf32>
    %c6_252 = arith.constant 6 : index
    %c0_253 = arith.constant 0 : index
    %c0_254 = arith.constant 0 : index
    %508 = vector.load %arg2[%c6_252, %c0_253, %c0_254] : memref<9x1x256xf32, #tpu.memory_space<vmem>>, vector<1x1x256xf32>
    %509 = vector.shape_cast %508 : vector<1x1x256xf32> to vector<1x256xf32>
    %510 = vector.broadcast %509 : vector<1x256xf32> to vector<8x256xf32>
    %511 = arith.mulf %507, %510 : vector<8x256xf32>
    %512 = arith.addf %503, %511 : vector<8x256xf32>
    %c240_i32_255 = arith.constant 240 : i32
    %513 = tpu.dynamic_rotate %447 by %c240_i32_255 dim 1 : vector<64x256xf32>, i32 -> vector<64x256xf32>
    %c7_256 = arith.constant 7 : index
    %c0_257 = arith.constant 0 : index
    %c0_258 = arith.constant 0 : index
    %514 = vector.load %arg9[%c7_256, %c0_257, %c0_258] : memref<9x8x64xf32, #tpu.memory_space<vmem>>, vector<1x8x64xf32>
    %515 = vector.shape_cast %514 : vector<1x8x64xf32> to vector<8x64xf32>
    %cst_259 = arith.constant dense<0.000000e+00> : vector<8x256xf32>
    %516 = tpu.matmul %515, %513, %cst_259 {dimension_numbers = #tpu.dot_dimension_numbers<[1], [0], [0], [1], [0, 0, 1, 1], [], []>} : vector<8x64xf32>, vector<64x256xf32>, vector<8x256xf32> -> vector<8x256xf32>
    %c7_260 = arith.constant 7 : index
    %c0_261 = arith.constant 0 : index
    %c0_262 = arith.constant 0 : index
    %517 = vector.load %arg2[%c7_260, %c0_261, %c0_262] : memref<9x1x256xf32, #tpu.memory_space<vmem>>, vector<1x1x256xf32>
    %518 = vector.shape_cast %517 : vector<1x1x256xf32> to vector<1x256xf32>
    %519 = vector.broadcast %518 : vector<1x256xf32> to vector<8x256xf32>
    %520 = arith.mulf %516, %519 : vector<8x256xf32>
    %521 = arith.addf %512, %520 : vector<8x256xf32>
    %c239_i32_263 = arith.constant 239 : i32
    %522 = tpu.dynamic_rotate %447 by %c239_i32_263 dim 1 : vector<64x256xf32>, i32 -> vector<64x256xf32>
    %c8_264 = arith.constant 8 : index
    %c0_265 = arith.constant 0 : index
    %c0_266 = arith.constant 0 : index
    %523 = vector.load %arg9[%c8_264, %c0_265, %c0_266] : memref<9x8x64xf32, #tpu.memory_space<vmem>>, vector<1x8x64xf32>
    %524 = vector.shape_cast %523 : vector<1x8x64xf32> to vector<8x64xf32>
    %cst_267 = arith.constant dense<0.000000e+00> : vector<8x256xf32>
    %525 = tpu.matmul %524, %522, %cst_267 {dimension_numbers = #tpu.dot_dimension_numbers<[1], [0], [0], [1], [0, 0, 1, 1], [], []>} : vector<8x64xf32>, vector<64x256xf32>, vector<8x256xf32> -> vector<8x256xf32>
    %c8_268 = arith.constant 8 : index
    %c0_269 = arith.constant 0 : index
    %c0_270 = arith.constant 0 : index
    %526 = vector.load %arg2[%c8_268, %c0_269, %c0_270] : memref<9x1x256xf32, #tpu.memory_space<vmem>>, vector<1x1x256xf32>
    %527 = vector.shape_cast %526 : vector<1x1x256xf32> to vector<1x256xf32>
    %528 = vector.broadcast %527 : vector<1x256xf32> to vector<8x256xf32>
    %529 = arith.mulf %525, %528 : vector<8x256xf32>
    %530 = arith.addf %521, %529 : vector<8x256xf32>
    %c0_271 = arith.constant 0 : index
    %c0_272 = arith.constant 0 : index
    %c0_273 = arith.constant 0 : index
    %531 = vector.load %arg11[%c0_271, %c0_272, %c0_273] : memref<1x8x256xf32, #tpu.memory_space<vmem>>, vector<1x8x256xf32>
    %532 = vector.shape_cast %531 : vector<1x8x256xf32> to vector<8x256xf32>
    %533 = vector.shape_cast %530 : vector<8x256xf32> to vector<1x8x256xf32>
    tpu.vector_store %arg11[%c0_271, %c0_272, %c0_273], %533 {strides = array<i32>} : memref<1x8x256xf32, #tpu.memory_space<vmem>>, vector<1x8x256xf32>,
    return
  }
  func.func @transform_0(%arg0: i32) -> (i32, i32, i32) {
    %c0_i32 = arith.constant 0 : i32
    %c0_i32_0 = arith.constant 0 : i32
    %c0_i32_1 = arith.constant 0 : i32
    return %arg0, %c0_i32, %c0_i32_0 : i32, i32, i32
  }
  func.func @transform_1(%arg0: i32) -> (i32, i32, i32) {
    %c0_i32 = arith.constant 0 : i32
    %c0_i32_0 = arith.constant 0 : i32
    %c0_i32_1 = arith.constant 0 : i32
    %c0_i32_2 = arith.constant 0 : i32
    return %c0_i32, %c0_i32_0, %c0_i32_1 : i32, i32, i32
  }
  func.func @transform_2(%arg0: i32) -> (i32, i32, i32) {
    %c0_i32 = arith.constant 0 : i32
    %c0_i32_0 = arith.constant 0 : i32
    %c0_i32_1 = arith.constant 0 : i32
    %c0_i32_2 = arith.constant 0 : i32
    return %c0_i32, %c0_i32_0, %c0_i32_1 : i32, i32, i32
  }
  func.func @transform_3(%arg0: i32) -> (i32, i32) {
    %c0_i32 = arith.constant 0 : i32
    %c0_i32_0 = arith.constant 0 : i32
    %c0_i32_1 = arith.constant 0 : i32
    return %c0_i32, %c0_i32_0 : i32, i32
  }
  func.func @transform_4(%arg0: i32) -> (i32, i32) {
    %c0_i32 = arith.constant 0 : i32
    %c0_i32_0 = arith.constant 0 : i32
    %c0_i32_1 = arith.constant 0 : i32
    return %c0_i32, %c0_i32_0 : i32, i32
  }
  func.func @transform_5(%arg0: i32) -> (i32, i32, i32) {
    %c0_i32 = arith.constant 0 : i32
    %c0_i32_0 = arith.constant 0 : i32
    %c0_i32_1 = arith.constant 0 : i32
    %c0_i32_2 = arith.constant 0 : i32
    return %c0_i32, %c0_i32_0, %c0_i32_1 : i32, i32, i32
  }
  func.func @transform_6(%arg0: i32) -> (i32, i32, i32) {
    %c0_i32 = arith.constant 0 : i32
    %c0_i32_0 = arith.constant 0 : i32
    %c0_i32_1 = arith.constant 0 : i32
    %c0_i32_2 = arith.constant 0 : i32
    return %c0_i32, %c0_i32_0, %c0_i32_1 : i32, i32, i32
  }
  func.func @transform_7(%arg0: i32) -> (i32, i32, i32) {
    %c0_i32 = arith.constant 0 : i32
    %c0_i32_0 = arith.constant 0 : i32
    %c0_i32_1 = arith.constant 0 : i32
    %c0_i32_2 = arith.constant 0 : i32
    return %c0_i32, %c0_i32_0, %c0_i32_1 : i32, i32, i32
  }
  func.func @transform_8(%arg0: i32) -> (i32, i32, i32) {
    %c0_i32 = arith.constant 0 : i32
    %c0_i32_0 = arith.constant 0 : i32
    %c0_i32_1 = arith.constant 0 : i32
    %c0_i32_2 = arith.constant 0 : i32
    return %c0_i32, %c0_i32_0, %c0_i32_1 : i32, i32, i32
  }
  func.func @transform_9(%arg0: i32) -> (i32, i32) {
    %c0_i32 = arith.constant 0 : i32
    %c0_i32_0 = arith.constant 0 : i32
    %c0_i32_1 = arith.constant 0 : i32
    return %c0_i32, %c0_i32_0 : i32, i32
  }
  func.func @transform_10(%arg0: i32) -> (i32, i32, i32) {
    %c0_i32 = arith.constant 0 : i32
    %c0_i32_0 = arith.constant 0 : i32
    %c0_i32_1 = arith.constant 0 : i32
    return %arg0, %c0_i32, %c0_i32_0 : i32, i32, i32
  }
}

</mosaic_0001>

<llo_original>
// kernel: tpu_custom_call.1
$region0: #{tpu_custom_call.1}
  #allocation0 [shape = 'u32[]', space=smem, size = 0x4, offset = 0x4, fixed_abs, tag = 'smem constant byte address 0x4 - core index']
  #allocation1 [shape = 'u32[72,128]{1,0:T(1,128)}', space=vmem, size = 0x9000, scoped, tag = 'internal scratch']
  %s0 = inlined_call_operand.vmem [shape: f32[2,8,256], index: 0, kind: input, shape index: {}]
  %s1 = inlined_call_operand.vmem [shape: f32[9,1,256], index: 1, kind: input, shape index: {}]
  %s2 = inlined_call_operand.hbm [shape: f32[9,1,256], index: 2, kind: input, shape index: {}]
  %s3 = inlined_call_operand.vmem [shape: f32[64,72], index: 3, kind: input, shape index: {}]
  %s4 = inlined_call_operand.vmem [shape: f32[64,1], index: 4, kind: input, shape index: {}]
  %s5 = inlined_call_operand.vmem [shape: f32[2,64,9], index: 5, kind: input, shape index: {}]
  %s6 = inlined_call_operand.vmem [shape: f32[2,64,64], index: 6, kind: input, shape index: {}]
  %s7 = inlined_call_operand.vmem [shape: f32[2,64,1], index: 7, kind: input, shape index: {}]
  %s8 = inlined_call_operand.vmem [shape: f32[9,8,64], index: 8, kind: input, shape index: {}]
  %s9 = inlined_call_operand.vmem [shape: f32[8,1], index: 9, kind: input, shape index: {}]
  %s10 = inlined_call_operand.hbm [shape: f32[2,8,256], index: 10, kind: output, shape index: {}]
  %s11 = sld [smem:[#allocation0]]
  $region77: #{tpu_custom_call.1} parent=0
    _
  %s13 = ssub.s32 1, %s11
  %s14 = scalar_select 0, %s13, %s11
  $region1: #{tpu_custom_call.1} parent=0
    #allocation2 [shape = 'u8[9216]{0}', space=vmem, size = 0x2400, scoped, tag = 'input window, operand 2, single buffered']
    #allocation3 [shape = 's32[2]{0}', space=sflag, size = 0x8, scoped, tag = 'scoped memory for tpu_custom_call.1']
    #allocation4 [shape = 's32[2]{0}', space=sflag, size = 0x8, scoped, tag = 'scoped memory for tpu_custom_call.1']
    #allocation5 [shape = 'u8[16384]{0}', space=vmem, size = 0x4000, scoped, tag = 'output window, operand 0']
    %15 = vsyncpa [#allocation3], 0
    %16 = vsyncpa [#allocation4], 0
    %s17 = scalar_lea.sflag [#allocation4], 1
    %18 = vsyncpa %s17, 0
    loop: start=0, step=1, limit=4
    $region2: #{tpu_custom_call.1} parent=1 // loop_pre_header
      _
    $region3: #{tpu_custom_call.1} parent=1 // loop_header
      %s20 = sphi 0, %s24
      %p21 = scmp.ge.s32.totalorder %s20, 4
      %s30 = sphi 0, %s32
      %s33 = sphi 0, %s30
      %s34 = sphi 0, %s33
      %s50 = sphi 0, %s34
      %s54 = sphi 0, %s54
      %s56 = sphi 0, %s54
      %s57 = sphi 0, %s56
      %s71 = sphi 0, %s57
      %s75 = sphi 0, %s75
      %s77 = sphi 0, %s75
      %s78 = sphi 0, %s77
      %s92 = sphi 0, %s78
      %s96 = sphi 0, %s96
      %s98 = sphi 0, %s96
      %s99 = sphi 0, %s98
      %s113 = sphi 0, %s99
      %s117 = sphi 0, %s117
      %s119 = sphi 0, %s117
      %s120 = sphi 0, %s119
      %s134 = sphi 0, %s120
      %s138 = sphi 0, %s138
      %s140 = sphi 0, %s138
      %s141 = sphi 0, %s140
      %s155 = sphi 0, %s141
      %s159 = sphi 0, %s159
      %s161 = sphi 0, %s159
      %s162 = sphi 0, %s161
      %s176 = sphi 0, %s162
      %s180 = sphi 0, %s180
      %s182 = sphi 0, %s180
      %s183 = sphi 0, %s182
      %s197 = sphi 0, %s183
      %s201 = sphi 0, %s201
      %s203 = sphi 0, %s201
      %s204 = sphi 0, %s203
      %s218 = sphi 0, %s204
      %s222 = sphi 0, %s222
      %s224 = sphi 0, %s222
      %s225 = sphi 0, %s224
      %s239 = sphi 0, %s225
      %s245 = sphi 0, %s247
      %s248 = sphi 0, %s245
      %s249 = sphi 0, %s248
      %s265 = sphi 0, %s249
    $region4: #{tpu_custom_call.1} parent=1 // loop_header_branch
      %23 = sbr.rel (%p21) target = $region8
    $region5: #{tpu_custom_call.1} parent=1 // loop_body
      %s25 = ssub.s32 %s20, 1
      %s26 = ssub.s32 %s20, 2
      %s27 = sadd.s32 %s20, 1
      %s28 = ssub.s32 %s20, %s27
      %p29 = scmp.eq.s32.totalorder %s28, 0
      %s31 = sadd.s32 %s30, 1
      %s32 = scalar_select %p29, %s30, %s31
      %p35 = pneg %p29
      %p36 = scmp.eq.s32.totalorder %s20, 1
      %p37 = por %p35, %p36
      %p38 = scmp.ne.s32.totalorder %s30, %s33
      %p39 = scmp.eq.s32.totalorder %s20, 0
      %p40 = por %p38, %p39
      %p41 = scmp.ne.s32.totalorder %s30, %s33
      %p42 = scmp.eq.s32.totalorder %s25, 1
      %p43 = por %p41, %p42
      %p44 = scmp.ne.s32.totalorder %s33, %s34
      %p45 = scmp.eq.s32.totalorder %s25, 0
      %p46 = por %p44, %p45
      %p47 = scmp.ne.s32.totalorder %s33, %s34
      %p48 = scmp.eq.s32.totalorder %s26, 1
      %p49 = por %p47, %p48
      %p51 = scmp.ne.s32.totalorder %s34, %s50
      %p52 = scmp.eq.s32.totalorder %s26, 0
      %p53 = por %p51, %p52
      %s55 = sadd.s32 %s54, 1
      %p58 = scmp.eq.s32.totalorder %s20, 1
      %p59 = scmp.ne.s32.totalorder %s54, %s56
      %p60 = scmp.eq.s32.totalorder %s20, 0
      %p61 = por %p59, %p60
      %p62 = scmp.ne.s32.totalorder %s54, %s56
      %p63 = scmp.eq.s32.totalorder %s25, 1
      %p64 = por %p62, %p63
      %p65 = scmp.ne.s32.totalorder %s56, %s57
      %p66 = scmp.eq.s32.totalorder %s25, 0
      %p67 = por %p65, %p66
      %p68 = scmp.ne.s32.totalorder %s56, %s57
      %p69 = scmp.eq.s32.totalorder %s26, 1
      %p70 = por %p68, %p69
      %p72 = scmp.ne.s32.totalorder %s57, %s71
      %p73 = scmp.eq.s32.totalorder %s26, 0
      %p74 = por %p72, %p73
      %s76 = sadd.s32 %s75, 1
      %p79 = scmp.eq.s32.totalorder %s20, 1
      %p80 = scmp.ne.s32.totalorder %s75, %s77
      %p81 = scmp.eq.s32.totalorder %s20, 0
      %p82 = por %p80, %p81
      %p83 = scmp.ne.s32.totalorder %s75, %s77
      %p84 = scmp.eq.s32.totalorder %s25, 1
      %p85 = por %p83, %p84
      %p86 = scmp.ne.s32.totalorder %s77, %s78
      %p87 = scmp.eq.s32.totalorder %s25, 0
      %p88 = por %p86, %p87
      %p89 = scmp.ne.s32.totalorder %s77, %s78
      %p90 = scmp.eq.s32.totalorder %s26, 1
      %p91 = por %p89, %p90
      %p93 = scmp.ne.s32.totalorder %s78, %s92
      %p94 = scmp.eq.s32.totalorder %s26, 0
      %p95 = por %p93, %p94
      %s97 = sadd.s32 %s96, 1
      %p100 = scmp.eq.s32.totalorder %s20, 1
      %p101 = scmp.ne.s32.totalorder %s96, %s98
      %p102 = scmp.eq.s32.totalorder %s20, 0
      %p103 = por %p101, %p102
      %p104 = scmp.ne.s32.totalorder %s96, %s98
      %p105 = scmp.eq.s32.totalorder %s25, 1
      %p106 = por %p104, %p105
      %p107 = scmp.ne.s32.totalorder %s98, %s99
      %p108 = scmp.eq.s32.totalorder %s25, 0
      %p109 = por %p107, %p108
      %p110 = scmp.ne.s32.totalorder %s98, %s99
      %p111 = scmp.eq.s32.totalorder %s26, 1
      %p112 = por %p110, %p111
      %p114 = scmp.ne.s32.totalorder %s99, %s113
      %p115 = scmp.eq.s32.totalorder %s26, 0
      %p116 = por %p114, %p115
      %s118 = sadd.s32 %s117, 1
      %p121 = scmp.eq.s32.totalorder %s20, 1
      %p122 = scmp.ne.s32.totalorder %s117, %s119
      %p123 = scmp.eq.s32.totalorder %s20, 0
      %p124 = por %p122, %p123
      %p125 = scmp.ne.s32.totalorder %s117, %s119
      %p126 = scmp.eq.s32.totalorder %s25, 1
      %p127 = por %p125, %p126
      %p128 = scmp.ne.s32.totalorder %s119, %s120
      %p129 = scmp.eq.s32.totalorder %s25, 0
      %p130 = por %p128, %p129
      %p131 = scmp.ne.s32.totalorder %s119, %s120
      %p132 = scmp.eq.s32.totalorder %s26, 1
      %p133 = por %p131, %p132
      %p135 = scmp.ne.s32.totalorder %s120, %s134
      %p136 = scmp.eq.s32.totalorder %s26, 0
      %p137 = por %p135, %p136
      %s139 = sadd.s32 %s138, 1
      %p142 = scmp.eq.s32.totalorder %s20, 1
      %p143 = scmp.ne.s32.totalorder %s138, %s140
      %p144 = scmp.eq.s32.totalorder %s20, 0
      %p145 = por %p143, %p144
      %p146 = scmp.ne.s32.totalorder %s138, %s140
      %p147 = scmp.eq.s32.totalorder %s25, 1
      %p148 = por %p146, %p147
      %p149 = scmp.ne.s32.totalorder %s140, %s141
      %p150 = scmp.eq.s32.totalorder %s25, 0
      %p151 = por %p149, %p150
      %p152 = scmp.ne.s32.totalorder %s140, %s141
      %p153 = scmp.eq.s32.totalorder %s26, 1
      %p154 = por %p152, %p153
      %p156 = scmp.ne.s32.totalorder %s141, %s155
      %p157 = scmp.eq.s32.totalorder %s26, 0
      %p158 = por %p156, %p157
      %s160 = sadd.s32 %s159, 1
      %p163 = scmp.eq.s32.totalorder %s20, 1
      %p164 = scmp.ne.s32.totalorder %s159, %s161
      %p165 = scmp.eq.s32.totalorder %s20, 0
      %p166 = por %p164, %p165
      %p167 = scmp.ne.s32.totalorder %s159, %s161
      %p168 = scmp.eq.s32.totalorder %s25, 1
      %p169 = por %p167, %p168
      %p170 = scmp.ne.s32.totalorder %s161, %s162
      %p171 = scmp.eq.s32.totalorder %s25, 0
      %p172 = por %p170, %p171
      %p173 = scmp.ne.s32.totalorder %s161, %s162
      %p174 = scmp.eq.s32.totalorder %s26, 1
      %p175 = por %p173, %p174
      %p177 = scmp.ne.s32.totalorder %s162, %s176
      %p178 = scmp.eq.s32.totalorder %s26, 0
      %p179 = por %p177, %p178
      %s181 = sadd.s32 %s180, 1
      %p184 = scmp.eq.s32.totalorder %s20, 1
      %p185 = scmp.ne.s32.totalorder %s180, %s182
      %p186 = scmp.eq.s32.totalorder %s20, 0
      %p187 = por %p185, %p186
      %p188 = scmp.ne.s32.totalorder %s180, %s182
      %p189 = scmp.eq.s32.totalorder %s25, 1
      %p190 = por %p188, %p189
      %p191 = scmp.ne.s32.totalorder %s182, %s183
      %p192 = scmp.eq.s32.totalorder %s25, 0
      %p193 = por %p191, %p192
      %p194 = scmp.ne.s32.totalorder %s182, %s183
      %p195 = scmp.eq.s32.totalorder %s26, 1
      %p196 = por %p194, %p195
      %p198 = scmp.ne.s32.totalorder %s183, %s197
      %p199 = scmp.eq.s32.totalorder %s26, 0
      %p200 = por %p198, %p199
      %s202 = sadd.s32 %s201, 1
      %p205 = scmp.eq.s32.totalorder %s20, 1
      %p206 = scmp.ne.s32.totalorder %s201, %s203
      %p207 = scmp.eq.s32.totalorder %s20, 0
      %p208 = por %p206, %p207
      %p209 = scmp.ne.s32.totalorder %s201, %s203
      %p210 = scmp.eq.s32.totalorder %s25, 1
      %p211 = por %p209, %p210
      %p212 = scmp.ne.s32.totalorder %s203, %s204
      %p213 = scmp.eq.s32.totalorder %s25, 0
      %p214 = por %p212, %p213
      %p215 = scmp.ne.s32.totalorder %s203, %s204
      %p216 = scmp.eq.s32.totalorder %s26, 1
      %p217 = por %p215, %p216
      %p219 = scmp.ne.s32.totalorder %s204, %s218
      %p220 = scmp.eq.s32.totalorder %s26, 0
      %p221 = por %p219, %p220
      %s223 = sadd.s32 %s222, 1
      %p226 = scmp.eq.s32.totalorder %s20, 1
      %p227 = scmp.ne.s32.totalorder %s222, %s224
      %p228 = scmp.eq.s32.totalorder %s20, 0
      %p229 = por %p227, %p228
      %p230 = scmp.ne.s32.totalorder %s222, %s224
      %p231 = scmp.eq.s32.totalorder %s25, 1
      %p232 = por %p230, %p231
      %p233 = scmp.ne.s32.totalorder %s224, %s225
      %p234 = scmp.eq.s32.totalorder %s25, 0
      %p235 = por %p233, %p234
      %p236 = scmp.ne.s32.totalorder %s224, %s225
      %p237 = scmp.eq.s32.totalorder %s26, 1
      %p238 = por %p236, %p237
      %p240 = scmp.ne.s32.totalorder %s225, %s239
      %p241 = scmp.eq.s32.totalorder %s26, 0
      %p242 = por %p240, %p241
      %s243 = ssub.s32 %s20, %s27
      %p244 = scmp.eq.s32.totalorder %s243, 0
      %s246 = sadd.s32 %s245, 1
      %s247 = scalar_select %p244, %s245, %s246
      %p250 = pneg %p244
      %p251 = scmp.eq.s32.totalorder %s20, 1
      %p252 = por %p250, %p251
      %p253 = scmp.ne.s32.totalorder %s245, %s248
      %p254 = scmp.eq.s32.totalorder %s20, 0
      %p255 = por %p253, %p254
      %p256 = scmp.ne.s32.totalorder %s245, %s248
      %p257 = scmp.eq.s32.totalorder %s25, 1
      %p258 = por %p256, %p257
      %p259 = scmp.ne.s32.totalorder %s248, %s249
      %p260 = scmp.eq.s32.totalorder %s25, 0
      %p261 = por %p259, %p260
      %p262 = scmp.ne.s32.totalorder %s248, %s249
      %p263 = scmp.eq.s32.totalorder %s26, 1
      %p264 = por %p262, %p263
      %p266 = scmp.ne.s32.totalorder %s249, %s265
      %p267 = scmp.eq.s32.totalorder %s26, 0
      %p268 = por %p266, %p267
      %p269 = scmp.le.s32.totalorder 1, %s20
      %p270 = scmp.lt.s32.totalorder %s20, 3
      %p271 = pnand %p269, %p270
      %p272 = pneg %p271
      // Predicated region
      $region9: #{tpu_custom_call.1} parent=5 // pred_check
        _
      $region10: #{tpu_custom_call.1} parent=5 // pred_check_branch
        %274 = sbr.rel (%p271) target = $region12
      $region11: #{tpu_custom_call.1} parent=5 // pred_region
        %s275 = ssub.s32 %s20, 1
        // Predicated region
        $region13: #{tpu_custom_call.1} parent=11 // pred_check
          %p276 = pneg %p67
        $region14: #{tpu_custom_call.1} parent=11 // pred_check_branch
          %278 = sbr.rel (%p276) target = $region16
        $region15: #{tpu_custom_call.1} parent=11 // pred_region
          _
        $region16: #{tpu_custom_call.1} parent=11 // pred_fallthru
          _
        // Predicated region
        $region17: #{tpu_custom_call.1} parent=11 // pred_check
          %p279 = pneg %p88
        $region18: #{tpu_custom_call.1} parent=11 // pred_check_branch
          %281 = sbr.rel (%p279) target = $region20
        $region19: #{tpu_custom_call.1} parent=11 // pred_region
          %283 = vsyncadd [#allocation3], 0
          %s284 = sshll.u32 %s2, 4
          %s285 = int_to_ptr.hbm [resolvable:$true] %s284
          %s286 = sshll.u32 [#allocation2], 4
          %s287 = int_to_ptr.vmem [resolvable:$true] %s286
          %292 = dma.hbm_to_vmem [thread:$0]  %s285, 288, %s287, [#allocation3], 32, 32, 2
        $region20: #{tpu_custom_call.1} parent=11 // pred_fallthru
          _
        // Predicated region
        $region21: #{tpu_custom_call.1} parent=11 // pred_check
          %p293 = pneg %p109
        $region22: #{tpu_custom_call.1} parent=11 // pred_check_branch
          %295 = sbr.rel (%p293) target = $region24
        $region23: #{tpu_custom_call.1} parent=11 // pred_region
          _
        $region24: #{tpu_custom_call.1} parent=11 // pred_fallthru
          _
        // Predicated region
        $region25: #{tpu_custom_call.1} parent=11 // pred_check
          %p296 = pneg %p130
        $region26: #{tpu_custom_call.1} parent=11 // pred_check_branch
          %298 = sbr.rel (%p296) target = $region28
        $region27: #{tpu_custom_call.1} parent=11 // pred_region
          _
        $region28: #{tpu_custom_call.1} parent=11 // pred_fallthru
          _
        // Predicated region
        $region29: #{tpu_custom_call.1} parent=11 // pred_check
          %p299 = pneg %p151
        $region30: #{tpu_custom_call.1} parent=11 // pred_check_branch
          %301 = sbr.rel (%p299) target = $region32
        $region31: #{tpu_custom_call.1} parent=11 // pred_region
          _
        $region32: #{tpu_custom_call.1} parent=11 // pred_fallthru
          _
        // Predicated region
        $region33: #{tpu_custom_call.1} parent=11 // pred_check
          %p302 = pneg %p172
        $region34: #{tpu_custom_call.1} parent=11 // pred_check_branch
          %304 = sbr.rel (%p302) target = $region36
        $region35: #{tpu_custom_call.1} parent=11 // pred_region
          _
        $region36: #{tpu_custom_call.1} parent=11 // pred_fallthru
          _
        // Predicated region
        $region37: #{tpu_custom_call.1} parent=11 // pred_check
          %p305 = pneg %p193
        $region38: #{tpu_custom_call.1} parent=11 // pred_check_branch
          %307 = sbr.rel (%p305) target = $region40
        $region39: #{tpu_custom_call.1} parent=11 // pred_region
          _
        $region40: #{tpu_custom_call.1} parent=11 // pred_fallthru
          _
        // Predicated region
        $region41: #{tpu_custom_call.1} parent=11 // pred_check
          %p308 = pneg %p214
        $region42: #{tpu_custom_call.1} parent=11 // pred_check_branch
          %310 = sbr.rel (%p308) target = $region44
        $region43: #{tpu_custom_call.1} parent=11 // pred_region
          _
        $region44: #{tpu_custom_call.1} parent=11 // pred_fallthru
          _
        // Predicated region
        $region45: #{tpu_custom_call.1} parent=11 // pred_check
          %p311 = pneg %p235
        $region46: #{tpu_custom_call.1} parent=11 // pred_check_branch
          %313 = sbr.rel (%p311) target = $region48
        $region47: #{tpu_custom_call.1} parent=11 // pred_region
          _
        $region48: #{tpu_custom_call.1} parent=11 // pred_fallthru
          _
      $region12: #{tpu_custom_call.1} parent=5 // pred_fallthru
        _
      %p314 = scmp.lt.s32.totalorder %s20, 2
      // Predicated region
      $region49: #{tpu_custom_call.1} parent=5 // pred_check
        %p315 = pneg %p314
      $region50: #{tpu_custom_call.1} parent=5 // pred_check_branch
        %317 = sbr.rel (%p315) target = $region52
      $region51: #{tpu_custom_call.1} parent=5 // pred_region
        // Predicated region
        $region53: #{tpu_custom_call.1} parent=51 // pred_check
          %p318 = pneg %p40
        $region54: #{tpu_custom_call.1} parent=51 // pred_check_branch
          %320 = sbr.rel (%p318) target = $region56
        $region55: #{tpu_custom_call.1} parent=51 // pred_region
          %p321 = scmp.lt.s32.totalorder %s20, 1
          %s322 = scalar_select %p321, %s20, 1
          %s323 = smul.addr %s322, 2
          %s324 = smul.addr %s323, 8
          %s325 = scalar_lea.vmem %s0, %s324
        $region56: #{tpu_custom_call.1} parent=51 // pred_fallthru
          _
      $region52: #{tpu_custom_call.1} parent=5 // pred_fallthru
        _
      %p326 = scmp.le.s32.totalorder 1, %s20
      %p327 = scmp.lt.s32.totalorder %s20, 3
      %p328 = pnand %p326, %p327
      %p329 = pneg %p328
      // Predicated region
      $region57: #{tpu_custom_call.1} parent=5 // pred_check
        _
      $region58: #{tpu_custom_call.1} parent=5 // pred_check_branch
        %331 = sbr.rel (%p328) target = $region60
      $region59: #{tpu_custom_call.1} parent=5 // pred_region
        %s332 = ssub.s32 %s20, 1
        // Predicated region
        $region61: #{tpu_custom_call.1} parent=59 // pred_check
          %p333 = pneg %p88
        $region62: #{tpu_custom_call.1} parent=59 // pred_check_branch
          %335 = sbr.rel (%p333) target = $region64
        $region63: #{tpu_custom_call.1} parent=59 // pred_region
          %337 = dma.done [#allocation3], 288
        $region64: #{tpu_custom_call.1} parent=59 // pred_fallthru
          _
        %p338 = scmp.lt.s32.totalorder %s25, 1
        %s339 = scalar_select %p338, %s25, 1
        %s340 = smul.addr %s339, 2
        %s341 = smul.addr %s340, 8
        %s342 = scalar_lea.vmem %s0, %s341
        %p343 = pneg %p46
        %p344 = pneg %p43
        %p345 = pneg %p67
        %p346 = pneg %p64
        %p347 = pneg %p88
        %p348 = pneg %p85
        %p349 = pneg %p109
        %p350 = pneg %p106
        %p351 = pneg %p130
        %p352 = pneg %p127
        %p353 = pneg %p151
        %p354 = pneg %p148
        %p355 = pneg %p172
        %p356 = pneg %p169
        %p357 = pneg %p193
        %p358 = pneg %p190
        %p359 = pneg %p214
        %p360 = pneg %p211
        %p361 = pneg %p235
        %p362 = pneg %p232
        %p363 = pneg %p261
        %p364 = pneg %p258
        %s365 = sand.u32 %s248, 1
        %s366 = scalar_lea.sflag [#allocation4], %s365
        %s367 = sand.u32 %s248, 1
        %s368 = smul.addr %s367, 16
        %s369 = scalar_lea.vmem [#allocation5], %s368
        %p370 = scmp.lt.s32.totalorder %s25, 1
        %s371 = scalar_select %p370, %s25, 1
        %s372 = smul.addr %s371, 2
        %s373 = smul.addr %s372, 8
        %s374 = scalar_lea.vmem %s0, %s373
        %v375 = vld [vmem:[%s374] sm:$0xff]
        %v376 = vld [vmem:[%s374 + $0x8] sm:$0xff]
        %377 = vrot.lane.b32.xlu0 %v375, 17
        %v378 = vpop.permute.xlu0 %377
        %379 = vrot.lane.b32.xlu0 %v376, 17
        %v380 = vpop.permute.xlu0 %379
        %v381 = vlaneseq
        %v382 = vand.u32 %v381, 127
        %vm383 = vcmp.lt.s32.totalorder %v382, 17
        %v384 = vsel %vm383, %v378, %v380
        %v385 = vsel %vm383, %v380, %v378
        %v386 = vld [vmem:[%s1] sm:$0x3]
        %v388 = vperm.slane %v386, 0
        %v389 = vperm.slane %v386, 1
        %v392 = vmul.f32 %v385, %v388
        %v393 = vmul.f32 %v384, %v389
        %394 = vrot.lane.b32.xlu0 %v375, 16
        %v395 = vpop.permute.xlu0 %394
        %396 = vrot.lane.b32.xlu0 %v376, 16
        %v397 = vpop.permute.xlu0 %396
        %vm398 = vcmp.lt.s32.totalorder %v382, 16
        %v399 = vsel %vm398, %v395, %v397
        %v400 = vsel %vm398, %v397, %v395
        %s401 = scalar_lea.vmem %s1, 2
        %v402 = vld [vmem:[%s401] sm:$0x3]
        %v404 = vperm.slane %v402, 0
        %v405 = vperm.slane %v402, 1
        %v408 = vmul.f32 %v400, %v404
        %v409 = vmul.f32 %v399, %v405
        %410 = vrot.lane.b32.xlu0 %v375, 15
        %v411 = vpop.permute.xlu0 %410
        %412 = vrot.lane.b32.xlu0 %v376, 15
        %v413 = vpop.permute.xlu0 %412
        %vm414 = vcmp.lt.s32.totalorder %v382, 15
        %v415 = vsel %vm414, %v411, %v413
        %v416 = vsel %vm414, %v413, %v411
        %s417 = scalar_lea.vmem %s1, 4
        %v418 = vld [vmem:[%s417] sm:$0x3]
        %v420 = vperm.slane %v418, 0
        %v421 = vperm.slane %v418, 1
        %v424 = vmul.f32 %v416, %v420
        %v425 = vmul.f32 %v415, %v421
        %426 = vrot.lane.b32.xlu0 %v375, 1
        %v427 = vpop.permute.xlu0 %426
        %428 = vrot.lane.b32.xlu0 %v376, 1
        %v429 = vpop.permute.xlu0 %428
        %vm430 = vcmp.lt.s32.totalorder %v382, 1
        %v431 = vsel %vm430, %v427, %v429
        %v432 = vsel %vm430, %v429, %v427
        %s433 = scalar_lea.vmem %s1, 6
        %v434 = vld [vmem:[%s433] sm:$0x3]
        %v436 = vperm.slane %v434, 0
        %v437 = vperm.slane %v434, 1
        %v440 = vmul.f32 %v432, %v436
        %v441 = vmul.f32 %v431, %v437
        %s442 = scalar_lea.vmem %s1, 8
        %v443 = vld [vmem:[%s442] sm:$0x3]
        %v445 = vperm.slane %v443, 0
        %v446 = vperm.slane %v443, 1
        %v449 = vmul.f32 %v375, %v445
        %v450 = vmul.f32 %v376, %v446
        %451 = vrot.lane.b32.xlu0 %v375, 127
        %v452 = vpop.permute.xlu0 %451
        %453 = vrot.lane.b32.xlu0 %v376, 127
        %v454 = vpop.permute.xlu0 %453
        %vm455 = vcmp.lt.s32.totalorder %v382, 127
        %v456 = vsel %vm455, %v452, %v454
        %v457 = vsel %vm455, %v454, %v452
        %s458 = scalar_lea.vmem %s1, 10
        %v459 = vld [vmem:[%s458] sm:$0x3]
        %v461 = vperm.slane %v459, 0
        %v462 = vperm.slane %v459, 1
        %v465 = vmul.f32 %v456, %v461
        %v466 = vmul.f32 %v457, %v462
        %467 = vrot.lane.b32.xlu0 %v375, 113
        %v468 = vpop.permute.xlu0 %467
        %469 = vrot.lane.b32.xlu0 %v376, 113
        %v470 = vpop.permute.xlu0 %469
        %vm471 = vcmp.lt.s32.totalorder %v382, 113
        %v472 = vsel %vm471, %v468, %v470
        %v473 = vsel %vm471, %v470, %v468
        %s474 = scalar_lea.vmem %s1, 12
        %v475 = vld [vmem:[%s474] sm:$0x3]
        %v477 = vperm.slane %v475, 0
        %v478 = vperm.slane %v475, 1
        %v481 = vmul.f32 %v472, %v477
        %v482 = vmul.f32 %v473, %v478
        %483 = vrot.lane.b32.xlu0 %v375, 112
        %v484 = vpop.permute.xlu0 %483
        %485 = vrot.lane.b32.xlu0 %v376, 112
        %v486 = vpop.permute.xlu0 %485
        %vm487 = vcmp.lt.s32.totalorder %v382, 112
        %v488 = vsel %vm487, %v484, %v486
        %v489 = vsel %vm487, %v486, %v484
        %s490 = scalar_lea.vmem %s1, 14
        %v491 = vld [vmem:[%s490] sm:$0x3]
        %v493 = vperm.slane %v491, 0
        %v494 = vperm.slane %v491, 1
        %v497 = vmul.f32 %v488, %v493
        %v498 = vmul.f32 %v489, %v494
        %499 = vrot.lane.b32.xlu0 %v375, 111
        %v500 = vpop.permute.xlu0 %499
        %501 = vrot.lane.b32.xlu0 %v376, 111
        %v502 = vpop.permute.xlu0 %501
        %vm503 = vcmp.lt.s32.totalorder %v382, 111
        %v504 = vsel %vm503, %v500, %v502
        %v505 = vsel %vm503, %v502, %v500
        %s506 = scalar_lea.vmem %s1, 16
        %v507 = vld [vmem:[%s506] sm:$0x3]
        %v509 = vperm.slane %v507, 0
        %v510 = vperm.slane %v507, 1
        %v513 = vmul.f32 %v504, %v509
        %v514 = vmul.f32 %v505, %v510
        %v515 = vld [vmem:[%s3] sm:$0xff]
        %v516 = vld [vmem:[%s3 + $0x8] sm:$0xff]
        %v517 = vld [vmem:[%s3 + $0x10] sm:$0xff]
        %v518 = vld [vmem:[%s3 + $0x18] sm:$0xff]
        %v519 = vld [vmem:[%s3 + $0x20] sm:$0xff]
        %v520 = vld [vmem:[%s3 + $0x28] sm:$0xff]
        %v521 = vld [vmem:[%s3 + $0x30] sm:$0xff]
        %v522 = vld [vmem:[%s3 + $0x38] sm:$0xff]
        %v523 = vld [vmem:[%s4] sm:$0xff]
        %v524 = vld [vmem:[%s4 + $0x8] sm:$0xff]
        %v525 = vld [vmem:[%s4 + $0x10] sm:$0xff]
        %v526 = vld [vmem:[%s4 + $0x18] sm:$0xff]
        %v527 = vld [vmem:[%s4 + $0x20] sm:$0xff]
        %v528 = vld [vmem:[%s4 + $0x28] sm:$0xff]
        %v529 = vld [vmem:[%s4 + $0x30] sm:$0xff]
        %v530 = vld [vmem:[%s4 + $0x38] sm:$0xff]
        %532 = vset.pattern.permute.xlu0 0
        %533 = vperm.xlu0 %532, %v523
        %v534 = vpop.permute.xlu0 %533
        %537 = vset.pattern.permute.xlu0 0
        %538 = vperm.xlu0 %537, %v524
        %v539 = vpop.permute.xlu0 %538
        %542 = vset.pattern.permute.xlu0 0
        %543 = vperm.xlu0 %542, %v525
        %v544 = vpop.permute.xlu0 %543
        %547 = vset.pattern.permute.xlu0 0
        %548 = vperm.xlu0 %547, %v526
        %v549 = vpop.permute.xlu0 %548
        %552 = vset.pattern.permute.xlu0 0
        %553 = vperm.xlu0 %552, %v527
        %v554 = vpop.permute.xlu0 %553
        %557 = vset.pattern.permute.xlu0 0
        %558 = vperm.xlu0 %557, %v528
        %v559 = vpop.permute.xlu0 %558
        %562 = vset.pattern.permute.xlu0 0
        %563 = vperm.xlu0 %562, %v529
        %v564 = vpop.permute.xlu0 %563
        %567 = vset.pattern.permute.xlu0 0
        %568 = vperm.xlu0 %567, %v530
        %v569 = vpop.permute.xlu0 %568
        %vm571 = vcmask 588800
        %v573 = vsel %vm571, %v515, 0
        %v576 = vsel %vm571, %v516, 0
        %v579 = vsel %vm571, %v517, 0
        %v582 = vsel %vm571, %v518, 0
        %v585 = vsel %vm571, %v519, 0
        %v588 = vsel %vm571, %v520, 0
        %v591 = vsel %vm571, %v521, 0
        %v594 = vsel %vm571, %v522, 0
        %596 = vmatpush.msra.mxu0 0.0
        %597 = vmatpush.msra.mxu0 0.0
        %598 = vmatpush.msra.mxu0 0.0
        %599 = vmatpush.msra.mxu0 0.0
        %600 = vmatpush.msra.mxu0 0.0
        %601 = vmatpush.msra.mxu0 0.0
        %602 = vmatpush.msra.mxu0 0.0
        %603 = vmatpush.msra.mxu0 %v513
        %604 = vmatpush.msra.mxu0 %v497
        %605 = vmatpush.msra.mxu0 %v481
        %606 = vmatpush.msra.mxu0 %v465
        %607 = vmatpush.msra.mxu0 %v449
        %608 = vmatpush.msra.mxu0 %v440
        %609 = vmatpush.msra.mxu0 %v424
        %610 = vmatpush.msra.mxu0 %v408
        %611 = vmatpush.msra.mxu0 %v392
        %612 = vmatmul.f32.gmra.mxu0 %v573
        %v613 = vpop.f32.mrf.mxu0
        %v614 = vadd.f32 %v534, %v613
        %615 = vmatmul.f32.gmra.mxu0 %v576
        %v616 = vpop.f32.mrf.mxu0
        %v617 = vadd.f32 %v539, %v616
        %618 = vmatmul.f32.gmra.mxu0 %v579
        %v619 = vpop.f32.mrf.mxu0
        %v620 = vadd.f32 %v544, %v619
        %621 = vmatmul.f32.gmra.mxu0 %v582
        %v622 = vpop.f32.mrf.mxu0
        %v623 = vadd.f32 %v549, %v622
        %624 = vmatmul.f32.gmra.mxu0 %v585
        %v625 = vpop.f32.mrf.mxu0
        %v626 = vadd.f32 %v554, %v625
        %627 = vmatmul.f32.gmra.mxu0 %v588
        %v628 = vpop.f32.mrf.mxu0
        %v629 = vadd.f32 %v559, %v628
        %630 = vmatmul.f32.gmra.mxu0 %v591
        %v631 = vpop.f32.mrf.mxu0
        %v632 = vadd.f32 %v564, %v631
        %633 = vmatmul.f32.gmra.mxu0 %v594
        %v634 = vpop.f32.mrf.mxu0
        %v635 = vadd.f32 %v569, %v634
        %636 = vdwg.mxu0
        %637 = vmatpush.msra.mxu0 0.0
        %638 = vmatpush.msra.mxu0 0.0
        %639 = vmatpush.msra.mxu0 0.0
        %640 = vmatpush.msra.mxu0 0.0
        %641 = vmatpush.msra.mxu0 0.0
        %642 = vmatpush.msra.mxu0 0.0
        %643 = vmatpush.msra.mxu0 0.0
        %644 = vmatpush.msra.mxu0 %v514
        %645 = vmatpush.msra.mxu0 %v498
        %646 = vmatpush.msra.mxu0 %v482
        %647 = vmatpush.msra.mxu0 %v466
        %648 = vmatpush.msra.mxu0 %v450
        %649 = vmatpush.msra.mxu0 %v441
        %650 = vmatpush.msra.mxu0 %v425
        %651 = vmatpush.msra.mxu0 %v409
        %652 = vmatpush.msra.mxu0 %v393
        %653 = vmatmul.f32.gmra.mxu0 %v573
        %v654 = vpop.f32.mrf.mxu0
        %v655 = vadd.f32 %v534, %v654
        %656 = vmatmul.f32.gmra.mxu0 %v576
        %v657 = vpop.f32.mrf.mxu0
        %v658 = vadd.f32 %v539, %v657
        %659 = vmatmul.f32.gmra.mxu0 %v579
        %v660 = vpop.f32.mrf.mxu0
        %v661 = vadd.f32 %v544, %v660
        %662 = vmatmul.f32.gmra.mxu0 %v582
        %v663 = vpop.f32.mrf.mxu0
        %v664 = vadd.f32 %v549, %v663
        %665 = vmatmul.f32.gmra.mxu0 %v585
        %v666 = vpop.f32.mrf.mxu0
        %v667 = vadd.f32 %v554, %v666
        %668 = vmatmul.f32.gmra.mxu0 %v588
        %v669 = vpop.f32.mrf.mxu0
        %v670 = vadd.f32 %v559, %v669
        %671 = vmatmul.f32.gmra.mxu0 %v591
        %v672 = vpop.f32.mrf.mxu0
        %v673 = vadd.f32 %v564, %v672
        %674 = vmatmul.f32.gmra.mxu0 %v594
        %v675 = vpop.f32.mrf.mxu0
        %v676 = vadd.f32 %v569, %v675
        %677 = vdwg.mxu0
        %v678 = vmax.f32 %v614, 0.0
        %v679 = vmax.f32 %v655, 0.0
        %v680 = vmax.f32 %v617, 0.0
        %v681 = vmax.f32 %v658, 0.0
        %v682 = vmax.f32 %v620, 0.0
        %v683 = vmax.f32 %v661, 0.0
        %v684 = vmax.f32 %v623, 0.0
        %v685 = vmax.f32 %v664, 0.0
        %v686 = vmax.f32 %v626, 0.0
        %v687 = vmax.f32 %v667, 0.0
        %v688 = vmax.f32 %v629, 0.0
        %v689 = vmax.f32 %v670, 0.0
        %v690 = vmax.f32 %v632, 0.0
        %v691 = vmax.f32 %v673, 0.0
        %v692 = vmax.f32 %v635, 0.0
        %v693 = vmax.f32 %v676, 0.0
        %v694 = vld [vmem:[%s5] sm:$0xff]
        %v695 = vld [vmem:[%s5 + $0x8] sm:$0xff]
        %v696 = vld [vmem:[%s5 + $0x10] sm:$0xff]
        %v697 = vld [vmem:[%s5 + $0x18] sm:$0xff]
        %v698 = vld [vmem:[%s5 + $0x20] sm:$0xff]
        %v699 = vld [vmem:[%s5 + $0x28] sm:$0xff]
        %v700 = vld [vmem:[%s5 + $0x30] sm:$0xff]
        %v701 = vld [vmem:[%s5 + $0x38] sm:$0xff]
        %702 = vrot.lane.b32.xlu0 %v678, 17
        %v703 = vpop.permute.xlu0 %702
        %704 = vrot.lane.b32.xlu0 %v680, 17
        %v705 = vpop.permute.xlu0 %704
        %706 = vrot.lane.b32.xlu0 %v682, 17
        %v707 = vpop.permute.xlu0 %706
        %708 = vrot.lane.b32.xlu0 %v684, 17
        %v709 = vpop.permute.xlu0 %708
        %710 = vrot.lane.b32.xlu0 %v679, 17
        %v711 = vpop.permute.xlu0 %710
        %712 = vrot.lane.b32.xlu0 %v681, 17
        %v713 = vpop.permute.xlu0 %712
        %714 = vrot.lane.b32.xlu0 %v683, 17
        %v715 = vpop.permute.xlu0 %714
        %716 = vrot.lane.b32.xlu0 %v685, 17
        %v717 = vpop.permute.xlu0 %716
        %v718 = vsel %vm383, %v703, %v711
        %v719 = vsel %vm383, %v705, %v713
        %v720 = vsel %vm383, %v707, %v715
        %v721 = vsel %vm383, %v709, %v717
        %v722 = vsel %vm383, %v711, %v703
        %v723 = vsel %vm383, %v713, %v705
        %v724 = vsel %vm383, %v715, %v707
        %v725 = vsel %vm383, %v717, %v709
        %726 = vrot.lane.b32.xlu0 %v678, 1
        %v727 = vpop.permute.xlu0 %726
        %728 = vrot.lane.b32.xlu0 %v680, 1
        %v729 = vpop.permute.xlu0 %728
        %730 = vrot.lane.b32.xlu0 %v682, 1
        %v731 = vpop.permute.xlu0 %730
        %732 = vrot.lane.b32.xlu0 %v684, 1
        %v733 = vpop.permute.xlu0 %732
        %734 = vrot.lane.b32.xlu0 %v679, 1
        %v735 = vpop.permute.xlu0 %734
        %736 = vrot.lane.b32.xlu0 %v681, 1
        %v737 = vpop.permute.xlu0 %736
        %738 = vrot.lane.b32.xlu0 %v683, 1
        %v739 = vpop.permute.xlu0 %738
        %740 = vrot.lane.b32.xlu0 %v685, 1
        %v741 = vpop.permute.xlu0 %740
        %v742 = vsel %vm430, %v727, %v735
        %v743 = vsel %vm430, %v729, %v737
        %v744 = vsel %vm430, %v731, %v739
        %v745 = vsel %vm430, %v733, %v741
        %v746 = vsel %vm430, %v735, %v727
        %v747 = vsel %vm430, %v737, %v729
        %v748 = vsel %vm430, %v739, %v731
        %v749 = vsel %vm430, %v741, %v733
        %v750 = vld [vmem:[#allocation2] sm:$0x3]
        %vm751 = vcmp.ne.f32.partialorder %v750, 0.0
        %v752 = vsel %vm751, 1, 0
        %v753 = vperm.slane %v752, 0
        %v754 = vperm.slane %v752, 1
        %vm755 = vcmp.eq.s32.totalorder %v753, 1
        %vm756 = vcmp.eq.s32.totalorder %v754, 1
        %v757 = vsel %vm755, %v746, %v722
        %v758 = vsel %vm756, %v742, %v718
        %v759 = vsel %vm755, %v747, %v723
        %v760 = vsel %vm756, %v743, %v719
        %v761 = vsel %vm755, %v748, %v724
        %v762 = vsel %vm756, %v744, %v720
        %v763 = vsel %vm755, %v749, %v725
        %v764 = vsel %vm756, %v745, %v721
        %766 = vset.pattern.permute.xlu0 0
        %767 = vperm.xlu0 %766, %v694
        %v768 = vpop.permute.xlu0 %767
        %771 = vset.pattern.permute.xlu0 0
        %772 = vperm.xlu0 %771, %v695
        %v773 = vpop.permute.xlu0 %772
        %776 = vset.pattern.permute.xlu0 0
        %777 = vperm.xlu0 %776, %v696
        %v778 = vpop.permute.xlu0 %777
        %781 = vset.pattern.permute.xlu0 0
        %782 = vperm.xlu0 %781, %v697
        %v783 = vpop.permute.xlu0 %782
        %v785 = vmul.f32 %v768, %v757
        %v786 = vmul.f32 %v768, %v758
        %v787 = vmul.f32 %v773, %v759
        %v788 = vmul.f32 %v773, %v760
        %v789 = vmul.f32 %v778, %v761
        %v790 = vmul.f32 %v778, %v762
        %v791 = vmul.f32 %v783, %v763
        %v792 = vmul.f32 %v783, %v764
        %793 = vrot.lane.b32.xlu0 %v678, 16
        %v794 = vpop.permute.xlu0 %793
        %795 = vrot.lane.b32.xlu0 %v680, 16
        %v796 = vpop.permute.xlu0 %795
        %797 = vrot.lane.b32.xlu0 %v682, 16
        %v798 = vpop.permute.xlu0 %797
        %799 = vrot.lane.b32.xlu0 %v684, 16
        %v800 = vpop.permute.xlu0 %799
        %801 = vrot.lane.b32.xlu0 %v679, 16
        %v802 = vpop.permute.xlu0 %801
        %803 = vrot.lane.b32.xlu0 %v681, 16
        %v804 = vpop.permute.xlu0 %803
        %805 = vrot.lane.b32.xlu0 %v683, 16
        %v806 = vpop.permute.xlu0 %805
        %807 = vrot.lane.b32.xlu0 %v685, 16
        %v808 = vpop.permute.xlu0 %807
        %v809 = vsel %vm398, %v794, %v802
        %v810 = vsel %vm398, %v796, %v804
        %v811 = vsel %vm398, %v798, %v806
        %v812 = vsel %vm398, %v800, %v808
        %v813 = vsel %vm398, %v802, %v794
        %v814 = vsel %vm398, %v804, %v796
        %v815 = vsel %vm398, %v806, %v798
        %v816 = vsel %vm398, %v808, %v800
        %817 = vset.pattern.permute.xlu0 1
        %818 = vperm.xlu0 %817, %v694
        %v819 = vpop.permute.xlu0 %818
        %821 = vset.pattern.permute.xlu0 1
        %822 = vperm.xlu0 %821, %v695
        %v823 = vpop.permute.xlu0 %822
        %825 = vset.pattern.permute.xlu0 1
        %826 = vperm.xlu0 %825, %v696
        %v827 = vpop.permute.xlu0 %826
        %829 = vset.pattern.permute.xlu0 1
        %830 = vperm.xlu0 %829, %v697
        %v831 = vpop.permute.xlu0 %830
        %v833 = vmul.f32 %v819, %v813
        %v834 = vmul.f32 %v819, %v809
        %v835 = vmul.f32 %v823, %v814
        %v836 = vmul.f32 %v823, %v810
        %v837 = vmul.f32 %v827, %v815
        %v838 = vmul.f32 %v827, %v811
        %v839 = vmul.f32 %v831, %v816
        %v840 = vmul.f32 %v831, %v812
        %v841 = vadd.f32 %v785, %v833
        %v842 = vadd.f32 %v786, %v834
        %v843 = vadd.f32 %v787, %v835
        %v844 = vadd.f32 %v788, %v836
        %v845 = vadd.f32 %v789, %v837
        %v846 = vadd.f32 %v790, %v838
        %v847 = vadd.f32 %v791, %v839
        %v848 = vadd.f32 %v792, %v840
        %849 = vrot.lane.b32.xlu0 %v678, 15
        %v850 = vpop.permute.xlu0 %849
        %851 = vrot.lane.b32.xlu0 %v680, 15
        %v852 = vpop.permute.xlu0 %851
        %853 = vrot.lane.b32.xlu0 %v682, 15
        %v854 = vpop.permute.xlu0 %853
        %855 = vrot.lane.b32.xlu0 %v684, 15
        %v856 = vpop.permute.xlu0 %855
        %857 = vrot.lane.b32.xlu0 %v679, 15
        %v858 = vpop.permute.xlu0 %857
        %859 = vrot.lane.b32.xlu0 %v681, 15
        %v860 = vpop.permute.xlu0 %859
        %861 = vrot.lane.b32.xlu0 %v683, 15
        %v862 = vpop.permute.xlu0 %861
        %863 = vrot.lane.b32.xlu0 %v685, 15
        %v864 = vpop.permute.xlu0 %863
        %v865 = vsel %vm414, %v850, %v858
        %v866 = vsel %vm414, %v852, %v860
        %v867 = vsel %vm414, %v854, %v862
        %v868 = vsel %vm414, %v856, %v864
        %v869 = vsel %vm414, %v858, %v850
        %v870 = vsel %vm414, %v860, %v852
        %v871 = vsel %vm414, %v862, %v854
        %v872 = vsel %vm414, %v864, %v856
        %873 = vrot.lane.b32.xlu0 %v678, 31
        %v874 = vpop.permute.xlu0 %873
        %875 = vrot.lane.b32.xlu0 %v680, 31
        %v876 = vpop.permute.xlu0 %875
        %877 = vrot.lane.b32.xlu0 %v682, 31
        %v878 = vpop.permute.xlu0 %877
        %879 = vrot.lane.b32.xlu0 %v684, 31
        %v880 = vpop.permute.xlu0 %879
        %881 = vrot.lane.b32.xlu0 %v679, 31
        %v882 = vpop.permute.xlu0 %881
        %883 = vrot.lane.b32.xlu0 %v681, 31
        %v884 = vpop.permute.xlu0 %883
        %885 = vrot.lane.b32.xlu0 %v683, 31
        %v886 = vpop.permute.xlu0 %885
        %887 = vrot.lane.b32.xlu0 %v685, 31
        %v888 = vpop.permute.xlu0 %887
        %vm889 = vcmp.lt.s32.totalorder %v382, 31
        %v890 = vsel %vm889, %v874, %v882
        %v891 = vsel %vm889, %v876, %v884
        %v892 = vsel %vm889, %v878, %v886
        %v893 = vsel %vm889, %v880, %v888
        %v894 = vsel %vm889, %v882, %v874
        %v895 = vsel %vm889, %v884, %v876
        %v896 = vsel %vm889, %v886, %v878
        %v897 = vsel %vm889, %v888, %v880
        %s898 = scalar_lea.vmem [#allocation2], 4
        %v899 = vld [vmem:[%s898] sm:$0x3]
        %vm900 = vcmp.ne.f32.partialorder %v899, 0.0
        %v901 = vsel %vm900, 1, 0
        %v902 = vperm.slane %v901, 0
        %v903 = vperm.slane %v901, 1
        %vm904 = vcmp.eq.s32.totalorder %v902, 1
        %vm905 = vcmp.eq.s32.totalorder %v903, 1
        %v906 = vsel %vm904, %v894, %v869
        %v907 = vsel %vm905, %v890, %v865
        %v908 = vsel %vm904, %v895, %v870
        %v909 = vsel %vm905, %v891, %v866
        %v910 = vsel %vm904, %v896, %v871
        %v911 = vsel %vm905, %v892, %v867
        %v912 = vsel %vm904, %v897, %v872
        %v913 = vsel %vm905, %v893, %v868
        %914 = vset.pattern.permute.xlu0 2
        %915 = vperm.xlu0 %914, %v694
        %v916 = vpop.permute.xlu0 %915
        %918 = vset.pattern.permute.xlu0 2
        %919 = vperm.xlu0 %918, %v695
        %v920 = vpop.permute.xlu0 %919
        %922 = vset.pattern.permute.xlu0 2
        %923 = vperm.xlu0 %922, %v696
        %v924 = vpop.permute.xlu0 %923
        %926 = vset.pattern.permute.xlu0 2
        %927 = vperm.xlu0 %926, %v697
        %v928 = vpop.permute.xlu0 %927
        %v930 = vmul.f32 %v916, %v906
        %v931 = vmul.f32 %v916, %v907
        %v932 = vmul.f32 %v920, %v908
        %v933 = vmul.f32 %v920, %v909
        %v934 = vmul.f32 %v924, %v910
        %v935 = vmul.f32 %v924, %v911
        %v936 = vmul.f32 %v928, %v912
        %v937 = vmul.f32 %v928, %v913
        %v938 = vadd.f32 %v841, %v930
        %v939 = vadd.f32 %v842, %v931
        %v940 = vadd.f32 %v843, %v932
        %v941 = vadd.f32 %v844, %v933
        %v942 = vadd.f32 %v845, %v934
        %v943 = vadd.f32 %v846, %v935
        %v944 = vadd.f32 %v847, %v936
        %v945 = vadd.f32 %v848, %v937
        %946 = vrot.lane.b32.xlu0 %v678, 113
        %v947 = vpop.permute.xlu0 %946
        %948 = vrot.lane.b32.xlu0 %v680, 113
        %v949 = vpop.permute.xlu0 %948
        %950 = vrot.lane.b32.xlu0 %v682, 113
        %v951 = vpop.permute.xlu0 %950
        %952 = vrot.lane.b32.xlu0 %v684, 113
        %v953 = vpop.permute.xlu0 %952
        %954 = vrot.lane.b32.xlu0 %v679, 113
        %v955 = vpop.permute.xlu0 %954
        %956 = vrot.lane.b32.xlu0 %v681, 113
        %v957 = vpop.permute.xlu0 %956
        %958 = vrot.lane.b32.xlu0 %v683, 113
        %v959 = vpop.permute.xlu0 %958
        %960 = vrot.lane.b32.xlu0 %v685, 113
        %v961 = vpop.permute.xlu0 %960
        %v962 = vsel %vm471, %v947, %v955
        %v963 = vsel %vm471, %v949, %v957
        %v964 = vsel %vm471, %v951, %v959
        %v965 = vsel %vm471, %v953, %v961
        %v966 = vsel %vm471, %v955, %v947
        %v967 = vsel %vm471, %v957, %v949
        %v968 = vsel %vm471, %v959, %v951
        %v969 = vsel %vm471, %v961, %v953
        %s970 = scalar_lea.vmem [#allocation2], 6
        %v971 = vld [vmem:[%s970] sm:$0x3]
        %vm972 = vcmp.ne.f32.partialorder %v971, 0.0
        %v973 = vsel %vm972, 1, 0
        %v974 = vperm.slane %v973, 0
        %v975 = vperm.slane %v973, 1
        %vm976 = vcmp.eq.s32.totalorder %v974, 1
        %vm977 = vcmp.eq.s32.totalorder %v975, 1
        %v978 = vsel %vm976, %v962, %v746
        %v979 = vsel %vm977, %v966, %v742
        %v980 = vsel %vm976, %v963, %v747
        %v981 = vsel %vm977, %v967, %v743
        %v982 = vsel %vm976, %v964, %v748
        %v983 = vsel %vm977, %v968, %v744
        %v984 = vsel %vm976, %v965, %v749
        %v985 = vsel %vm977, %v969, %v745
        %986 = vset.pattern.permute.xlu0 3
        %987 = vperm.xlu0 %986, %v694
        %v988 = vpop.permute.xlu0 %987
        %990 = vset.pattern.permute.xlu0 3
        %991 = vperm.xlu0 %990, %v695
        %v992 = vpop.permute.xlu0 %991
        %994 = vset.pattern.permute.xlu0 3
        %995 = vperm.xlu0 %994, %v696
        %v996 = vpop.permute.xlu0 %995
        %998 = vset.pattern.permute.xlu0 3
        %999 = vperm.xlu0 %998, %v697
        %v1000 = vpop.permute.xlu0 %999
        %v1002 = vmul.f32 %v988, %v978
        %v1003 = vmul.f32 %v988, %v979
        %v1004 = vmul.f32 %v992, %v980
        %v1005 = vmul.f32 %v992, %v981
        %v1006 = vmul.f32 %v996, %v982
        %v1007 = vmul.f32 %v996, %v983
        %v1008 = vmul.f32 %v1000, %v984
        %v1009 = vmul.f32 %v1000, %v985
        %v1010 = vadd.f32 %v938, %v1002
        %v1011 = vadd.f32 %v939, %v1003
        %v1012 = vadd.f32 %v940, %v1004
        %v1013 = vadd.f32 %v941, %v1005
        %v1014 = vadd.f32 %v942, %v1006
        %v1015 = vadd.f32 %v943, %v1007
        %v1016 = vadd.f32 %v944, %v1008
        %v1017 = vadd.f32 %v945, %v1009
        %1018 = vset.pattern.permute.xlu0 4
        %1019 = vperm.xlu0 %1018, %v694
        %v1020 = vpop.permute.xlu0 %1019
        %1022 = vset.pattern.permute.xlu0 4
        %1023 = vperm.xlu0 %1022, %v695
        %v1024 = vpop.permute.xlu0 %1023
        %1026 = vset.pattern.permute.xlu0 4
        %1027 = vperm.xlu0 %1026, %v696
        %v1028 = vpop.permute.xlu0 %1027
        %1030 = vset.pattern.permute.xlu0 4
        %1031 = vperm.xlu0 %1030, %v697
        %v1032 = vpop.permute.xlu0 %1031
        %v1034 = vmul.f32 %v1020, %v678
        %v1035 = vmul.f32 %v1020, %v679
        %v1036 = vmul.f32 %v1024, %v680
        %v1037 = vmul.f32 %v1024, %v681
        %v1038 = vmul.f32 %v1028, %v682
        %v1039 = vmul.f32 %v1028, %v683
        %v1040 = vmul.f32 %v1032, %v684
        %v1041 = vmul.f32 %v1032, %v685
        %v1042 = vadd.f32 %v1010, %v1034
        %v1043 = vadd.f32 %v1011, %v1035
        %v1044 = vadd.f32 %v1012, %v1036
        %v1045 = vadd.f32 %v1013, %v1037
        %v1046 = vadd.f32 %v1014, %v1038
        %v1047 = vadd.f32 %v1015, %v1039
        %v1048 = vadd.f32 %v1016, %v1040
        %v1049 = vadd.f32 %v1017, %v1041
        %1050 = vrot.lane.b32.xlu0 %v678, 127
        %v1051 = vpop.permute.xlu0 %1050
        %1052 = vrot.lane.b32.xlu0 %v680, 127
        %v1053 = vpop.permute.xlu0 %1052
        %1054 = vrot.lane.b32.xlu0 %v682, 127
        %v1055 = vpop.permute.xlu0 %1054
        %1056 = vrot.lane.b32.xlu0 %v684, 127
        %v1057 = vpop.permute.xlu0 %1056
        %1058 = vrot.lane.b32.xlu0 %v679, 127
        %v1059 = vpop.permute.xlu0 %1058
        %1060 = vrot.lane.b32.xlu0 %v681, 127
        %v1061 = vpop.permute.xlu0 %1060
        %1062 = vrot.lane.b32.xlu0 %v683, 127
        %v1063 = vpop.permute.xlu0 %1062
        %1064 = vrot.lane.b32.xlu0 %v685, 127
        %v1065 = vpop.permute.xlu0 %1064
        %v1066 = vsel %vm455, %v1051, %v1059
        %v1067 = vsel %vm455, %v1053, %v1061
        %v1068 = vsel %vm455, %v1055, %v1063
        %v1069 = vsel %vm455, %v1057, %v1065
        %v1070 = vsel %vm455, %v1059, %v1051
        %v1071 = vsel %vm455, %v1061, %v1053
        %v1072 = vsel %vm455, %v1063, %v1055
        %v1073 = vsel %vm455, %v1065, %v1057
        %s1074 = scalar_lea.vmem [#allocation2], 10
        %v1075 = vld [vmem:[%s1074] sm:$0x3]
        %vm1076 = vcmp.ne.f32.partialorder %v1075, 0.0
        %v1077 = vsel %vm1076, 1, 0
        %v1078 = vperm.slane %v1077, 0
        %v1079 = vperm.slane %v1077, 1
        %vm1080 = vcmp.eq.s32.totalorder %v1078, 1
        %vm1081 = vcmp.eq.s32.totalorder %v1079, 1
        %v1082 = vsel %vm1080, %v869, %v1066
        %v1083 = vsel %vm1081, %v865, %v1070
        %v1084 = vsel %vm1080, %v870, %v1067
        %v1085 = vsel %vm1081, %v866, %v1071
        %v1086 = vsel %vm1080, %v871, %v1068
        %v1087 = vsel %vm1081, %v867, %v1072
        %v1088 = vsel %vm1080, %v872, %v1069
        %v1089 = vsel %vm1081, %v868, %v1073
        %1090 = vset.pattern.permute.xlu0 5
        %1091 = vperm.xlu0 %1090, %v694
        %v1092 = vpop.permute.xlu0 %1091
        %1094 = vset.pattern.permute.xlu0 5
        %1095 = vperm.xlu0 %1094, %v695
        %v1096 = vpop.permute.xlu0 %1095
        %1098 = vset.pattern.permute.xlu0 5
        %1099 = vperm.xlu0 %1098, %v696
        %v1100 = vpop.permute.xlu0 %1099
        %1102 = vset.pattern.permute.xlu0 5
        %1103 = vperm.xlu0 %1102, %v697
        %v1104 = vpop.permute.xlu0 %1103
        %v1106 = vmul.f32 %v1092, %v1082
        %v1107 = vmul.f32 %v1092, %v1083
        %v1108 = vmul.f32 %v1096, %v1084
        %v1109 = vmul.f32 %v1096, %v1085
        %v1110 = vmul.f32 %v1100, %v1086
        %v1111 = vmul.f32 %v1100, %v1087
        %v1112 = vmul.f32 %v1104, %v1088
        %v1113 = vmul.f32 %v1104, %v1089
        %v1114 = vadd.f32 %v1042, %v1106
        %v1115 = vadd.f32 %v1043, %v1107
        %v1116 = vadd.f32 %v1044, %v1108
        %v1117 = vadd.f32 %v1045, %v1109
        %v1118 = vadd.f32 %v1046, %v1110
        %v1119 = vadd.f32 %v1047, %v1111
        %v1120 = vadd.f32 %v1048, %v1112
        %v1121 = vadd.f32 %v1049, %v1113
        %1122 = vrot.lane.b32.xlu0 %v678, 97
        %v1123 = vpop.permute.xlu0 %1122
        %1124 = vrot.lane.b32.xlu0 %v680, 97
        %v1125 = vpop.permute.xlu0 %1124
        %1126 = vrot.lane.b32.xlu0 %v682, 97
        %v1127 = vpop.permute.xlu0 %1126
        %1128 = vrot.lane.b32.xlu0 %v684, 97
        %v1129 = vpop.permute.xlu0 %1128
        %1130 = vrot.lane.b32.xlu0 %v679, 97
        %v1131 = vpop.permute.xlu0 %1130
        %1132 = vrot.lane.b32.xlu0 %v681, 97
        %v1133 = vpop.permute.xlu0 %1132
        %1134 = vrot.lane.b32.xlu0 %v683, 97
        %v1135 = vpop.permute.xlu0 %1134
        %1136 = vrot.lane.b32.xlu0 %v685, 97
        %v1137 = vpop.permute.xlu0 %1136
        %vm1138 = vcmp.lt.s32.totalorder %v382, 97
        %v1139 = vsel %vm1138, %v1123, %v1131
        %v1140 = vsel %vm1138, %v1125, %v1133
        %v1141 = vsel %vm1138, %v1127, %v1135
        %v1142 = vsel %vm1138, %v1129, %v1137
        %v1143 = vsel %vm1138, %v1131, %v1123
        %v1144 = vsel %vm1138, %v1133, %v1125
        %v1145 = vsel %vm1138, %v1135, %v1127
        %v1146 = vsel %vm1138, %v1137, %v1129
        %s1147 = scalar_lea.vmem [#allocation2], 12
        %v1148 = vld [vmem:[%s1147] sm:$0x3]
        %vm1149 = vcmp.ne.f32.partialorder %v1148, 0.0
        %v1150 = vsel %vm1149, 1, 0
        %v1151 = vperm.slane %v1150, 0
        %v1152 = vperm.slane %v1150, 1
        %vm1153 = vcmp.eq.s32.totalorder %v1151, 1
        %vm1154 = vcmp.eq.s32.totalorder %v1152, 1
        %v1155 = vsel %vm1153, %v1139, %v962
        %v1156 = vsel %vm1154, %v1143, %v966
        %v1157 = vsel %vm1153, %v1140, %v963
        %v1158 = vsel %vm1154, %v1144, %v967
        %v1159 = vsel %vm1153, %v1141, %v964
        %v1160 = vsel %vm1154, %v1145, %v968
        %v1161 = vsel %vm1153, %v1142, %v965
        %v1162 = vsel %vm1154, %v1146, %v969
        %1163 = vset.pattern.permute.xlu0 6
        %1164 = vperm.xlu0 %1163, %v694
        %v1165 = vpop.permute.xlu0 %1164
        %1167 = vset.pattern.permute.xlu0 6
        %1168 = vperm.xlu0 %1167, %v695
        %v1169 = vpop.permute.xlu0 %1168
        %1171 = vset.pattern.permute.xlu0 6
        %1172 = vperm.xlu0 %1171, %v696
        %v1173 = vpop.permute.xlu0 %1172
        %1175 = vset.pattern.permute.xlu0 6
        %1176 = vperm.xlu0 %1175, %v697
        %v1177 = vpop.permute.xlu0 %1176
        %v1179 = vmul.f32 %v1165, %v1155
        %v1180 = vmul.f32 %v1165, %v1156
        %v1181 = vmul.f32 %v1169, %v1157
        %v1182 = vmul.f32 %v1169, %v1158
        %v1183 = vmul.f32 %v1173, %v1159
        %v1184 = vmul.f32 %v1173, %v1160
        %v1185 = vmul.f32 %v1177, %v1161
        %v1186 = vmul.f32 %v1177, %v1162
        %v1187 = vadd.f32 %v1114, %v1179
        %v1188 = vadd.f32 %v1115, %v1180
        %v1189 = vadd.f32 %v1116, %v1181
        %v1190 = vadd.f32 %v1117, %v1182
        %v1191 = vadd.f32 %v1118, %v1183
        %v1192 = vadd.f32 %v1119, %v1184
        %v1193 = vadd.f32 %v1120, %v1185
        %v1194 = vadd.f32 %v1121, %v1186
        %1195 = vrot.lane.b32.xlu0 %v678, 112
        %v1196 = vpop.permute.xlu0 %1195
        %1197 = vrot.lane.b32.xlu0 %v680, 112
        %v1198 = vpop.permute.xlu0 %1197
        %1199 = vrot.lane.b32.xlu0 %v682, 112
        %v1200 = vpop.permute.xlu0 %1199
        %1201 = vrot.lane.b32.xlu0 %v684, 112
        %v1202 = vpop.permute.xlu0 %1201
        %1203 = vrot.lane.b32.xlu0 %v679, 112
        %v1204 = vpop.permute.xlu0 %1203
        %1205 = vrot.lane.b32.xlu0 %v681, 112
        %v1206 = vpop.permute.xlu0 %1205
        %1207 = vrot.lane.b32.xlu0 %v683, 112
        %v1208 = vpop.permute.xlu0 %1207
        %1209 = vrot.lane.b32.xlu0 %v685, 112
        %v1210 = vpop.permute.xlu0 %1209
        %v1211 = vsel %vm487, %v1196, %v1204
        %v1212 = vsel %vm487, %v1198, %v1206
        %v1213 = vsel %vm487, %v1200, %v1208
        %v1214 = vsel %vm487, %v1202, %v1210
        %v1215 = vsel %vm487, %v1204, %v1196
        %v1216 = vsel %vm487, %v1206, %v1198
        %v1217 = vsel %vm487, %v1208, %v1200
        %v1218 = vsel %vm487, %v1210, %v1202
        %1219 = vset.pattern.permute.xlu0 7
        %1220 = vperm.xlu0 %1219, %v694
        %v1221 = vpop.permute.xlu0 %1220
        %1223 = vset.pattern.permute.xlu0 7
        %1224 = vperm.xlu0 %1223, %v695
        %v1225 = vpop.permute.xlu0 %1224
        %1227 = vset.pattern.permute.xlu0 7
        %1228 = vperm.xlu0 %1227, %v696
        %v1229 = vpop.permute.xlu0 %1228
        %1231 = vset.pattern.permute.xlu0 7
        %1232 = vperm.xlu0 %1231, %v697
        %v1233 = vpop.permute.xlu0 %1232
        %v1235 = vmul.f32 %v1221, %v1211
        %v1236 = vmul.f32 %v1221, %v1215
        %v1237 = vmul.f32 %v1225, %v1212
        %v1238 = vmul.f32 %v1225, %v1216
        %v1239 = vmul.f32 %v1229, %v1213
        %v1240 = vmul.f32 %v1229, %v1217
        %v1241 = vmul.f32 %v1233, %v1214
        %v1242 = vmul.f32 %v1233, %v1218
        %v1243 = vadd.f32 %v1187, %v1235
        %v1244 = vadd.f32 %v1188, %v1236
        %v1245 = vadd.f32 %v1189, %v1237
        %v1246 = vadd.f32 %v1190, %v1238
        %v1247 = vadd.f32 %v1191, %v1239
        %v1248 = vadd.f32 %v1192, %v1240
        %v1249 = vadd.f32 %v1193, %v1241
        %v1250 = vadd.f32 %v1194, %v1242
        %1251 = vrot.lane.b32.xlu0 %v678, 111
        %v1252 = vpop.permute.xlu0 %1251
        %1253 = vrot.lane.b32.xlu0 %v680, 111
        %v1254 = vpop.permute.xlu0 %1253
        %1255 = vrot.lane.b32.xlu0 %v682, 111
        %v1256 = vpop.permute.xlu0 %1255
        %1257 = vrot.lane.b32.xlu0 %v684, 111
        %v1258 = vpop.permute.xlu0 %1257
        %1259 = vrot.lane.b32.xlu0 %v679, 111
        %v1260 = vpop.permute.xlu0 %1259
        %1261 = vrot.lane.b32.xlu0 %v681, 111
        %v1262 = vpop.permute.xlu0 %1261
        %1263 = vrot.lane.b32.xlu0 %v683, 111
        %v1264 = vpop.permute.xlu0 %1263
        %1265 = vrot.lane.b32.xlu0 %v685, 111
        %v1266 = vpop.permute.xlu0 %1265
        %v1267 = vsel %vm503, %v1252, %v1260
        %v1268 = vsel %vm503, %v1254, %v1262
        %v1269 = vsel %vm503, %v1256, %v1264
        %v1270 = vsel %vm503, %v1258, %v1266
        %v1271 = vsel %vm503, %v1260, %v1252
        %v1272 = vsel %vm503, %v1262, %v1254
        %v1273 = vsel %vm503, %v1264, %v1256
        %v1274 = vsel %vm503, %v1266, %v1258
        %s1275 = scalar_lea.vmem [#allocation2], 16
        %v1276 = vld [vmem:[%s1275] sm:$0x3]
        %vm1277 = vcmp.ne.f32.partialorder %v1276, 0.0
        %v1278 = vsel %vm1277, 1, 0
        %v1279 = vperm.slane %v1278, 0
        %v1280 = vperm.slane %v1278, 1
        %vm1281 = vcmp.eq.s32.totalorder %v1279, 1
        %vm1282 = vcmp.eq.s32.totalorder %v1280, 1
        %v1283 = vsel %vm1281, %v1066, %v1267
        %v1284 = vsel %vm1282, %v1070, %v1271
        %v1285 = vsel %vm1281, %v1067, %v1268
        %v1286 = vsel %vm1282, %v1071, %v1272
        %v1287 = vsel %vm1281, %v1068, %v1269
        %v1288 = vsel %vm1282, %v1072, %v1273
        %v1289 = vsel %vm1281, %v1069, %v1270
        %v1290 = vsel %vm1282, %v1073, %v1274
        %1291 = vset.pattern.permute.xlu0 8
        %1292 = vperm.xlu0 %1291, %v694
        %v1293 = vpop.permute.xlu0 %1292
        %1295 = vset.pattern.permute.xlu0 8
        %1296 = vperm.xlu0 %1295, %v695
        %v1297 = vpop.permute.xlu0 %1296
        %1299 = vset.pattern.permute.xlu0 8
        %1300 = vperm.xlu0 %1299, %v696
        %v1301 = vpop.permute.xlu0 %1300
        %1303 = vset.pattern.permute.xlu0 8
        %1304 = vperm.xlu0 %1303, %v697
        %v1305 = vpop.permute.xlu0 %1304
        %v1307 = vmul.f32 %v1293, %v1283
        %v1308 = vmul.f32 %v1293, %v1284
        %v1309 = vmul.f32 %v1297, %v1285
        %v1310 = vmul.f32 %v1297, %v1286
        %v1311 = vmul.f32 %v1301, %v1287
        %v1312 = vmul.f32 %v1301, %v1288
        %v1313 = vmul.f32 %v1305, %v1289
        %v1314 = vmul.f32 %v1305, %v1290
        %v1315 = vadd.f32 %v1243, %v1307
        %v1316 = vadd.f32 %v1244, %v1308
        %v1317 = vadd.f32 %v1245, %v1309
        %v1318 = vadd.f32 %v1246, %v1310
        %v1319 = vadd.f32 %v1247, %v1311
        %v1320 = vadd.f32 %v1248, %v1312
        %v1321 = vadd.f32 %v1249, %v1313
        %v1322 = vadd.f32 %v1250, %v1314
        %1323 = vrot.lane.b32.xlu0 %v686, 17
        %v1324 = vpop.permute.xlu0 %1323
        %1325 = vrot.lane.b32.xlu0 %v688, 17
        %v1326 = vpop.permute.xlu0 %1325
        %1327 = vrot.lane.b32.xlu0 %v690, 17
        %v1328 = vpop.permute.xlu0 %1327
        %1329 = vrot.lane.b32.xlu0 %v692, 17
        %v1330 = vpop.permute.xlu0 %1329
        %1331 = vrot.lane.b32.xlu0 %v687, 17
        %v1332 = vpop.permute.xlu0 %1331
        %1333 = vrot.lane.b32.xlu0 %v689, 17
        %v1334 = vpop.permute.xlu0 %1333
        %1335 = vrot.lane.b32.xlu0 %v691, 17
        %v1336 = vpop.permute.xlu0 %1335
        %1337 = vrot.lane.b32.xlu0 %v693, 17
        %v1338 = vpop.permute.xlu0 %1337
        %v1339 = vsel %vm383, %v1324, %v1332
        %v1340 = vsel %vm383, %v1326, %v1334
        %v1341 = vsel %vm383, %v1328, %v1336
        %v1342 = vsel %vm383, %v1330, %v1338
        %v1343 = vsel %vm383, %v1332, %v1324
        %v1344 = vsel %vm383, %v1334, %v1326
        %v1345 = vsel %vm383, %v1336, %v1328
        %v1346 = vsel %vm383, %v1338, %v1330
        %1347 = vrot.lane.b32.xlu0 %v686, 1
        %v1348 = vpop.permute.xlu0 %1347
        %1349 = vrot.lane.b32.xlu0 %v688, 1
        %v1350 = vpop.permute.xlu0 %1349
        %1351 = vrot.lane.b32.xlu0 %v690, 1
        %v1352 = vpop.permute.xlu0 %1351
        %1353 = vrot.lane.b32.xlu0 %v692, 1
        %v1354 = vpop.permute.xlu0 %1353
        %1355 = vrot.lane.b32.xlu0 %v687, 1
        %v1356 = vpop.permute.xlu0 %1355
        %1357 = vrot.lane.b32.xlu0 %v689, 1
        %v1358 = vpop.permute.xlu0 %1357
        %1359 = vrot.lane.b32.xlu0 %v691, 1
        %v1360 = vpop.permute.xlu0 %1359
        %1361 = vrot.lane.b32.xlu0 %v693, 1
        %v1362 = vpop.permute.xlu0 %1361
        %v1363 = vsel %vm430, %v1348, %v1356
        %v1364 = vsel %vm430, %v1350, %v1358
        %v1365 = vsel %vm430, %v1352, %v1360
        %v1366 = vsel %vm430, %v1354, %v1362
        %v1367 = vsel %vm430, %v1356, %v1348
        %v1368 = vsel %vm430, %v1358, %v1350
        %v1369 = vsel %vm430, %v1360, %v1352
        %v1370 = vsel %vm430, %v1362, %v1354
        %v1371 = vsel %vm755, %v1367, %v1343
        %v1372 = vsel %vm756, %v1363, %v1339
        %v1373 = vsel %vm755, %v1368, %v1344
        %v1374 = vsel %vm756, %v1364, %v1340
        %v1375 = vsel %vm755, %v1369, %v1345
        %v1376 = vsel %vm756, %v1365, %v1341
        %v1377 = vsel %vm755, %v1370, %v1346
        %v1378 = vsel %vm756, %v1366, %v1342
        %1380 = vset.pattern.permute.xlu0 0
        %1381 = vperm.xlu0 %1380, %v698
        %v1382 = vpop.permute.xlu0 %1381
        %1385 = vset.pattern.permute.xlu0 0
        %1386 = vperm.xlu0 %1385, %v699
        %v1387 = vpop.permute.xlu0 %1386
        %1390 = vset.pattern.permute.xlu0 0
        %1391 = vperm.xlu0 %1390, %v700
        %v1392 = vpop.permute.xlu0 %1391
        %1395 = vset.pattern.permute.xlu0 0
        %1396 = vperm.xlu0 %1395, %v701
        %v1397 = vpop.permute.xlu0 %1396
        %v1399 = vmul.f32 %v1382, %v1371
        %v1400 = vmul.f32 %v1382, %v1372
        %v1401 = vmul.f32 %v1387, %v1373
        %v1402 = vmul.f32 %v1387, %v1374
        %v1403 = vmul.f32 %v1392, %v1375
        %v1404 = vmul.f32 %v1392, %v1376
        %v1405 = vmul.f32 %v1397, %v1377
        %v1406 = vmul.f32 %v1397, %v1378
        %1407 = vrot.lane.b32.xlu0 %v686, 16
        %v1408 = vpop.permute.xlu0 %1407
        %1409 = vrot.lane.b32.xlu0 %v688, 16
        %v1410 = vpop.permute.xlu0 %1409
        %1411 = vrot.lane.b32.xlu0 %v690, 16
        %v1412 = vpop.permute.xlu0 %1411
        %1413 = vrot.lane.b32.xlu0 %v692, 16
        %v1414 = vpop.permute.xlu0 %1413
        %1415 = vrot.lane.b32.xlu0 %v687, 16
        %v1416 = vpop.permute.xlu0 %1415
        %1417 = vrot.lane.b32.xlu0 %v689, 16
        %v1418 = vpop.permute.xlu0 %1417
        %1419 = vrot.lane.b32.xlu0 %v691, 16
        %v1420 = vpop.permute.xlu0 %1419
        %1421 = vrot.lane.b32.xlu0 %v693, 16
        %v1422 = vpop.permute.xlu0 %1421
        %v1423 = vsel %vm398, %v1408, %v1416
        %v1424 = vsel %vm398, %v1410, %v1418
        %v1425 = vsel %vm398, %v1412, %v1420
        %v1426 = vsel %vm398, %v1414, %v1422
        %v1427 = vsel %vm398, %v1416, %v1408
        %v1428 = vsel %vm398, %v1418, %v1410
        %v1429 = vsel %vm398, %v1420, %v1412
        %v1430 = vsel %vm398, %v1422, %v1414
        %1431 = vset.pattern.permute.xlu0 1
        %1432 = vperm.xlu0 %1431, %v698
        %v1433 = vpop.permute.xlu0 %1432
        %1435 = vset.pattern.permute.xlu0 1
        %1436 = vperm.xlu0 %1435, %v699
        %v1437 = vpop.permute.xlu0 %1436
        %1439 = vset.pattern.permute.xlu0 1
        %1440 = vperm.xlu0 %1439, %v700
        %v1441 = vpop.permute.xlu0 %1440
        %1443 = vset.pattern.permute.xlu0 1
        %1444 = vperm.xlu0 %1443, %v701
        %v1445 = vpop.permute.xlu0 %1444
        %v1447 = vmul.f32 %v1433, %v1427
        %v1448 = vmul.f32 %v1433, %v1423
        %v1449 = vmul.f32 %v1437, %v1428
        %v1450 = vmul.f32 %v1437, %v1424
        %v1451 = vmul.f32 %v1441, %v1429
        %v1452 = vmul.f32 %v1441, %v1425
        %v1453 = vmul.f32 %v1445, %v1430
        %v1454 = vmul.f32 %v1445, %v1426
        %v1455 = vadd.f32 %v1399, %v1447
        %v1456 = vadd.f32 %v1400, %v1448
        %v1457 = vadd.f32 %v1401, %v1449
        %v1458 = vadd.f32 %v1402, %v1450
        %v1459 = vadd.f32 %v1403, %v1451
        %v1460 = vadd.f32 %v1404, %v1452
        %v1461 = vadd.f32 %v1405, %v1453
        %v1462 = vadd.f32 %v1406, %v1454
        %1463 = vrot.lane.b32.xlu0 %v686, 15
        %v1464 = vpop.permute.xlu0 %1463
        %1465 = vrot.lane.b32.xlu0 %v688, 15
        %v1466 = vpop.permute.xlu0 %1465
        %1467 = vrot.lane.b32.xlu0 %v690, 15
        %v1468 = vpop.permute.xlu0 %1467
        %1469 = vrot.lane.b32.xlu0 %v692, 15
        %v1470 = vpop.permute.xlu0 %1469
        %1471 = vrot.lane.b32.xlu0 %v687, 15
        %v1472 = vpop.permute.xlu0 %1471
        %1473 = vrot.lane.b32.xlu0 %v689, 15
        %v1474 = vpop.permute.xlu0 %1473
        %1475 = vrot.lane.b32.xlu0 %v691, 15
        %v1476 = vpop.permute.xlu0 %1475
        %1477 = vrot.lane.b32.xlu0 %v693, 15
        %v1478 = vpop.permute.xlu0 %1477
        %v1479 = vsel %vm414, %v1464, %v1472
        %v1480 = vsel %vm414, %v1466, %v1474
        %v1481 = vsel %vm414, %v1468, %v1476
        %v1482 = vsel %vm414, %v1470, %v1478
        %v1483 = vsel %vm414, %v1472, %v1464
        %v1484 = vsel %vm414, %v1474, %v1466
        %v1485 = vsel %vm414, %v1476, %v1468
        %v1486 = vsel %vm414, %v1478, %v1470
        %1487 = vrot.lane.b32.xlu0 %v686, 31
        %v1488 = vpop.permute.xlu0 %1487
        %1489 = vrot.lane.b32.xlu0 %v688, 31
        %v1490 = vpop.permute.xlu0 %1489
        %1491 = vrot.lane.b32.xlu0 %v690, 31
        %v1492 = vpop.permute.xlu0 %1491
        %1493 = vrot.lane.b32.xlu0 %v692, 31
        %v1494 = vpop.permute.xlu0 %1493
        %1495 = vrot.lane.b32.xlu0 %v687, 31
        %v1496 = vpop.permute.xlu0 %1495
        %1497 = vrot.lane.b32.xlu0 %v689, 31
        %v1498 = vpop.permute.xlu0 %1497
        %1499 = vrot.lane.b32.xlu0 %v691, 31
        %v1500 = vpop.permute.xlu0 %1499
        %1501 = vrot.lane.b32.xlu0 %v693, 31
        %v1502 = vpop.permute.xlu0 %1501
        %v1503 = vsel %vm889, %v1488, %v1496
        %v1504 = vsel %vm889, %v1490, %v1498
        %v1505 = vsel %vm889, %v1492, %v1500
        %v1506 = vsel %vm889, %v1494, %v1502
        %v1507 = vsel %vm889, %v1496, %v1488
        %v1508 = vsel %vm889, %v1498, %v1490
        %v1509 = vsel %vm889, %v1500, %v1492
        %v1510 = vsel %vm889, %v1502, %v1494
        %v1511 = vsel %vm904, %v1507, %v1483
        %v1512 = vsel %vm905, %v1503, %v1479
        %v1513 = vsel %vm904, %v1508, %v1484
        %v1514 = vsel %vm905, %v1504, %v1480
        %v1515 = vsel %vm904, %v1509, %v1485
        %v1516 = vsel %vm905, %v1505, %v1481
        %v1517 = vsel %vm904, %v1510, %v1486
        %v1518 = vsel %vm905, %v1506, %v1482
        %1519 = vset.pattern.permute.xlu0 2
        %1520 = vperm.xlu0 %1519, %v698
        %v1521 = vpop.permute.xlu0 %1520
        %1523 = vset.pattern.permute.xlu0 2
        %1524 = vperm.xlu0 %1523, %v699
        %v1525 = vpop.permute.xlu0 %1524
        %1527 = vset.pattern.permute.xlu0 2
        %1528 = vperm.xlu0 %1527, %v700
        %v1529 = vpop.permute.xlu0 %1528
        %1531 = vset.pattern.permute.xlu0 2
        %1532 = vperm.xlu0 %1531, %v701
        %v1533 = vpop.permute.xlu0 %1532
        %v1535 = vmul.f32 %v1521, %v1511
        %v1536 = vmul.f32 %v1521, %v1512
        %v1537 = vmul.f32 %v1525, %v1513
        %v1538 = vmul.f32 %v1525, %v1514
        %v1539 = vmul.f32 %v1529, %v1515
        %v1540 = vmul.f32 %v1529, %v1516
        %v1541 = vmul.f32 %v1533, %v1517
        %v1542 = vmul.f32 %v1533, %v1518
        %v1543 = vadd.f32 %v1455, %v1535
        %v1544 = vadd.f32 %v1456, %v1536
        %v1545 = vadd.f32 %v1457, %v1537
        %v1546 = vadd.f32 %v1458, %v1538
        %v1547 = vadd.f32 %v1459, %v1539
        %v1548 = vadd.f32 %v1460, %v1540
        %v1549 = vadd.f32 %v1461, %v1541
        %v1550 = vadd.f32 %v1462, %v1542
        %1551 = vrot.lane.b32.xlu0 %v686, 113
        %v1552 = vpop.permute.xlu0 %1551
        %1553 = vrot.lane.b32.xlu0 %v688, 113
        %v1554 = vpop.permute.xlu0 %1553
        %1555 = vrot.lane.b32.xlu0 %v690, 113
        %v1556 = vpop.permute.xlu0 %1555
        %1557 = vrot.lane.b32.xlu0 %v692, 113
        %v1558 = vpop.permute.xlu0 %1557
        %1559 = vrot.lane.b32.xlu0 %v687, 113
        %v1560 = vpop.permute.xlu0 %1559
        %1561 = vrot.lane.b32.xlu0 %v689, 113
        %v1562 = vpop.permute.xlu0 %1561
        %1563 = vrot.lane.b32.xlu0 %v691, 113
        %v1564 = vpop.permute.xlu0 %1563
        %1565 = vrot.lane.b32.xlu0 %v693, 113
        %v1566 = vpop.permute.xlu0 %1565
        %v1567 = vsel %vm471, %v1552, %v1560
        %v1568 = vsel %vm471, %v1554, %v1562
        %v1569 = vsel %vm471, %v1556, %v1564
        %v1570 = vsel %vm471, %v1558, %v1566
        %v1571 = vsel %vm471, %v1560, %v1552
        %v1572 = vsel %vm471, %v1562, %v1554
        %v1573 = vsel %vm471, %v1564, %v1556
        %v1574 = vsel %vm471, %v1566, %v1558
        %v1575 = vsel %vm976, %v1567, %v1367
        %v1576 = vsel %vm977, %v1571, %v1363
        %v1577 = vsel %vm976, %v1568, %v1368
        %v1578 = vsel %vm977, %v1572, %v1364
        %v1579 = vsel %vm976, %v1569, %v1369
        %v1580 = vsel %vm977, %v1573, %v1365
        %v1581 = vsel %vm976, %v1570, %v1370
        %v1582 = vsel %vm977, %v1574, %v1366
        %1583 = vset.pattern.permute.xlu0 3
        %1584 = vperm.xlu0 %1583, %v698
        %v1585 = vpop.permute.xlu0 %1584
        %1587 = vset.pattern.permute.xlu0 3
        %1588 = vperm.xlu0 %1587, %v699
        %v1589 = vpop.permute.xlu0 %1588
        %1591 = vset.pattern.permute.xlu0 3
        %1592 = vperm.xlu0 %1591, %v700
        %v1593 = vpop.permute.xlu0 %1592
        %1595 = vset.pattern.permute.xlu0 3
        %1596 = vperm.xlu0 %1595, %v701
        %v1597 = vpop.permute.xlu0 %1596
        %v1599 = vmul.f32 %v1585, %v1575
        %v1600 = vmul.f32 %v1585, %v1576
        %v1601 = vmul.f32 %v1589, %v1577
        %v1602 = vmul.f32 %v1589, %v1578
        %v1603 = vmul.f32 %v1593, %v1579
        %v1604 = vmul.f32 %v1593, %v1580
        %v1605 = vmul.f32 %v1597, %v1581
        %v1606 = vmul.f32 %v1597, %v1582
        %v1607 = vadd.f32 %v1543, %v1599
        %v1608 = vadd.f32 %v1544, %v1600
        %v1609 = vadd.f32 %v1545, %v1601
        %v1610 = vadd.f32 %v1546, %v1602
        %v1611 = vadd.f32 %v1547, %v1603
        %v1612 = vadd.f32 %v1548, %v1604
        %v1613 = vadd.f32 %v1549, %v1605
        %v1614 = vadd.f32 %v1550, %v1606
        %1615 = vset.pattern.permute.xlu0 4
        %1616 = vperm.xlu0 %1615, %v698
        %v1617 = vpop.permute.xlu0 %1616
        %1619 = vset.pattern.permute.xlu0 4
        %1620 = vperm.xlu0 %1619, %v699
        %v1621 = vpop.permute.xlu0 %1620
        %1623 = vset.pattern.permute.xlu0 4
        %1624 = vperm.xlu0 %1623, %v700
        %v1625 = vpop.permute.xlu0 %1624
        %1627 = vset.pattern.permute.xlu0 4
        %1628 = vperm.xlu0 %1627, %v701
        %v1629 = vpop.permute.xlu0 %1628
        %v1631 = vmul.f32 %v1617, %v686
        %v1632 = vmul.f32 %v1617, %v687
        %v1633 = vmul.f32 %v1621, %v688
        %v1634 = vmul.f32 %v1621, %v689
        %v1635 = vmul.f32 %v1625, %v690
        %v1636 = vmul.f32 %v1625, %v691
        %v1637 = vmul.f32 %v1629, %v692
        %v1638 = vmul.f32 %v1629, %v693
        %v1639 = vadd.f32 %v1607, %v1631
        %v1640 = vadd.f32 %v1608, %v1632
        %v1641 = vadd.f32 %v1609, %v1633
        %v1642 = vadd.f32 %v1610, %v1634
        %v1643 = vadd.f32 %v1611, %v1635
        %v1644 = vadd.f32 %v1612, %v1636
        %v1645 = vadd.f32 %v1613, %v1637
        %v1646 = vadd.f32 %v1614, %v1638
        %1647 = vrot.lane.b32.xlu0 %v686, 127
        %v1648 = vpop.permute.xlu0 %1647
        %1649 = vrot.lane.b32.xlu0 %v688, 127
        %v1650 = vpop.permute.xlu0 %1649
        %1651 = vrot.lane.b32.xlu0 %v690, 127
        %v1652 = vpop.permute.xlu0 %1651
        %1653 = vrot.lane.b32.xlu0 %v692, 127
        %v1654 = vpop.permute.xlu0 %1653
        %1655 = vrot.lane.b32.xlu0 %v687, 127
        %v1656 = vpop.permute.xlu0 %1655
        %1657 = vrot.lane.b32.xlu0 %v689, 127
        %v1658 = vpop.permute.xlu0 %1657
        %1659 = vrot.lane.b32.xlu0 %v691, 127
        %v1660 = vpop.permute.xlu0 %1659
        %1661 = vrot.lane.b32.xlu0 %v693, 127
        %v1662 = vpop.permute.xlu0 %1661
        %v1663 = vsel %vm455, %v1648, %v1656
        %v1664 = vsel %vm455, %v1650, %v1658
        %v1665 = vsel %vm455, %v1652, %v1660
        %v1666 = vsel %vm455, %v1654, %v1662
        %v1667 = vsel %vm455, %v1656, %v1648
        %v1668 = vsel %vm455, %v1658, %v1650
        %v1669 = vsel %vm455, %v1660, %v1652
        %v1670 = vsel %vm455, %v1662, %v1654
        %v1671 = vsel %vm1080, %v1483, %v1663
        %v1672 = vsel %vm1081, %v1479, %v1667
        %v1673 = vsel %vm1080, %v1484, %v1664
        %v1674 = vsel %vm1081, %v1480, %v1668
        %v1675 = vsel %vm1080, %v1485, %v1665
        %v1676 = vsel %vm1081, %v1481, %v1669
        %v1677 = vsel %vm1080, %v1486, %v1666
        %v1678 = vsel %vm1081, %v1482, %v1670
        %1679 = vset.pattern.permute.xlu0 5
        %1680 = vperm.xlu0 %1679, %v698
        %v1681 = vpop.permute.xlu0 %1680
        %1683 = vset.pattern.permute.xlu0 5
        %1684 = vperm.xlu0 %1683, %v699
        %v1685 = vpop.permute.xlu0 %1684
        %1687 = vset.pattern.permute.xlu0 5
        %1688 = vperm.xlu0 %1687, %v700
        %v1689 = vpop.permute.xlu0 %1688
        %1691 = vset.pattern.permute.xlu0 5
        %1692 = vperm.xlu0 %1691, %v701
        %v1693 = vpop.permute.xlu0 %1692
        %v1695 = vmul.f32 %v1681, %v1671
        %v1696 = vmul.f32 %v1681, %v1672
        %v1697 = vmul.f32 %v1685, %v1673
        %v1698 = vmul.f32 %v1685, %v1674
        %v1699 = vmul.f32 %v1689, %v1675
        %v1700 = vmul.f32 %v1689, %v1676
        %v1701 = vmul.f32 %v1693, %v1677
        %v1702 = vmul.f32 %v1693, %v1678
        %v1703 = vadd.f32 %v1639, %v1695
        %v1704 = vadd.f32 %v1640, %v1696
        %v1705 = vadd.f32 %v1641, %v1697
        %v1706 = vadd.f32 %v1642, %v1698
        %v1707 = vadd.f32 %v1643, %v1699
        %v1708 = vadd.f32 %v1644, %v1700
        %v1709 = vadd.f32 %v1645, %v1701
        %v1710 = vadd.f32 %v1646, %v1702
        %1711 = vrot.lane.b32.xlu0 %v686, 97
        %v1712 = vpop.permute.xlu0 %1711
        %1713 = vrot.lane.b32.xlu0 %v688, 97
        %v1714 = vpop.permute.xlu0 %1713
        %1715 = vrot.lane.b32.xlu0 %v690, 97
        %v1716 = vpop.permute.xlu0 %1715
        %1717 = vrot.lane.b32.xlu0 %v692, 97
        %v1718 = vpop.permute.xlu0 %1717
        %1719 = vrot.lane.b32.xlu0 %v687, 97
        %v1720 = vpop.permute.xlu0 %1719
        %1721 = vrot.lane.b32.xlu0 %v689, 97
        %v1722 = vpop.permute.xlu0 %1721
        %1723 = vrot.lane.b32.xlu0 %v691, 97
        %v1724 = vpop.permute.xlu0 %1723
        %1725 = vrot.lane.b32.xlu0 %v693, 97
        %v1726 = vpop.permute.xlu0 %1725
        %v1727 = vsel %vm1138, %v1712, %v1720
        %v1728 = vsel %vm1138, %v1714, %v1722
        %v1729 = vsel %vm1138, %v1716, %v1724
        %v1730 = vsel %vm1138, %v1718, %v1726
        %v1731 = vsel %vm1138, %v1720, %v1712
        %v1732 = vsel %vm1138, %v1722, %v1714
        %v1733 = vsel %vm1138, %v1724, %v1716
        %v1734 = vsel %vm1138, %v1726, %v1718
        %v1735 = vsel %vm1153, %v1727, %v1567
        %v1736 = vsel %vm1154, %v1731, %v1571
        %v1737 = vsel %vm1153, %v1728, %v1568
        %v1738 = vsel %vm1154, %v1732, %v1572
        %v1739 = vsel %vm1153, %v1729, %v1569
        %v1740 = vsel %vm1154, %v1733, %v1573
        %v1741 = vsel %vm1153, %v1730, %v1570
        %v1742 = vsel %vm1154, %v1734, %v1574
        %1743 = vset.pattern.permute.xlu0 6
        %1744 = vperm.xlu0 %1743, %v698
        %v1745 = vpop.permute.xlu0 %1744
        %1747 = vset.pattern.permute.xlu0 6
        %1748 = vperm.xlu0 %1747, %v699
        %v1749 = vpop.permute.xlu0 %1748
        %1751 = vset.pattern.permute.xlu0 6
        %1752 = vperm.xlu0 %1751, %v700
        %v1753 = vpop.permute.xlu0 %1752
        %1755 = vset.pattern.permute.xlu0 6
        %1756 = vperm.xlu0 %1755, %v701
        %v1757 = vpop.permute.xlu0 %1756
        %v1759 = vmul.f32 %v1745, %v1735
        %v1760 = vmul.f32 %v1745, %v1736
        %v1761 = vmul.f32 %v1749, %v1737
        %v1762 = vmul.f32 %v1749, %v1738
        %v1763 = vmul.f32 %v1753, %v1739
        %v1764 = vmul.f32 %v1753, %v1740
        %v1765 = vmul.f32 %v1757, %v1741
        %v1766 = vmul.f32 %v1757, %v1742
        %v1767 = vadd.f32 %v1703, %v1759
        %v1768 = vadd.f32 %v1704, %v1760
        %v1769 = vadd.f32 %v1705, %v1761
        %v1770 = vadd.f32 %v1706, %v1762
        %v1771 = vadd.f32 %v1707, %v1763
        %v1772 = vadd.f32 %v1708, %v1764
        %v1773 = vadd.f32 %v1709, %v1765
        %v1774 = vadd.f32 %v1710, %v1766
        %1775 = vrot.lane.b32.xlu0 %v686, 112
        %v1776 = vpop.permute.xlu0 %1775
        %1777 = vrot.lane.b32.xlu0 %v688, 112
        %v1778 = vpop.permute.xlu0 %1777
        %1779 = vrot.lane.b32.xlu0 %v690, 112
        %v1780 = vpop.permute.xlu0 %1779
        %1781 = vrot.lane.b32.xlu0 %v692, 112
        %v1782 = vpop.permute.xlu0 %1781
        %1783 = vrot.lane.b32.xlu0 %v687, 112
        %v1784 = vpop.permute.xlu0 %1783
        %1785 = vrot.lane.b32.xlu0 %v689, 112
        %v1786 = vpop.permute.xlu0 %1785
        %1787 = vrot.lane.b32.xlu0 %v691, 112
        %v1788 = vpop.permute.xlu0 %1787
        %1789 = vrot.lane.b32.xlu0 %v693, 112
        %v1790 = vpop.permute.xlu0 %1789
        %v1791 = vsel %vm487, %v1776, %v1784
        %v1792 = vsel %vm487, %v1778, %v1786
        %v1793 = vsel %vm487, %v1780, %v1788
        %v1794 = vsel %vm487, %v1782, %v1790
        %v1795 = vsel %vm487, %v1784, %v1776
        %v1796 = vsel %vm487, %v1786, %v1778
        %v1797 = vsel %vm487, %v1788, %v1780
        %v1798 = vsel %vm487, %v1790, %v1782
        %1799 = vset.pattern.permute.xlu0 7
        %1800 = vperm.xlu0 %1799, %v698
        %v1801 = vpop.permute.xlu0 %1800
        %1803 = vset.pattern.permute.xlu0 7
        %1804 = vperm.xlu0 %1803, %v699
        %v1805 = vpop.permute.xlu0 %1804
        %1807 = vset.pattern.permute.xlu0 7
        %1808 = vperm.xlu0 %1807, %v700
        %v1809 = vpop.permute.xlu0 %1808
        %1811 = vset.pattern.permute.xlu0 7
        %1812 = vperm.xlu0 %1811, %v701
        %v1813 = vpop.permute.xlu0 %1812
        %v1815 = vmul.f32 %v1801, %v1791
        %v1816 = vmul.f32 %v1801, %v1795
        %v1817 = vmul.f32 %v1805, %v1792
        %v1818 = vmul.f32 %v1805, %v1796
        %v1819 = vmul.f32 %v1809, %v1793
        %v1820 = vmul.f32 %v1809, %v1797
        %v1821 = vmul.f32 %v1813, %v1794
        %v1822 = vmul.f32 %v1813, %v1798
        %v1823 = vadd.f32 %v1767, %v1815
        %v1824 = vadd.f32 %v1768, %v1816
        %v1825 = vadd.f32 %v1769, %v1817
        %v1826 = vadd.f32 %v1770, %v1818
        %v1827 = vadd.f32 %v1771, %v1819
        %v1828 = vadd.f32 %v1772, %v1820
        %v1829 = vadd.f32 %v1773, %v1821
        %v1830 = vadd.f32 %v1774, %v1822
        %1831 = vrot.lane.b32.xlu0 %v686, 111
        %v1832 = vpop.permute.xlu0 %1831
        %1833 = vrot.lane.b32.xlu0 %v688, 111
        %v1834 = vpop.permute.xlu0 %1833
        %1835 = vrot.lane.b32.xlu0 %v690, 111
        %v1836 = vpop.permute.xlu0 %1835
        %1837 = vrot.lane.b32.xlu0 %v692, 111
        %v1838 = vpop.permute.xlu0 %1837
        %1839 = vrot.lane.b32.xlu0 %v687, 111
        %v1840 = vpop.permute.xlu0 %1839
        %1841 = vrot.lane.b32.xlu0 %v689, 111
        %v1842 = vpop.permute.xlu0 %1841
        %1843 = vrot.lane.b32.xlu0 %v691, 111
        %v1844 = vpop.permute.xlu0 %1843
        %1845 = vrot.lane.b32.xlu0 %v693, 111
        %v1846 = vpop.permute.xlu0 %1845
        %v1847 = vsel %vm503, %v1832, %v1840
        %v1848 = vsel %vm503, %v1834, %v1842
        %v1849 = vsel %vm503, %v1836, %v1844
        %v1850 = vsel %vm503, %v1838, %v1846
        %v1851 = vsel %vm503, %v1840, %v1832
        %v1852 = vsel %vm503, %v1842, %v1834
        %v1853 = vsel %vm503, %v1844, %v1836
        %v1854 = vsel %vm503, %v1846, %v1838
        %v1855 = vsel %vm1281, %v1663, %v1847
        %v1856 = vsel %vm1282, %v1667, %v1851
        %v1857 = vsel %vm1281, %v1664, %v1848
        %v1858 = vsel %vm1282, %v1668, %v1852
        %v1859 = vsel %vm1281, %v1665, %v1849
        %v1860 = vsel %vm1282, %v1669, %v1853
        %v1861 = vsel %vm1281, %v1666, %v1850
        %v1862 = vsel %vm1282, %v1670, %v1854
        %1863 = vset.pattern.permute.xlu0 8
        %1864 = vperm.xlu0 %1863, %v698
        %v1865 = vpop.permute.xlu0 %1864
        %1867 = vset.pattern.permute.xlu0 8
        %1868 = vperm.xlu0 %1867, %v699
        %v1869 = vpop.permute.xlu0 %1868
        %1871 = vset.pattern.permute.xlu0 8
        %1872 = vperm.xlu0 %1871, %v700
        %v1873 = vpop.permute.xlu0 %1872
        %1875 = vset.pattern.permute.xlu0 8
        %1876 = vperm.xlu0 %1875, %v701
        %v1877 = vpop.permute.xlu0 %1876
        %v1879 = vmul.f32 %v1865, %v1855
        %v1880 = vmul.f32 %v1865, %v1856
        %v1881 = vmul.f32 %v1869, %v1857
        %v1882 = vmul.f32 %v1869, %v1858
        %v1883 = vmul.f32 %v1873, %v1859
        %v1884 = vmul.f32 %v1873, %v1860
        %v1885 = vmul.f32 %v1877, %v1861
        %v1886 = vmul.f32 %v1877, %v1862
        %v1887 = vadd.f32 %v1823, %v1879
        %v1888 = vadd.f32 %v1824, %v1880
        %v1889 = vadd.f32 %v1825, %v1881
        %v1890 = vadd.f32 %v1826, %v1882
        %v1891 = vadd.f32 %v1827, %v1883
        %v1892 = vadd.f32 %v1828, %v1884
        %v1893 = vadd.f32 %v1829, %v1885
        %v1894 = vadd.f32 %v1830, %v1886
        %v1895 = vld [vmem:[%s6] sm:$0xff]
        %v1896 = vld [vmem:[%s6 + $0x8] sm:$0xff]
        %v1897 = vld [vmem:[%s6 + $0x10] sm:$0xff]
        %v1898 = vld [vmem:[%s6 + $0x18] sm:$0xff]
        %v1899 = vld [vmem:[%s6 + $0x20] sm:$0xff]
        %v1900 = vld [vmem:[%s6 + $0x28] sm:$0xff]
        %v1901 = vld [vmem:[%s6 + $0x30] sm:$0xff]
        %v1902 = vld [vmem:[%s6 + $0x38] sm:$0xff]
        %v1903 = vld [vmem:[%s7] sm:$0xff]
        %v1904 = vld [vmem:[%s7 + $0x8] sm:$0xff]
        %v1905 = vld [vmem:[%s7 + $0x10] sm:$0xff]
        %v1906 = vld [vmem:[%s7 + $0x18] sm:$0xff]
        %v1907 = vld [vmem:[%s7 + $0x20] sm:$0xff]
        %v1908 = vld [vmem:[%s7 + $0x28] sm:$0xff]
        %v1909 = vld [vmem:[%s7 + $0x30] sm:$0xff]
        %v1910 = vld [vmem:[%s7 + $0x38] sm:$0xff]
        %1912 = vset.pattern.permute.xlu0 0
        %1913 = vperm.xlu0 %1912, %v1903
        %v1914 = vpop.permute.xlu0 %1913
        %1917 = vset.pattern.permute.xlu0 0
        %1918 = vperm.xlu0 %1917, %v1904
        %v1919 = vpop.permute.xlu0 %1918
        %1922 = vset.pattern.permute.xlu0 0
        %1923 = vperm.xlu0 %1922, %v1905
        %v1924 = vpop.permute.xlu0 %1923
        %1927 = vset.pattern.permute.xlu0 0
        %1928 = vperm.xlu0 %1927, %v1906
        %v1929 = vpop.permute.xlu0 %1928
        %1932 = vset.pattern.permute.xlu0 0
        %1933 = vperm.xlu0 %1932, %v1907
        %v1934 = vpop.permute.xlu0 %1933
        %1937 = vset.pattern.permute.xlu0 0
        %1938 = vperm.xlu0 %1937, %v1908
        %v1939 = vpop.permute.xlu0 %1938
        %1942 = vset.pattern.permute.xlu0 0
        %1943 = vperm.xlu0 %1942, %v1909
        %v1944 = vpop.permute.xlu0 %1943
        %1947 = vset.pattern.permute.xlu0 0
        %1948 = vperm.xlu0 %1947, %v1910
        %v1949 = vpop.permute.xlu0 %1948
        %vm1951 = vcmask 523264
        %v1953 = vsel %vm1951, %v1895, 0
        %v1956 = vsel %vm1951, %v1896, 0
        %v1959 = vsel %vm1951, %v1897, 0
        %v1962 = vsel %vm1951, %v1898, 0
        %v1965 = vsel %vm1951, %v1899, 0
        %v1968 = vsel %vm1951, %v1900, 0
        %v1971 = vsel %vm1951, %v1901, 0
        %v1974 = vsel %vm1951, %v1902, 0
        %1976 = vmatpush.msra.mxu0 0.0
        %1977 = vmatpush.msra.mxu0 0.0
        %1978 = vmatpush.msra.mxu0 0.0
        %1979 = vmatpush.msra.mxu0 0.0
        %1980 = vmatpush.msra.mxu0 0.0
        %1981 = vmatpush.msra.mxu0 0.0
        %1982 = vmatpush.msra.mxu0 0.0
        %1983 = vmatpush.msra.mxu0 0.0
        %1984 = vmatpush.msra.mxu0 %v1893
        %1985 = vmatpush.msra.mxu0 %v1891
        %1986 = vmatpush.msra.mxu0 %v1889
        %1987 = vmatpush.msra.mxu0 %v1887
        %1988 = vmatpush.msra.mxu0 %v1321
        %1989 = vmatpush.msra.mxu0 %v1319
        %1990 = vmatpush.msra.mxu0 %v1317
        %1991 = vmatpush.msra.mxu0 %v1315
        %1992 = vmatmul.f32.gmra.mxu0 %v1953
        %v1993 = vpop.f32.mrf.mxu0
        %v1994 = vadd.f32 %v1914, %v1993
        %1995 = vmatmul.f32.gmra.mxu0 %v1956
        %v1996 = vpop.f32.mrf.mxu0
        %v1997 = vadd.f32 %v1919, %v1996
        %1998 = vmatmul.f32.gmra.mxu0 %v1959
        %v1999 = vpop.f32.mrf.mxu0
        %v2000 = vadd.f32 %v1924, %v1999
        %2001 = vmatmul.f32.gmra.mxu0 %v1962
        %v2002 = vpop.f32.mrf.mxu0
        %v2003 = vadd.f32 %v1929, %v2002
        %2004 = vmatmul.f32.gmra.mxu0 %v1965
        %v2005 = vpop.f32.mrf.mxu0
        %v2006 = vadd.f32 %v1934, %v2005
        %2007 = vmatmul.f32.gmra.mxu0 %v1968
        %v2008 = vpop.f32.mrf.mxu0
        %v2009 = vadd.f32 %v1939, %v2008
        %2010 = vmatmul.f32.gmra.mxu0 %v1971
        %v2011 = vpop.f32.mrf.mxu0
        %v2012 = vadd.f32 %v1944, %v2011
        %2013 = vmatmul.f32.gmra.mxu0 %v1974
        %v2014 = vpop.f32.mrf.mxu0
        %v2015 = vadd.f32 %v1949, %v2014
        %2016 = vdwg.mxu0
        %2017 = vmatpush.msra.mxu0 0.0
        %2018 = vmatpush.msra.mxu0 0.0
        %2019 = vmatpush.msra.mxu0 0.0
        %2020 = vmatpush.msra.mxu0 0.0
        %2021 = vmatpush.msra.mxu0 0.0
        %2022 = vmatpush.msra.mxu0 0.0
        %2023 = vmatpush.msra.mxu0 0.0
        %2024 = vmatpush.msra.mxu0 0.0
        %2025 = vmatpush.msra.mxu0 %v1894
        %2026 = vmatpush.msra.mxu0 %v1892
        %2027 = vmatpush.msra.mxu0 %v1890
        %2028 = vmatpush.msra.mxu0 %v1888
        %2029 = vmatpush.msra.mxu0 %v1322
        %2030 = vmatpush.msra.mxu0 %v1320
        %2031 = vmatpush.msra.mxu0 %v1318
        %2032 = vmatpush.msra.mxu0 %v1316
        %2033 = vmatmul.f32.gmra.mxu0 %v1953
        %v2034 = vpop.f32.mrf.mxu0
        %v2035 = vadd.f32 %v1914, %v2034
        %2036 = vmatmul.f32.gmra.mxu0 %v1956
        %v2037 = vpop.f32.mrf.mxu0
        %v2038 = vadd.f32 %v1919, %v2037
        %2039 = vmatmul.f32.gmra.mxu0 %v1959
        %v2040 = vpop.f32.mrf.mxu0
        %v2041 = vadd.f32 %v1924, %v2040
        %2042 = vmatmul.f32.gmra.mxu0 %v1962
        %v2043 = vpop.f32.mrf.mxu0
        %v2044 = vadd.f32 %v1929, %v2043
        %2045 = vmatmul.f32.gmra.mxu0 %v1965
        %v2046 = vpop.f32.mrf.mxu0
        %v2047 = vadd.f32 %v1934, %v2046
        %2048 = vmatmul.f32.gmra.mxu0 %v1968
        %v2049 = vpop.f32.mrf.mxu0
        %v2050 = vadd.f32 %v1939, %v2049
        %2051 = vmatmul.f32.gmra.mxu0 %v1971
        %v2052 = vpop.f32.mrf.mxu0
        %v2053 = vadd.f32 %v1944, %v2052
        %2054 = vmatmul.f32.gmra.mxu0 %v1974
        %v2055 = vpop.f32.mrf.mxu0
        %v2056 = vadd.f32 %v1949, %v2055
        %2057 = vdwg.mxu0
        %v2058 = vmax.f32 %v1994, 0.0
        %v2059 = vmax.f32 %v2035, 0.0
        %v2060 = vmax.f32 %v1997, 0.0
        %v2061 = vmax.f32 %v2038, 0.0
        %v2062 = vmax.f32 %v2000, 0.0
        %v2063 = vmax.f32 %v2041, 0.0
        %v2064 = vmax.f32 %v2003, 0.0
        %v2065 = vmax.f32 %v2044, 0.0
        %v2066 = vmax.f32 %v2006, 0.0
        %v2067 = vmax.f32 %v2047, 0.0
        %v2068 = vmax.f32 %v2009, 0.0
        %v2069 = vmax.f32 %v2050, 0.0
        %v2070 = vmax.f32 %v2012, 0.0
        %v2071 = vmax.f32 %v2053, 0.0
        %v2072 = vmax.f32 %v2015, 0.0
        %v2073 = vmax.f32 %v2056, 0.0
        %v2074 = vadd.f32 %v2058, %v678
        %v2075 = vadd.f32 %v2059, %v679
        %v2076 = vadd.f32 %v2060, %v680
        %v2077 = vadd.f32 %v2061, %v681
        %v2078 = vadd.f32 %v2062, %v682
        %v2079 = vadd.f32 %v2063, %v683
        %v2080 = vadd.f32 %v2064, %v684
        %v2081 = vadd.f32 %v2065, %v685
        %v2082 = vadd.f32 %v2066, %v686
        %v2083 = vadd.f32 %v2067, %v687
        %v2084 = vadd.f32 %v2068, %v688
        %v2085 = vadd.f32 %v2069, %v689
        %v2086 = vadd.f32 %v2070, %v690
        %v2087 = vadd.f32 %v2071, %v691
        %v2088 = vadd.f32 %v2072, %v692
        %v2089 = vadd.f32 %v2073, %v693
        %s2090 = scalar_lea.vmem %s5, 64
        %v2091 = vld [vmem:[%s2090] sm:$0xff]
        %v2092 = vld [vmem:[%s2090 + $0x8] sm:$0xff]
        %v2093 = vld [vmem:[%s2090 + $0x10] sm:$0xff]
        %v2094 = vld [vmem:[%s2090 + $0x18] sm:$0xff]
        %v2095 = vld [vmem:[%s2090 + $0x20] sm:$0xff]
        %v2096 = vld [vmem:[%s2090 + $0x28] sm:$0xff]
        %v2097 = vld [vmem:[%s2090 + $0x30] sm:$0xff]
        %v2098 = vld [vmem:[%s2090 + $0x38] sm:$0xff]
        %2099 = vrot.lane.b32.xlu0 %v2074, 17
        %v2100 = vpop.permute.xlu0 %2099
        %2101 = vrot.lane.b32.xlu0 %v2076, 17
        %v2102 = vpop.permute.xlu0 %2101
        %2103 = vrot.lane.b32.xlu0 %v2078, 17
        %v2104 = vpop.permute.xlu0 %2103
        %2105 = vrot.lane.b32.xlu0 %v2080, 17
        %v2106 = vpop.permute.xlu0 %2105
        %2107 = vrot.lane.b32.xlu0 %v2075, 17
        %v2108 = vpop.permute.xlu0 %2107
        %2109 = vrot.lane.b32.xlu0 %v2077, 17
        %v2110 = vpop.permute.xlu0 %2109
        %2111 = vrot.lane.b32.xlu0 %v2079, 17
        %v2112 = vpop.permute.xlu0 %2111
        %2113 = vrot.lane.b32.xlu0 %v2081, 17
        %v2114 = vpop.permute.xlu0 %2113
        %v2115 = vsel %vm383, %v2100, %v2108
        %v2116 = vsel %vm383, %v2102, %v2110
        %v2117 = vsel %vm383, %v2104, %v2112
        %v2118 = vsel %vm383, %v2106, %v2114
        %v2119 = vsel %vm383, %v2108, %v2100
        %v2120 = vsel %vm383, %v2110, %v2102
        %v2121 = vsel %vm383, %v2112, %v2104
        %v2122 = vsel %vm383, %v2114, %v2106
        %2123 = vrot.lane.b32.xlu0 %v2074, 1
        %v2124 = vpop.permute.xlu0 %2123
        %2125 = vrot.lane.b32.xlu0 %v2076, 1
        %v2126 = vpop.permute.xlu0 %2125
        %2127 = vrot.lane.b32.xlu0 %v2078, 1
        %v2128 = vpop.permute.xlu0 %2127
        %2129 = vrot.lane.b32.xlu0 %v2080, 1
        %v2130 = vpop.permute.xlu0 %2129
        %2131 = vrot.lane.b32.xlu0 %v2075, 1
        %v2132 = vpop.permute.xlu0 %2131
        %2133 = vrot.lane.b32.xlu0 %v2077, 1
        %v2134 = vpop.permute.xlu0 %2133
        %2135 = vrot.lane.b32.xlu0 %v2079, 1
        %v2136 = vpop.permute.xlu0 %2135
        %2137 = vrot.lane.b32.xlu0 %v2081, 1
        %v2138 = vpop.permute.xlu0 %2137
        %v2139 = vsel %vm430, %v2124, %v2132
        %v2140 = vsel %vm430, %v2126, %v2134
        %v2141 = vsel %vm430, %v2128, %v2136
        %v2142 = vsel %vm430, %v2130, %v2138
        %v2143 = vsel %vm430, %v2132, %v2124
        %v2144 = vsel %vm430, %v2134, %v2126
        %v2145 = vsel %vm430, %v2136, %v2128
        %v2146 = vsel %vm430, %v2138, %v2130
        %v2147 = vsel %vm755, %v2143, %v2119
        %v2148 = vsel %vm756, %v2139, %v2115
        %v2149 = vsel %vm755, %v2144, %v2120
        %v2150 = vsel %vm756, %v2140, %v2116
        %v2151 = vsel %vm755, %v2145, %v2121
        %v2152 = vsel %vm756, %v2141, %v2117
        %v2153 = vsel %vm755, %v2146, %v2122
        %v2154 = vsel %vm756, %v2142, %v2118
        %2156 = vset.pattern.permute.xlu0 0
        %2157 = vperm.xlu0 %2156, %v2091
        %v2158 = vpop.permute.xlu0 %2157
        %2161 = vset.pattern.permute.xlu0 0
        %2162 = vperm.xlu0 %2161, %v2092
        %v2163 = vpop.permute.xlu0 %2162
        %2166 = vset.pattern.permute.xlu0 0
        %2167 = vperm.xlu0 %2166, %v2093
        %v2168 = vpop.permute.xlu0 %2167
        %2171 = vset.pattern.permute.xlu0 0
        %2172 = vperm.xlu0 %2171, %v2094
        %v2173 = vpop.permute.xlu0 %2172
        %v2175 = vmul.f32 %v2158, %v2147
        %v2176 = vmul.f32 %v2158, %v2148
        %v2177 = vmul.f32 %v2163, %v2149
        %v2178 = vmul.f32 %v2163, %v2150
        %v2179 = vmul.f32 %v2168, %v2151
        %v2180 = vmul.f32 %v2168, %v2152
        %v2181 = vmul.f32 %v2173, %v2153
        %v2182 = vmul.f32 %v2173, %v2154
        %2183 = vrot.lane.b32.xlu0 %v2074, 16
        %v2184 = vpop.permute.xlu0 %2183
        %2185 = vrot.lane.b32.xlu0 %v2076, 16
        %v2186 = vpop.permute.xlu0 %2185
        %2187 = vrot.lane.b32.xlu0 %v2078, 16
        %v2188 = vpop.permute.xlu0 %2187
        %2189 = vrot.lane.b32.xlu0 %v2080, 16
        %v2190 = vpop.permute.xlu0 %2189
        %2191 = vrot.lane.b32.xlu0 %v2075, 16
        %v2192 = vpop.permute.xlu0 %2191
        %2193 = vrot.lane.b32.xlu0 %v2077, 16
        %v2194 = vpop.permute.xlu0 %2193
        %2195 = vrot.lane.b32.xlu0 %v2079, 16
        %v2196 = vpop.permute.xlu0 %2195
        %2197 = vrot.lane.b32.xlu0 %v2081, 16
        %v2198 = vpop.permute.xlu0 %2197
        %v2199 = vsel %vm398, %v2184, %v2192
        %v2200 = vsel %vm398, %v2186, %v2194
        %v2201 = vsel %vm398, %v2188, %v2196
        %v2202 = vsel %vm398, %v2190, %v2198
        %v2203 = vsel %vm398, %v2192, %v2184
        %v2204 = vsel %vm398, %v2194, %v2186
        %v2205 = vsel %vm398, %v2196, %v2188
        %v2206 = vsel %vm398, %v2198, %v2190
        %2207 = vset.pattern.permute.xlu0 1
        %2208 = vperm.xlu0 %2207, %v2091
        %v2209 = vpop.permute.xlu0 %2208
        %2211 = vset.pattern.permute.xlu0 1
        %2212 = vperm.xlu0 %2211, %v2092
        %v2213 = vpop.permute.xlu0 %2212
        %2215 = vset.pattern.permute.xlu0 1
        %2216 = vperm.xlu0 %2215, %v2093
        %v2217 = vpop.permute.xlu0 %2216
        %2219 = vset.pattern.permute.xlu0 1
        %2220 = vperm.xlu0 %2219, %v2094
        %v2221 = vpop.permute.xlu0 %2220
        %v2223 = vmul.f32 %v2209, %v2203
        %v2224 = vmul.f32 %v2209, %v2199
        %v2225 = vmul.f32 %v2213, %v2204
        %v2226 = vmul.f32 %v2213, %v2200
        %v2227 = vmul.f32 %v2217, %v2205
        %v2228 = vmul.f32 %v2217, %v2201
        %v2229 = vmul.f32 %v2221, %v2206
        %v2230 = vmul.f32 %v2221, %v2202
        %v2231 = vadd.f32 %v2175, %v2223
        %v2232 = vadd.f32 %v2176, %v2224
        %v2233 = vadd.f32 %v2177, %v2225
        %v2234 = vadd.f32 %v2178, %v2226
        %v2235 = vadd.f32 %v2179, %v2227
        %v2236 = vadd.f32 %v2180, %v2228
        %v2237 = vadd.f32 %v2181, %v2229
        %v2238 = vadd.f32 %v2182, %v2230
        %2239 = vrot.lane.b32.xlu0 %v2074, 15
        %v2240 = vpop.permute.xlu0 %2239
        %2241 = vrot.lane.b32.xlu0 %v2076, 15
        %v2242 = vpop.permute.xlu0 %2241
        %2243 = vrot.lane.b32.xlu0 %v2078, 15
        %v2244 = vpop.permute.xlu0 %2243
        %2245 = vrot.lane.b32.xlu0 %v2080, 15
        %v2246 = vpop.permute.xlu0 %2245
        %2247 = vrot.lane.b32.xlu0 %v2075, 15
        %v2248 = vpop.permute.xlu0 %2247
        %2249 = vrot.lane.b32.xlu0 %v2077, 15
        %v2250 = vpop.permute.xlu0 %2249
        %2251 = vrot.lane.b32.xlu0 %v2079, 15
        %v2252 = vpop.permute.xlu0 %2251
        %2253 = vrot.lane.b32.xlu0 %v2081, 15
        %v2254 = vpop.permute.xlu0 %2253
        %v2255 = vsel %vm414, %v2240, %v2248
        %v2256 = vsel %vm414, %v2242, %v2250
        %v2257 = vsel %vm414, %v2244, %v2252
        %v2258 = vsel %vm414, %v2246, %v2254
        %v2259 = vsel %vm414, %v2248, %v2240
        %v2260 = vsel %vm414, %v2250, %v2242
        %v2261 = vsel %vm414, %v2252, %v2244
        %v2262 = vsel %vm414, %v2254, %v2246
        %2263 = vrot.lane.b32.xlu0 %v2074, 31
        %v2264 = vpop.permute.xlu0 %2263
        %2265 = vrot.lane.b32.xlu0 %v2076, 31
        %v2266 = vpop.permute.xlu0 %2265
        %2267 = vrot.lane.b32.xlu0 %v2078, 31
        %v2268 = vpop.permute.xlu0 %2267
        %2269 = vrot.lane.b32.xlu0 %v2080, 31
        %v2270 = vpop.permute.xlu0 %2269
        %2271 = vrot.lane.b32.xlu0 %v2075, 31
        %v2272 = vpop.permute.xlu0 %2271
        %2273 = vrot.lane.b32.xlu0 %v2077, 31
        %v2274 = vpop.permute.xlu0 %2273
        %2275 = vrot.lane.b32.xlu0 %v2079, 31
        %v2276 = vpop.permute.xlu0 %2275
        %2277 = vrot.lane.b32.xlu0 %v2081, 31
        %v2278 = vpop.permute.xlu0 %2277
        %v2279 = vsel %vm889, %v2264, %v2272
        %v2280 = vsel %vm889, %v2266, %v2274
        %v2281 = vsel %vm889, %v2268, %v2276
        %v2282 = vsel %vm889, %v2270, %v2278
        %v2283 = vsel %vm889, %v2272, %v2264
        %v2284 = vsel %vm889, %v2274, %v2266
        %v2285 = vsel %vm889, %v2276, %v2268
        %v2286 = vsel %vm889, %v2278, %v2270
        %v2287 = vsel %vm904, %v2283, %v2259
        %v2288 = vsel %vm905, %v2279, %v2255
        %v2289 = vsel %vm904, %v2284, %v2260
        %v2290 = vsel %vm905, %v2280, %v2256
        %v2291 = vsel %vm904, %v2285, %v2261
        %v2292 = vsel %vm905, %v2281, %v2257
        %v2293 = vsel %vm904, %v2286, %v2262
        %v2294 = vsel %vm905, %v2282, %v2258
        %2295 = vset.pattern.permute.xlu0 2
        %2296 = vperm.xlu0 %2295, %v2091
        %v2297 = vpop.permute.xlu0 %2296
        %2299 = vset.pattern.permute.xlu0 2
        %2300 = vperm.xlu0 %2299, %v2092
        %v2301 = vpop.permute.xlu0 %2300
        %2303 = vset.pattern.permute.xlu0 2
        %2304 = vperm.xlu0 %2303, %v2093
        %v2305 = vpop.permute.xlu0 %2304
        %2307 = vset.pattern.permute.xlu0 2
        %2308 = vperm.xlu0 %2307, %v2094
        %v2309 = vpop.permute.xlu0 %2308
        %v2311 = vmul.f32 %v2297, %v2287
        %v2312 = vmul.f32 %v2297, %v2288
        %v2313 = vmul.f32 %v2301, %v2289
        %v2314 = vmul.f32 %v2301, %v2290
        %v2315 = vmul.f32 %v2305, %v2291
        %v2316 = vmul.f32 %v2305, %v2292
        %v2317 = vmul.f32 %v2309, %v2293
        %v2318 = vmul.f32 %v2309, %v2294
        %v2319 = vadd.f32 %v2231, %v2311
        %v2320 = vadd.f32 %v2232, %v2312
        %v2321 = vadd.f32 %v2233, %v2313
        %v2322 = vadd.f32 %v2234, %v2314
        %v2323 = vadd.f32 %v2235, %v2315
        %v2324 = vadd.f32 %v2236, %v2316
        %v2325 = vadd.f32 %v2237, %v2317
        %v2326 = vadd.f32 %v2238, %v2318
        %2327 = vrot.lane.b32.xlu0 %v2074, 113
        %v2328 = vpop.permute.xlu0 %2327
        %2329 = vrot.lane.b32.xlu0 %v2076, 113
        %v2330 = vpop.permute.xlu0 %2329
        %2331 = vrot.lane.b32.xlu0 %v2078, 113
        %v2332 = vpop.permute.xlu0 %2331
        %2333 = vrot.lane.b32.xlu0 %v2080, 113
        %v2334 = vpop.permute.xlu0 %2333
        %2335 = vrot.lane.b32.xlu0 %v2075, 113
        %v2336 = vpop.permute.xlu0 %2335
        %2337 = vrot.lane.b32.xlu0 %v2077, 113
        %v2338 = vpop.permute.xlu0 %2337
        %2339 = vrot.lane.b32.xlu0 %v2079, 113
        %v2340 = vpop.permute.xlu0 %2339
        %2341 = vrot.lane.b32.xlu0 %v2081, 113
        %v2342 = vpop.permute.xlu0 %2341
        %v2343 = vsel %vm471, %v2328, %v2336
        %v2344 = vsel %vm471, %v2330, %v2338
        %v2345 = vsel %vm471, %v2332, %v2340
        %v2346 = vsel %vm471, %v2334, %v2342
        %v2347 = vsel %vm471, %v2336, %v2328
        %v2348 = vsel %vm471, %v2338, %v2330
        %v2349 = vsel %vm471, %v2340, %v2332
        %v2350 = vsel %vm471, %v2342, %v2334
        %v2351 = vsel %vm976, %v2343, %v2143
        %v2352 = vsel %vm977, %v2347, %v2139
        %v2353 = vsel %vm976, %v2344, %v2144
        %v2354 = vsel %vm977, %v2348, %v2140
        %v2355 = vsel %vm976, %v2345, %v2145
        %v2356 = vsel %vm977, %v2349, %v2141
        %v2357 = vsel %vm976, %v2346, %v2146
        %v2358 = vsel %vm977, %v2350, %v2142
        %2359 = vset.pattern.permute.xlu0 3
        %2360 = vperm.xlu0 %2359, %v2091
        %v2361 = vpop.permute.xlu0 %2360
        %2363 = vset.pattern.permute.xlu0 3
        %2364 = vperm.xlu0 %2363, %v2092
        %v2365 = vpop.permute.xlu0 %2364
        %2367 = vset.pattern.permute.xlu0 3
        %2368 = vperm.xlu0 %2367, %v2093
        %v2369 = vpop.permute.xlu0 %2368
        %2371 = vset.pattern.permute.xlu0 3
        %2372 = vperm.xlu0 %2371, %v2094
        %v2373 = vpop.permute.xlu0 %2372
        %v2375 = vmul.f32 %v2361, %v2351
        %v2376 = vmul.f32 %v2361, %v2352
        %v2377 = vmul.f32 %v2365, %v2353
        %v2378 = vmul.f32 %v2365, %v2354
        %v2379 = vmul.f32 %v2369, %v2355
        %v2380 = vmul.f32 %v2369, %v2356
        %v2381 = vmul.f32 %v2373, %v2357
        %v2382 = vmul.f32 %v2373, %v2358
        %v2383 = vadd.f32 %v2319, %v2375
        %v2384 = vadd.f32 %v2320, %v2376
        %v2385 = vadd.f32 %v2321, %v2377
        %v2386 = vadd.f32 %v2322, %v2378
        %v2387 = vadd.f32 %v2323, %v2379
        %v2388 = vadd.f32 %v2324, %v2380
        %v2389 = vadd.f32 %v2325, %v2381
        %v2390 = vadd.f32 %v2326, %v2382
        %2391 = vset.pattern.permute.xlu0 4
        %2392 = vperm.xlu0 %2391, %v2091
        %v2393 = vpop.permute.xlu0 %2392
        %2395 = vset.pattern.permute.xlu0 4
        %2396 = vperm.xlu0 %2395, %v2092
        %v2397 = vpop.permute.xlu0 %2396
        %2399 = vset.pattern.permute.xlu0 4
        %2400 = vperm.xlu0 %2399, %v2093
        %v2401 = vpop.permute.xlu0 %2400
        %2403 = vset.pattern.permute.xlu0 4
        %2404 = vperm.xlu0 %2403, %v2094
        %v2405 = vpop.permute.xlu0 %2404
        %v2407 = vmul.f32 %v2393, %v2074
        %v2408 = vmul.f32 %v2393, %v2075
        %v2409 = vmul.f32 %v2397, %v2076
        %v2410 = vmul.f32 %v2397, %v2077
        %v2411 = vmul.f32 %v2401, %v2078
        %v2412 = vmul.f32 %v2401, %v2079
        %v2413 = vmul.f32 %v2405, %v2080
        %v2414 = vmul.f32 %v2405, %v2081
        %v2415 = vadd.f32 %v2383, %v2407
        %v2416 = vadd.f32 %v2384, %v2408
        %v2417 = vadd.f32 %v2385, %v2409
        %v2418 = vadd.f32 %v2386, %v2410
        %v2419 = vadd.f32 %v2387, %v2411
        %v2420 = vadd.f32 %v2388, %v2412
        %v2421 = vadd.f32 %v2389, %v2413
        %v2422 = vadd.f32 %v2390, %v2414
        %2423 = vrot.lane.b32.xlu0 %v2074, 127
        %v2424 = vpop.permute.xlu0 %2423
        %2425 = vrot.lane.b32.xlu0 %v2076, 127
        %v2426 = vpop.permute.xlu0 %2425
        %2427 = vrot.lane.b32.xlu0 %v2078, 127
        %v2428 = vpop.permute.xlu0 %2427
        %2429 = vrot.lane.b32.xlu0 %v2080, 127
        %v2430 = vpop.permute.xlu0 %2429
        %2431 = vrot.lane.b32.xlu0 %v2075, 127
        %v2432 = vpop.permute.xlu0 %2431
        %2433 = vrot.lane.b32.xlu0 %v2077, 127
        %v2434 = vpop.permute.xlu0 %2433
        %2435 = vrot.lane.b32.xlu0 %v2079, 127
        %v2436 = vpop.permute.xlu0 %2435
        %2437 = vrot.lane.b32.xlu0 %v2081, 127
        %v2438 = vpop.permute.xlu0 %2437
        %v2439 = vsel %vm455, %v2424, %v2432
        %v2440 = vsel %vm455, %v2426, %v2434
        %v2441 = vsel %vm455, %v2428, %v2436
        %v2442 = vsel %vm455, %v2430, %v2438
        %v2443 = vsel %vm455, %v2432, %v2424
        %v2444 = vsel %vm455, %v2434, %v2426
        %v2445 = vsel %vm455, %v2436, %v2428
        %v2446 = vsel %vm455, %v2438, %v2430
        %v2447 = vsel %vm1080, %v2259, %v2439
        %v2448 = vsel %vm1081, %v2255, %v2443
        %v2449 = vsel %vm1080, %v2260, %v2440
        %v2450 = vsel %vm1081, %v2256, %v2444
        %v2451 = vsel %vm1080, %v2261, %v2441
        %v2452 = vsel %vm1081, %v2257, %v2445
        %v2453 = vsel %vm1080, %v2262, %v2442
        %v2454 = vsel %vm1081, %v2258, %v2446
        %2455 = vset.pattern.permute.xlu0 5
        %2456 = vperm.xlu0 %2455, %v2091
        %v2457 = vpop.permute.xlu0 %2456
        %2459 = vset.pattern.permute.xlu0 5
        %2460 = vperm.xlu0 %2459, %v2092
        %v2461 = vpop.permute.xlu0 %2460
        %2463 = vset.pattern.permute.xlu0 5
        %2464 = vperm.xlu0 %2463, %v2093
        %v2465 = vpop.permute.xlu0 %2464
        %2467 = vset.pattern.permute.xlu0 5
        %2468 = vperm.xlu0 %2467, %v2094
        %v2469 = vpop.permute.xlu0 %2468
        %v2471 = vmul.f32 %v2457, %v2447
        %v2472 = vmul.f32 %v2457, %v2448
        %v2473 = vmul.f32 %v2461, %v2449
        %v2474 = vmul.f32 %v2461, %v2450
        %v2475 = vmul.f32 %v2465, %v2451
        %v2476 = vmul.f32 %v2465, %v2452
        %v2477 = vmul.f32 %v2469, %v2453
        %v2478 = vmul.f32 %v2469, %v2454
        %v2479 = vadd.f32 %v2415, %v2471
        %v2480 = vadd.f32 %v2416, %v2472
        %v2481 = vadd.f32 %v2417, %v2473
        %v2482 = vadd.f32 %v2418, %v2474
        %v2483 = vadd.f32 %v2419, %v2475
        %v2484 = vadd.f32 %v2420, %v2476
        %v2485 = vadd.f32 %v2421, %v2477
        %v2486 = vadd.f32 %v2422, %v2478
        %2487 = vrot.lane.b32.xlu0 %v2074, 97
        %v2488 = vpop.permute.xlu0 %2487
        %2489 = vrot.lane.b32.xlu0 %v2076, 97
        %v2490 = vpop.permute.xlu0 %2489
        %2491 = vrot.lane.b32.xlu0 %v2078, 97
        %v2492 = vpop.permute.xlu0 %2491
        %2493 = vrot.lane.b32.xlu0 %v2080, 97
        %v2494 = vpop.permute.xlu0 %2493
        %2495 = vrot.lane.b32.xlu0 %v2075, 97
        %v2496 = vpop.permute.xlu0 %2495
        %2497 = vrot.lane.b32.xlu0 %v2077, 97
        %v2498 = vpop.permute.xlu0 %2497
        %2499 = vrot.lane.b32.xlu0 %v2079, 97
        %v2500 = vpop.permute.xlu0 %2499
        %2501 = vrot.lane.b32.xlu0 %v2081, 97
        %v2502 = vpop.permute.xlu0 %2501
        %v2503 = vsel %vm1138, %v2488, %v2496
        %v2504 = vsel %vm1138, %v2490, %v2498
        %v2505 = vsel %vm1138, %v2492, %v2500
        %v2506 = vsel %vm1138, %v2494, %v2502
        %v2507 = vsel %vm1138, %v2496, %v2488
        %v2508 = vsel %vm1138, %v2498, %v2490
        %v2509 = vsel %vm1138, %v2500, %v2492
        %v2510 = vsel %vm1138, %v2502, %v2494
        %v2511 = vsel %vm1153, %v2503, %v2343
        %v2512 = vsel %vm1154, %v2507, %v2347
        %v2513 = vsel %vm1153, %v2504, %v2344
        %v2514 = vsel %vm1154, %v2508, %v2348
        %v2515 = vsel %vm1153, %v2505, %v2345
        %v2516 = vsel %vm1154, %v2509, %v2349
        %v2517 = vsel %vm1153, %v2506, %v2346
        %v2518 = vsel %vm1154, %v2510, %v2350
        %2519 = vset.pattern.permute.xlu0 6
        %2520 = vperm.xlu0 %2519, %v2091
        %v2521 = vpop.permute.xlu0 %2520
        %2523 = vset.pattern.permute.xlu0 6
        %2524 = vperm.xlu0 %2523, %v2092
        %v2525 = vpop.permute.xlu0 %2524
        %2527 = vset.pattern.permute.xlu0 6
        %2528 = vperm.xlu0 %2527, %v2093
        %v2529 = vpop.permute.xlu0 %2528
        %2531 = vset.pattern.permute.xlu0 6
        %2532 = vperm.xlu0 %2531, %v2094
        %v2533 = vpop.permute.xlu0 %2532
        %v2535 = vmul.f32 %v2521, %v2511
        %v2536 = vmul.f32 %v2521, %v2512
        %v2537 = vmul.f32 %v2525, %v2513
        %v2538 = vmul.f32 %v2525, %v2514
        %v2539 = vmul.f32 %v2529, %v2515
        %v2540 = vmul.f32 %v2529, %v2516
        %v2541 = vmul.f32 %v2533, %v2517
        %v2542 = vmul.f32 %v2533, %v2518
        %v2543 = vadd.f32 %v2479, %v2535
        %v2544 = vadd.f32 %v2480, %v2536
        %v2545 = vadd.f32 %v2481, %v2537
        %v2546 = vadd.f32 %v2482, %v2538
        %v2547 = vadd.f32 %v2483, %v2539
        %v2548 = vadd.f32 %v2484, %v2540
        %v2549 = vadd.f32 %v2485, %v2541
        %v2550 = vadd.f32 %v2486, %v2542
        %2551 = vrot.lane.b32.xlu0 %v2074, 112
        %v2552 = vpop.permute.xlu0 %2551
        %2553 = vrot.lane.b32.xlu0 %v2076, 112
        %v2554 = vpop.permute.xlu0 %2553
        %2555 = vrot.lane.b32.xlu0 %v2078, 112
        %v2556 = vpop.permute.xlu0 %2555
        %2557 = vrot.lane.b32.xlu0 %v2080, 112
        %v2558 = vpop.permute.xlu0 %2557
        %2559 = vrot.lane.b32.xlu0 %v2075, 112
        %v2560 = vpop.permute.xlu0 %2559
        %2561 = vrot.lane.b32.xlu0 %v2077, 112
        %v2562 = vpop.permute.xlu0 %2561
        %2563 = vrot.lane.b32.xlu0 %v2079, 112
        %v2564 = vpop.permute.xlu0 %2563
        %2565 = vrot.lane.b32.xlu0 %v2081, 112
        %v2566 = vpop.permute.xlu0 %2565
        %v2567 = vsel %vm487, %v2552, %v2560
        %v2568 = vsel %vm487, %v2554, %v2562
        %v2569 = vsel %vm487, %v2556, %v2564
        %v2570 = vsel %vm487, %v2558, %v2566
        %v2571 = vsel %vm487, %v2560, %v2552
        %v2572 = vsel %vm487, %v2562, %v2554
        %v2573 = vsel %vm487, %v2564, %v2556
        %v2574 = vsel %vm487, %v2566, %v2558
        %2575 = vset.pattern.permute.xlu0 7
        %2576 = vperm.xlu0 %2575, %v2091
        %v2577 = vpop.permute.xlu0 %2576
        %2579 = vset.pattern.permute.xlu0 7
        %2580 = vperm.xlu0 %2579, %v2092
        %v2581 = vpop.permute.xlu0 %2580
        %2583 = vset.pattern.permute.xlu0 7
        %2584 = vperm.xlu0 %2583, %v2093
        %v2585 = vpop.permute.xlu0 %2584
        %2587 = vset.pattern.permute.xlu0 7
        %2588 = vperm.xlu0 %2587, %v2094
        %v2589 = vpop.permute.xlu0 %2588
        %v2591 = vmul.f32 %v2577, %v2567
        %v2592 = vmul.f32 %v2577, %v2571
        %v2593 = vmul.f32 %v2581, %v2568
        %v2594 = vmul.f32 %v2581, %v2572
        %v2595 = vmul.f32 %v2585, %v2569
        %v2596 = vmul.f32 %v2585, %v2573
        %v2597 = vmul.f32 %v2589, %v2570
        %v2598 = vmul.f32 %v2589, %v2574
        %v2599 = vadd.f32 %v2543, %v2591
        %v2600 = vadd.f32 %v2544, %v2592
        %v2601 = vadd.f32 %v2545, %v2593
        %v2602 = vadd.f32 %v2546, %v2594
        %v2603 = vadd.f32 %v2547, %v2595
        %v2604 = vadd.f32 %v2548, %v2596
        %v2605 = vadd.f32 %v2549, %v2597
        %v2606 = vadd.f32 %v2550, %v2598
        %2607 = vrot.lane.b32.xlu0 %v2074, 111
        %v2608 = vpop.permute.xlu0 %2607
        %2609 = vrot.lane.b32.xlu0 %v2076, 111
        %v2610 = vpop.permute.xlu0 %2609
        %2611 = vrot.lane.b32.xlu0 %v2078, 111
        %v2612 = vpop.permute.xlu0 %2611
        %2613 = vrot.lane.b32.xlu0 %v2080, 111
        %v2614 = vpop.permute.xlu0 %2613
        %2615 = vrot.lane.b32.xlu0 %v2075, 111
        %v2616 = vpop.permute.xlu0 %2615
        %2617 = vrot.lane.b32.xlu0 %v2077, 111
        %v2618 = vpop.permute.xlu0 %2617
        %2619 = vrot.lane.b32.xlu0 %v2079, 111
        %v2620 = vpop.permute.xlu0 %2619
        %2621 = vrot.lane.b32.xlu0 %v2081, 111
        %v2622 = vpop.permute.xlu0 %2621
        %v2623 = vsel %vm503, %v2608, %v2616
        %v2624 = vsel %vm503, %v2610, %v2618
        %v2625 = vsel %vm503, %v2612, %v2620
        %v2626 = vsel %vm503, %v2614, %v2622
        %v2627 = vsel %vm503, %v2616, %v2608
        %v2628 = vsel %vm503, %v2618, %v2610
        %v2629 = vsel %vm503, %v2620, %v2612
        %v2630 = vsel %vm503, %v2622, %v2614
        %v2631 = vsel %vm1281, %v2439, %v2623
        %v2632 = vsel %vm1282, %v2443, %v2627
        %v2633 = vsel %vm1281, %v2440, %v2624
        %v2634 = vsel %vm1282, %v2444, %v2628
        %v2635 = vsel %vm1281, %v2441, %v2625
        %v2636 = vsel %vm1282, %v2445, %v2629
        %v2637 = vsel %vm1281, %v2442, %v2626
        %v2638 = vsel %vm1282, %v2446, %v2630
        %2639 = vset.pattern.permute.xlu0 8
        %2640 = vperm.xlu0 %2639, %v2091
        %v2641 = vpop.permute.xlu0 %2640
        %2643 = vset.pattern.permute.xlu0 8
        %2644 = vperm.xlu0 %2643, %v2092
        %v2645 = vpop.permute.xlu0 %2644
        %2647 = vset.pattern.permute.xlu0 8
        %2648 = vperm.xlu0 %2647, %v2093
        %v2649 = vpop.permute.xlu0 %2648
        %2651 = vset.pattern.permute.xlu0 8
        %2652 = vperm.xlu0 %2651, %v2094
        %v2653 = vpop.permute.xlu0 %2652
        %v2655 = vmul.f32 %v2641, %v2631
        %v2656 = vmul.f32 %v2641, %v2632
        %v2657 = vmul.f32 %v2645, %v2633
        %v2658 = vmul.f32 %v2645, %v2634
        %v2659 = vmul.f32 %v2649, %v2635
        %v2660 = vmul.f32 %v2649, %v2636
        %v2661 = vmul.f32 %v2653, %v2637
        %v2662 = vmul.f32 %v2653, %v2638
        %v2663 = vadd.f32 %v2599, %v2655
        %v2664 = vadd.f32 %v2600, %v2656
        %v2665 = vadd.f32 %v2601, %v2657
        %v2666 = vadd.f32 %v2602, %v2658
        %v2667 = vadd.f32 %v2603, %v2659
        %v2668 = vadd.f32 %v2604, %v2660
        %v2669 = vadd.f32 %v2605, %v2661
        %v2670 = vadd.f32 %v2606, %v2662
        %2671 = vrot.lane.b32.xlu0 %v2082, 17
        %v2672 = vpop.permute.xlu0 %2671
        %2673 = vrot.lane.b32.xlu0 %v2084, 17
        %v2674 = vpop.permute.xlu0 %2673
        %2675 = vrot.lane.b32.xlu0 %v2086, 17
        %v2676 = vpop.permute.xlu0 %2675
        %2677 = vrot.lane.b32.xlu0 %v2088, 17
        %v2678 = vpop.permute.xlu0 %2677
        %2679 = vrot.lane.b32.xlu0 %v2083, 17
        %v2680 = vpop.permute.xlu0 %2679
        %2681 = vrot.lane.b32.xlu0 %v2085, 17
        %v2682 = vpop.permute.xlu0 %2681
        %2683 = vrot.lane.b32.xlu0 %v2087, 17
        %v2684 = vpop.permute.xlu0 %2683
        %2685 = vrot.lane.b32.xlu0 %v2089, 17
        %v2686 = vpop.permute.xlu0 %2685
        %v2687 = vsel %vm383, %v2672, %v2680
        %v2688 = vsel %vm383, %v2674, %v2682
        %v2689 = vsel %vm383, %v2676, %v2684
        %v2690 = vsel %vm383, %v2678, %v2686
        %v2691 = vsel %vm383, %v2680, %v2672
        %v2692 = vsel %vm383, %v2682, %v2674
        %v2693 = vsel %vm383, %v2684, %v2676
        %v2694 = vsel %vm383, %v2686, %v2678
        %2695 = vrot.lane.b32.xlu0 %v2082, 1
        %v2696 = vpop.permute.xlu0 %2695
        %2697 = vrot.lane.b32.xlu0 %v2084, 1
        %v2698 = vpop.permute.xlu0 %2697
        %2699 = vrot.lane.b32.xlu0 %v2086, 1
        %v2700 = vpop.permute.xlu0 %2699
        %2701 = vrot.lane.b32.xlu0 %v2088, 1
        %v2702 = vpop.permute.xlu0 %2701
        %2703 = vrot.lane.b32.xlu0 %v2083, 1
        %v2704 = vpop.permute.xlu0 %2703
        %2705 = vrot.lane.b32.xlu0 %v2085, 1
        %v2706 = vpop.permute.xlu0 %2705
        %2707 = vrot.lane.b32.xlu0 %v2087, 1
        %v2708 = vpop.permute.xlu0 %2707
        %2709 = vrot.lane.b32.xlu0 %v2089, 1
        %v2710 = vpop.permute.xlu0 %2709
        %v2711 = vsel %vm430, %v2696, %v2704
        %v2712 = vsel %vm430, %v2698, %v2706
        %v2713 = vsel %vm430, %v2700, %v2708
        %v2714 = vsel %vm430, %v2702, %v2710
        %v2715 = vsel %vm430, %v2704, %v2696
        %v2716 = vsel %vm430, %v2706, %v2698
        %v2717 = vsel %vm430, %v2708, %v2700
        %v2718 = vsel %vm430, %v2710, %v2702
        %v2719 = vsel %vm755, %v2715, %v2691
        %v2720 = vsel %vm756, %v2711, %v2687
        %v2721 = vsel %vm755, %v2716, %v2692
        %v2722 = vsel %vm756, %v2712, %v2688
        %v2723 = vsel %vm755, %v2717, %v2693
        %v2724 = vsel %vm756, %v2713, %v2689
        %v2725 = vsel %vm755, %v2718, %v2694
        %v2726 = vsel %vm756, %v2714, %v2690
        %2728 = vset.pattern.permute.xlu0 0
        %2729 = vperm.xlu0 %2728, %v2095
        %v2730 = vpop.permute.xlu0 %2729
        %2733 = vset.pattern.permute.xlu0 0
        %2734 = vperm.xlu0 %2733, %v2096
        %v2735 = vpop.permute.xlu0 %2734
        %2738 = vset.pattern.permute.xlu0 0
        %2739 = vperm.xlu0 %2738, %v2097
        %v2740 = vpop.permute.xlu0 %2739
        %2743 = vset.pattern.permute.xlu0 0
        %2744 = vperm.xlu0 %2743, %v2098
        %v2745 = vpop.permute.xlu0 %2744
        %v2747 = vmul.f32 %v2730, %v2719
        %v2748 = vmul.f32 %v2730, %v2720
        %v2749 = vmul.f32 %v2735, %v2721
        %v2750 = vmul.f32 %v2735, %v2722
        %v2751 = vmul.f32 %v2740, %v2723
        %v2752 = vmul.f32 %v2740, %v2724
        %v2753 = vmul.f32 %v2745, %v2725
        %v2754 = vmul.f32 %v2745, %v2726
        %2755 = vrot.lane.b32.xlu0 %v2082, 16
        %v2756 = vpop.permute.xlu0 %2755
        %2757 = vrot.lane.b32.xlu0 %v2084, 16
        %v2758 = vpop.permute.xlu0 %2757
        %2759 = vrot.lane.b32.xlu0 %v2086, 16
        %v2760 = vpop.permute.xlu0 %2759
        %2761 = vrot.lane.b32.xlu0 %v2088, 16
        %v2762 = vpop.permute.xlu0 %2761
        %2763 = vrot.lane.b32.xlu0 %v2083, 16
        %v2764 = vpop.permute.xlu0 %2763
        %2765 = vrot.lane.b32.xlu0 %v2085, 16
        %v2766 = vpop.permute.xlu0 %2765
        %2767 = vrot.lane.b32.xlu0 %v2087, 16
        %v2768 = vpop.permute.xlu0 %2767
        %2769 = vrot.lane.b32.xlu0 %v2089, 16
        %v2770 = vpop.permute.xlu0 %2769
        %v2771 = vsel %vm398, %v2756, %v2764
        %v2772 = vsel %vm398, %v2758, %v2766
        %v2773 = vsel %vm398, %v2760, %v2768
        %v2774 = vsel %vm398, %v2762, %v2770
        %v2775 = vsel %vm398, %v2764, %v2756
        %v2776 = vsel %vm398, %v2766, %v2758
        %v2777 = vsel %vm398, %v2768, %v2760
        %v2778 = vsel %vm398, %v2770, %v2762
        %2779 = vset.pattern.permute.xlu0 1
        %2780 = vperm.xlu0 %2779, %v2095
        %v2781 = vpop.permute.xlu0 %2780
        %2783 = vset.pattern.permute.xlu0 1
        %2784 = vperm.xlu0 %2783, %v2096
        %v2785 = vpop.permute.xlu0 %2784
        %2787 = vset.pattern.permute.xlu0 1
        %2788 = vperm.xlu0 %2787, %v2097
        %v2789 = vpop.permute.xlu0 %2788
        %2791 = vset.pattern.permute.xlu0 1
        %2792 = vperm.xlu0 %2791, %v2098
        %v2793 = vpop.permute.xlu0 %2792
        %v2795 = vmul.f32 %v2781, %v2775
        %v2796 = vmul.f32 %v2781, %v2771
        %v2797 = vmul.f32 %v2785, %v2776
        %v2798 = vmul.f32 %v2785, %v2772
        %v2799 = vmul.f32 %v2789, %v2777
        %v2800 = vmul.f32 %v2789, %v2773
        %v2801 = vmul.f32 %v2793, %v2778
        %v2802 = vmul.f32 %v2793, %v2774
        %v2803 = vadd.f32 %v2747, %v2795
        %v2804 = vadd.f32 %v2748, %v2796
        %v2805 = vadd.f32 %v2749, %v2797
        %v2806 = vadd.f32 %v2750, %v2798
        %v2807 = vadd.f32 %v2751, %v2799
        %v2808 = vadd.f32 %v2752, %v2800
        %v2809 = vadd.f32 %v2753, %v2801
        %v2810 = vadd.f32 %v2754, %v2802
        %2811 = vrot.lane.b32.xlu0 %v2082, 15
        %v2812 = vpop.permute.xlu0 %2811
        %2813 = vrot.lane.b32.xlu0 %v2084, 15
        %v2814 = vpop.permute.xlu0 %2813
        %2815 = vrot.lane.b32.xlu0 %v2086, 15
        %v2816 = vpop.permute.xlu0 %2815
        %2817 = vrot.lane.b32.xlu0 %v2088, 15
        %v2818 = vpop.permute.xlu0 %2817
        %2819 = vrot.lane.b32.xlu0 %v2083, 15
        %v2820 = vpop.permute.xlu0 %2819
        %2821 = vrot.lane.b32.xlu0 %v2085, 15
        %v2822 = vpop.permute.xlu0 %2821
        %2823 = vrot.lane.b32.xlu0 %v2087, 15
        %v2824 = vpop.permute.xlu0 %2823
        %2825 = vrot.lane.b32.xlu0 %v2089, 15
        %v2826 = vpop.permute.xlu0 %2825
        %v2827 = vsel %vm414, %v2812, %v2820
        %v2828 = vsel %vm414, %v2814, %v2822
        %v2829 = vsel %vm414, %v2816, %v2824
        %v2830 = vsel %vm414, %v2818, %v2826
        %v2831 = vsel %vm414, %v2820, %v2812
        %v2832 = vsel %vm414, %v2822, %v2814
        %v2833 = vsel %vm414, %v2824, %v2816
        %v2834 = vsel %vm414, %v2826, %v2818
        %2835 = vrot.lane.b32.xlu0 %v2082, 31
        %v2836 = vpop.permute.xlu0 %2835
        %2837 = vrot.lane.b32.xlu0 %v2084, 31
        %v2838 = vpop.permute.xlu0 %2837
        %2839 = vrot.lane.b32.xlu0 %v2086, 31
        %v2840 = vpop.permute.xlu0 %2839
        %2841 = vrot.lane.b32.xlu0 %v2088, 31
        %v2842 = vpop.permute.xlu0 %2841
        %2843 = vrot.lane.b32.xlu0 %v2083, 31
        %v2844 = vpop.permute.xlu0 %2843
        %2845 = vrot.lane.b32.xlu0 %v2085, 31
        %v2846 = vpop.permute.xlu0 %2845
        %2847 = vrot.lane.b32.xlu0 %v2087, 31
        %v2848 = vpop.permute.xlu0 %2847
        %2849 = vrot.lane.b32.xlu0 %v2089, 31
        %v2850 = vpop.permute.xlu0 %2849
        %v2851 = vsel %vm889, %v2836, %v2844
        %v2852 = vsel %vm889, %v2838, %v2846
        %v2853 = vsel %vm889, %v2840, %v2848
        %v2854 = vsel %vm889, %v2842, %v2850
        %v2855 = vsel %vm889, %v2844, %v2836
        %v2856 = vsel %vm889, %v2846, %v2838
        %v2857 = vsel %vm889, %v2848, %v2840
        %v2858 = vsel %vm889, %v2850, %v2842
        %v2859 = vsel %vm904, %v2855, %v2831
        %v2860 = vsel %vm905, %v2851, %v2827
        %v2861 = vsel %vm904, %v2856, %v2832
        %v2862 = vsel %vm905, %v2852, %v2828
        %v2863 = vsel %vm904, %v2857, %v2833
        %v2864 = vsel %vm905, %v2853, %v2829
        %v2865 = vsel %vm904, %v2858, %v2834
        %v2866 = vsel %vm905, %v2854, %v2830
        %2867 = vset.pattern.permute.xlu0 2
        %2868 = vperm.xlu0 %2867, %v2095
        %v2869 = vpop.permute.xlu0 %2868
        %2871 = vset.pattern.permute.xlu0 2
        %2872 = vperm.xlu0 %2871, %v2096
        %v2873 = vpop.permute.xlu0 %2872
        %2875 = vset.pattern.permute.xlu0 2
        %2876 = vperm.xlu0 %2875, %v2097
        %v2877 = vpop.permute.xlu0 %2876
        %2879 = vset.pattern.permute.xlu0 2
        %2880 = vperm.xlu0 %2879, %v2098
        %v2881 = vpop.permute.xlu0 %2880
        %v2883 = vmul.f32 %v2869, %v2859
        %v2884 = vmul.f32 %v2869, %v2860
        %v2885 = vmul.f32 %v2873, %v2861
        %v2886 = vmul.f32 %v2873, %v2862
        %v2887 = vmul.f32 %v2877, %v2863
        %v2888 = vmul.f32 %v2877, %v2864
        %v2889 = vmul.f32 %v2881, %v2865
        %v2890 = vmul.f32 %v2881, %v2866
        %v2891 = vadd.f32 %v2803, %v2883
        %v2892 = vadd.f32 %v2804, %v2884
        %v2893 = vadd.f32 %v2805, %v2885
        %v2894 = vadd.f32 %v2806, %v2886
        %v2895 = vadd.f32 %v2807, %v2887
        %v2896 = vadd.f32 %v2808, %v2888
        %v2897 = vadd.f32 %v2809, %v2889
        %v2898 = vadd.f32 %v2810, %v2890
        %2899 = vrot.lane.b32.xlu0 %v2082, 113
        %v2900 = vpop.permute.xlu0 %2899
        %2901 = vrot.lane.b32.xlu0 %v2084, 113
        %v2902 = vpop.permute.xlu0 %2901
        %2903 = vrot.lane.b32.xlu0 %v2086, 113
        %v2904 = vpop.permute.xlu0 %2903
        %2905 = vrot.lane.b32.xlu0 %v2088, 113
        %v2906 = vpop.permute.xlu0 %2905
        %2907 = vrot.lane.b32.xlu0 %v2083, 113
        %v2908 = vpop.permute.xlu0 %2907
        %2909 = vrot.lane.b32.xlu0 %v2085, 113
        %v2910 = vpop.permute.xlu0 %2909
        %2911 = vrot.lane.b32.xlu0 %v2087, 113
        %v2912 = vpop.permute.xlu0 %2911
        %2913 = vrot.lane.b32.xlu0 %v2089, 113
        %v2914 = vpop.permute.xlu0 %2913
        %v2915 = vsel %vm471, %v2900, %v2908
        %v2916 = vsel %vm471, %v2902, %v2910
        %v2917 = vsel %vm471, %v2904, %v2912
        %v2918 = vsel %vm471, %v2906, %v2914
        %v2919 = vsel %vm471, %v2908, %v2900
        %v2920 = vsel %vm471, %v2910, %v2902
        %v2921 = vsel %vm471, %v2912, %v2904
        %v2922 = vsel %vm471, %v2914, %v2906
        %v2923 = vsel %vm976, %v2915, %v2715
        %v2924 = vsel %vm977, %v2919, %v2711
        %v2925 = vsel %vm976, %v2916, %v2716
        %v2926 = vsel %vm977, %v2920, %v2712
        %v2927 = vsel %vm976, %v2917, %v2717
        %v2928 = vsel %vm977, %v2921, %v2713
        %v2929 = vsel %vm976, %v2918, %v2718
        %v2930 = vsel %vm977, %v2922, %v2714
        %2931 = vset.pattern.permute.xlu0 3
        %2932 = vperm.xlu0 %2931, %v2095
        %v2933 = vpop.permute.xlu0 %2932
        %2935 = vset.pattern.permute.xlu0 3
        %2936 = vperm.xlu0 %2935, %v2096
        %v2937 = vpop.permute.xlu0 %2936
        %2939 = vset.pattern.permute.xlu0 3
        %2940 = vperm.xlu0 %2939, %v2097
        %v2941 = vpop.permute.xlu0 %2940
        %2943 = vset.pattern.permute.xlu0 3
        %2944 = vperm.xlu0 %2943, %v2098
        %v2945 = vpop.permute.xlu0 %2944
        %v2947 = vmul.f32 %v2933, %v2923
        %v2948 = vmul.f32 %v2933, %v2924
        %v2949 = vmul.f32 %v2937, %v2925
        %v2950 = vmul.f32 %v2937, %v2926
        %v2951 = vmul.f32 %v2941, %v2927
        %v2952 = vmul.f32 %v2941, %v2928
        %v2953 = vmul.f32 %v2945, %v2929
        %v2954 = vmul.f32 %v2945, %v2930
        %v2955 = vadd.f32 %v2891, %v2947
        %v2956 = vadd.f32 %v2892, %v2948
        %v2957 = vadd.f32 %v2893, %v2949
        %v2958 = vadd.f32 %v2894, %v2950
        %v2959 = vadd.f32 %v2895, %v2951
        %v2960 = vadd.f32 %v2896, %v2952
        %v2961 = vadd.f32 %v2897, %v2953
        %v2962 = vadd.f32 %v2898, %v2954
        %2963 = vset.pattern.permute.xlu0 4
        %2964 = vperm.xlu0 %2963, %v2095
        %v2965 = vpop.permute.xlu0 %2964
        %2967 = vset.pattern.permute.xlu0 4
        %2968 = vperm.xlu0 %2967, %v2096
        %v2969 = vpop.permute.xlu0 %2968
        %2971 = vset.pattern.permute.xlu0 4
        %2972 = vperm.xlu0 %2971, %v2097
        %v2973 = vpop.permute.xlu0 %2972
        %2975 = vset.pattern.permute.xlu0 4
        %2976 = vperm.xlu0 %2975, %v2098
        %v2977 = vpop.permute.xlu0 %2976
        %v2979 = vmul.f32 %v2965, %v2082
        %v2980 = vmul.f32 %v2965, %v2083
        %v2981 = vmul.f32 %v2969, %v2084
        %v2982 = vmul.f32 %v2969, %v2085
        %v2983 = vmul.f32 %v2973, %v2086
        %v2984 = vmul.f32 %v2973, %v2087
        %v2985 = vmul.f32 %v2977, %v2088
        %v2986 = vmul.f32 %v2977, %v2089
        %v2987 = vadd.f32 %v2955, %v2979
        %v2988 = vadd.f32 %v2956, %v2980
        %v2989 = vadd.f32 %v2957, %v2981
        %v2990 = vadd.f32 %v2958, %v2982
        %v2991 = vadd.f32 %v2959, %v2983
        %v2992 = vadd.f32 %v2960, %v2984
        %v2993 = vadd.f32 %v2961, %v2985
        %v2994 = vadd.f32 %v2962, %v2986
        %2995 = vrot.lane.b32.xlu0 %v2082, 127
        %v2996 = vpop.permute.xlu0 %2995
        %2997 = vrot.lane.b32.xlu0 %v2084, 127
        %v2998 = vpop.permute.xlu0 %2997
        %2999 = vrot.lane.b32.xlu0 %v2086, 127
        %v3000 = vpop.permute.xlu0 %2999
        %3001 = vrot.lane.b32.xlu0 %v2088, 127
        %v3002 = vpop.permute.xlu0 %3001
        %3003 = vrot.lane.b32.xlu0 %v2083, 127
        %v3004 = vpop.permute.xlu0 %3003
        %3005 = vrot.lane.b32.xlu0 %v2085, 127
        %v3006 = vpop.permute.xlu0 %3005
        %3007 = vrot.lane.b32.xlu0 %v2087, 127
        %v3008 = vpop.permute.xlu0 %3007
        %3009 = vrot.lane.b32.xlu0 %v2089, 127
        %v3010 = vpop.permute.xlu0 %3009
        %v3011 = vsel %vm455, %v2996, %v3004
        %v3012 = vsel %vm455, %v2998, %v3006
        %v3013 = vsel %vm455, %v3000, %v3008
        %v3014 = vsel %vm455, %v3002, %v3010
        %v3015 = vsel %vm455, %v3004, %v2996
        %v3016 = vsel %vm455, %v3006, %v2998
        %v3017 = vsel %vm455, %v3008, %v3000
        %v3018 = vsel %vm455, %v3010, %v3002
        %v3019 = vsel %vm1080, %v2831, %v3011
        %v3020 = vsel %vm1081, %v2827, %v3015
        %v3021 = vsel %vm1080, %v2832, %v3012
        %v3022 = vsel %vm1081, %v2828, %v3016
        %v3023 = vsel %vm1080, %v2833, %v3013
        %v3024 = vsel %vm1081, %v2829, %v3017
        %v3025 = vsel %vm1080, %v2834, %v3014
        %v3026 = vsel %vm1081, %v2830, %v3018
        %3027 = vset.pattern.permute.xlu0 5
        %3028 = vperm.xlu0 %3027, %v2095
        %v3029 = vpop.permute.xlu0 %3028
        %3031 = vset.pattern.permute.xlu0 5
        %3032 = vperm.xlu0 %3031, %v2096
        %v3033 = vpop.permute.xlu0 %3032
        %3035 = vset.pattern.permute.xlu0 5
        %3036 = vperm.xlu0 %3035, %v2097
        %v3037 = vpop.permute.xlu0 %3036
        %3039 = vset.pattern.permute.xlu0 5
        %3040 = vperm.xlu0 %3039, %v2098
        %v3041 = vpop.permute.xlu0 %3040
        %v3043 = vmul.f32 %v3029, %v3019
        %v3044 = vmul.f32 %v3029, %v3020
        %v3045 = vmul.f32 %v3033, %v3021
        %v3046 = vmul.f32 %v3033, %v3022
        %v3047 = vmul.f32 %v3037, %v3023
        %v3048 = vmul.f32 %v3037, %v3024
        %v3049 = vmul.f32 %v3041, %v3025
        %v3050 = vmul.f32 %v3041, %v3026
        %v3051 = vadd.f32 %v2987, %v3043
        %v3052 = vadd.f32 %v2988, %v3044
        %v3053 = vadd.f32 %v2989, %v3045
        %v3054 = vadd.f32 %v2990, %v3046
        %v3055 = vadd.f32 %v2991, %v3047
        %v3056 = vadd.f32 %v2992, %v3048
        %v3057 = vadd.f32 %v2993, %v3049
        %v3058 = vadd.f32 %v2994, %v3050
        %3059 = vrot.lane.b32.xlu0 %v2082, 97
        %v3060 = vpop.permute.xlu0 %3059
        %3061 = vrot.lane.b32.xlu0 %v2084, 97
        %v3062 = vpop.permute.xlu0 %3061
        %3063 = vrot.lane.b32.xlu0 %v2086, 97
        %v3064 = vpop.permute.xlu0 %3063
        %3065 = vrot.lane.b32.xlu0 %v2088, 97
        %v3066 = vpop.permute.xlu0 %3065
        %3067 = vrot.lane.b32.xlu0 %v2083, 97
        %v3068 = vpop.permute.xlu0 %3067
        %3069 = vrot.lane.b32.xlu0 %v2085, 97
        %v3070 = vpop.permute.xlu0 %3069
        %3071 = vrot.lane.b32.xlu0 %v2087, 97
        %v3072 = vpop.permute.xlu0 %3071
        %3073 = vrot.lane.b32.xlu0 %v2089, 97
        %v3074 = vpop.permute.xlu0 %3073
        %v3075 = vsel %vm1138, %v3060, %v3068
        %v3076 = vsel %vm1138, %v3062, %v3070
        %v3077 = vsel %vm1138, %v3064, %v3072
        %v3078 = vsel %vm1138, %v3066, %v3074
        %v3079 = vsel %vm1138, %v3068, %v3060
        %v3080 = vsel %vm1138, %v3070, %v3062
        %v3081 = vsel %vm1138, %v3072, %v3064
        %v3082 = vsel %vm1138, %v3074, %v3066
        %v3083 = vsel %vm1153, %v3075, %v2915
        %v3084 = vsel %vm1154, %v3079, %v2919
        %v3085 = vsel %vm1153, %v3076, %v2916
        %v3086 = vsel %vm1154, %v3080, %v2920
        %v3087 = vsel %vm1153, %v3077, %v2917
        %v3088 = vsel %vm1154, %v3081, %v2921
        %v3089 = vsel %vm1153, %v3078, %v2918
        %v3090 = vsel %vm1154, %v3082, %v2922
        %3091 = vset.pattern.permute.xlu0 6
        %3092 = vperm.xlu0 %3091, %v2095
        %v3093 = vpop.permute.xlu0 %3092
        %3095 = vset.pattern.permute.xlu0 6
        %3096 = vperm.xlu0 %3095, %v2096
        %v3097 = vpop.permute.xlu0 %3096
        %3099 = vset.pattern.permute.xlu0 6
        %3100 = vperm.xlu0 %3099, %v2097
        %v3101 = vpop.permute.xlu0 %3100
        %3103 = vset.pattern.permute.xlu0 6
        %3104 = vperm.xlu0 %3103, %v2098
        %v3105 = vpop.permute.xlu0 %3104
        %v3107 = vmul.f32 %v3093, %v3083
        %v3108 = vmul.f32 %v3093, %v3084
        %v3109 = vmul.f32 %v3097, %v3085
        %v3110 = vmul.f32 %v3097, %v3086
        %v3111 = vmul.f32 %v3101, %v3087
        %v3112 = vmul.f32 %v3101, %v3088
        %v3113 = vmul.f32 %v3105, %v3089
        %v3114 = vmul.f32 %v3105, %v3090
        %v3115 = vadd.f32 %v3051, %v3107
        %v3116 = vadd.f32 %v3052, %v3108
        %v3117 = vadd.f32 %v3053, %v3109
        %v3118 = vadd.f32 %v3054, %v3110
        %v3119 = vadd.f32 %v3055, %v3111
        %v3120 = vadd.f32 %v3056, %v3112
        %v3121 = vadd.f32 %v3057, %v3113
        %v3122 = vadd.f32 %v3058, %v3114
        %3123 = vrot.lane.b32.xlu0 %v2082, 112
        %v3124 = vpop.permute.xlu0 %3123
        %3125 = vrot.lane.b32.xlu0 %v2084, 112
        %v3126 = vpop.permute.xlu0 %3125
        %3127 = vrot.lane.b32.xlu0 %v2086, 112
        %v3128 = vpop.permute.xlu0 %3127
        %3129 = vrot.lane.b32.xlu0 %v2088, 112
        %v3130 = vpop.permute.xlu0 %3129
        %3131 = vrot.lane.b32.xlu0 %v2083, 112
        %v3132 = vpop.permute.xlu0 %3131
        %3133 = vrot.lane.b32.xlu0 %v2085, 112
        %v3134 = vpop.permute.xlu0 %3133
        %3135 = vrot.lane.b32.xlu0 %v2087, 112
        %v3136 = vpop.permute.xlu0 %3135
        %3137 = vrot.lane.b32.xlu0 %v2089, 112
        %v3138 = vpop.permute.xlu0 %3137
        %v3139 = vsel %vm487, %v3124, %v3132
        %v3140 = vsel %vm487, %v3126, %v3134
        %v3141 = vsel %vm487, %v3128, %v3136
        %v3142 = vsel %vm487, %v3130, %v3138
        %v3143 = vsel %vm487, %v3132, %v3124
        %v3144 = vsel %vm487, %v3134, %v3126
        %v3145 = vsel %vm487, %v3136, %v3128
        %v3146 = vsel %vm487, %v3138, %v3130
        %3147 = vset.pattern.permute.xlu0 7
        %3148 = vperm.xlu0 %3147, %v2095
        %v3149 = vpop.permute.xlu0 %3148
        %3151 = vset.pattern.permute.xlu0 7
        %3152 = vperm.xlu0 %3151, %v2096
        %v3153 = vpop.permute.xlu0 %3152
        %3155 = vset.pattern.permute.xlu0 7
        %3156 = vperm.xlu0 %3155, %v2097
        %v3157 = vpop.permute.xlu0 %3156
        %3159 = vset.pattern.permute.xlu0 7
        %3160 = vperm.xlu0 %3159, %v2098
        %v3161 = vpop.permute.xlu0 %3160
        %v3163 = vmul.f32 %v3149, %v3139
        %v3164 = vmul.f32 %v3149, %v3143
        %v3165 = vmul.f32 %v3153, %v3140
        %v3166 = vmul.f32 %v3153, %v3144
        %v3167 = vmul.f32 %v3157, %v3141
        %v3168 = vmul.f32 %v3157, %v3145
        %v3169 = vmul.f32 %v3161, %v3142
        %v3170 = vmul.f32 %v3161, %v3146
        %v3171 = vadd.f32 %v3115, %v3163
        %v3172 = vadd.f32 %v3116, %v3164
        %v3173 = vadd.f32 %v3117, %v3165
        %v3174 = vadd.f32 %v3118, %v3166
        %v3175 = vadd.f32 %v3119, %v3167
        %v3176 = vadd.f32 %v3120, %v3168
        %v3177 = vadd.f32 %v3121, %v3169
        %v3178 = vadd.f32 %v3122, %v3170
        %3179 = vrot.lane.b32.xlu0 %v2082, 111
        %v3180 = vpop.permute.xlu0 %3179
        %3181 = vrot.lane.b32.xlu0 %v2084, 111
        %v3182 = vpop.permute.xlu0 %3181
        %3183 = vrot.lane.b32.xlu0 %v2086, 111
        %v3184 = vpop.permute.xlu0 %3183
        %3185 = vrot.lane.b32.xlu0 %v2088, 111
        %v3186 = vpop.permute.xlu0 %3185
        %3187 = vrot.lane.b32.xlu0 %v2083, 111
        %v3188 = vpop.permute.xlu0 %3187
        %3189 = vrot.lane.b32.xlu0 %v2085, 111
        %v3190 = vpop.permute.xlu0 %3189
        %3191 = vrot.lane.b32.xlu0 %v2087, 111
        %v3192 = vpop.permute.xlu0 %3191
        %3193 = vrot.lane.b32.xlu0 %v2089, 111
        %v3194 = vpop.permute.xlu0 %3193
        %v3195 = vsel %vm503, %v3180, %v3188
        %v3196 = vsel %vm503, %v3182, %v3190
        %v3197 = vsel %vm503, %v3184, %v3192
        %v3198 = vsel %vm503, %v3186, %v3194
        %v3199 = vsel %vm503, %v3188, %v3180
        %v3200 = vsel %vm503, %v3190, %v3182
        %v3201 = vsel %vm503, %v3192, %v3184
        %v3202 = vsel %vm503, %v3194, %v3186
        %v3203 = vsel %vm1281, %v3011, %v3195
        %v3204 = vsel %vm1282, %v3015, %v3199
        %v3205 = vsel %vm1281, %v3012, %v3196
        %v3206 = vsel %vm1282, %v3016, %v3200
        %v3207 = vsel %vm1281, %v3013, %v3197
        %v3208 = vsel %vm1282, %v3017, %v3201
        %v3209 = vsel %vm1281, %v3014, %v3198
        %v3210 = vsel %vm1282, %v3018, %v3202
        %3211 = vset.pattern.permute.xlu0 8
        %3212 = vperm.xlu0 %3211, %v2095
        %v3213 = vpop.permute.xlu0 %3212
        %3215 = vset.pattern.permute.xlu0 8
        %3216 = vperm.xlu0 %3215, %v2096
        %v3217 = vpop.permute.xlu0 %3216
        %3219 = vset.pattern.permute.xlu0 8
        %3220 = vperm.xlu0 %3219, %v2097
        %v3221 = vpop.permute.xlu0 %3220
        %3223 = vset.pattern.permute.xlu0 8
        %3224 = vperm.xlu0 %3223, %v2098
        %v3225 = vpop.permute.xlu0 %3224
        %v3227 = vmul.f32 %v3213, %v3203
        %v3228 = vmul.f32 %v3213, %v3204
        %v3229 = vmul.f32 %v3217, %v3205
        %v3230 = vmul.f32 %v3217, %v3206
        %v3231 = vmul.f32 %v3221, %v3207
        %v3232 = vmul.f32 %v3221, %v3208
        %v3233 = vmul.f32 %v3225, %v3209
        %v3234 = vmul.f32 %v3225, %v3210
        %v3235 = vadd.f32 %v3171, %v3227
        %v3236 = vadd.f32 %v3172, %v3228
        %v3237 = vadd.f32 %v3173, %v3229
        %v3238 = vadd.f32 %v3174, %v3230
        %v3239 = vadd.f32 %v3175, %v3231
        %v3240 = vadd.f32 %v3176, %v3232
        %v3241 = vadd.f32 %v3177, %v3233
        %v3242 = vadd.f32 %v3178, %v3234
        %s3243 = scalar_lea.vmem %s6, 64
        %v3244 = vld [vmem:[%s3243] sm:$0xff]
        %v3245 = vld [vmem:[%s3243 + $0x8] sm:$0xff]
        %v3246 = vld [vmem:[%s3243 + $0x10] sm:$0xff]
        %v3247 = vld [vmem:[%s3243 + $0x18] sm:$0xff]
        %v3248 = vld [vmem:[%s3243 + $0x20] sm:$0xff]
        %v3249 = vld [vmem:[%s3243 + $0x28] sm:$0xff]
        %v3250 = vld [vmem:[%s3243 + $0x30] sm:$0xff]
        %v3251 = vld [vmem:[%s3243 + $0x38] sm:$0xff]
        %s3252 = scalar_lea.vmem %s7, 64
        %v3253 = vld [vmem:[%s3252] sm:$0xff]
        %v3254 = vld [vmem:[%s3252 + $0x8] sm:$0xff]
        %v3255 = vld [vmem:[%s3252 + $0x10] sm:$0xff]
        %v3256 = vld [vmem:[%s3252 + $0x18] sm:$0xff]
        %v3257 = vld [vmem:[%s3252 + $0x20] sm:$0xff]
        %v3258 = vld [vmem:[%s3252 + $0x28] sm:$0xff]
        %v3259 = vld [vmem:[%s3252 + $0x30] sm:$0xff]
        %v3260 = vld [vmem:[%s3252 + $0x38] sm:$0xff]
        %3262 = vset.pattern.permute.xlu0 0
        %3263 = vperm.xlu0 %3262, %v3253
        %v3264 = vpop.permute.xlu0 %3263
        %3267 = vset.pattern.permute.xlu0 0
        %3268 = vperm.xlu0 %3267, %v3254
        %v3269 = vpop.permute.xlu0 %3268
        %3272 = vset.pattern.permute.xlu0 0
        %3273 = vperm.xlu0 %3272, %v3255
        %v3274 = vpop.permute.xlu0 %3273
        %3277 = vset.pattern.permute.xlu0 0
        %3278 = vperm.xlu0 %3277, %v3256
        %v3279 = vpop.permute.xlu0 %3278
        %3282 = vset.pattern.permute.xlu0 0
        %3283 = vperm.xlu0 %3282, %v3257
        %v3284 = vpop.permute.xlu0 %3283
        %3287 = vset.pattern.permute.xlu0 0
        %3288 = vperm.xlu0 %3287, %v3258
        %v3289 = vpop.permute.xlu0 %3288
        %3292 = vset.pattern.permute.xlu0 0
        %3293 = vperm.xlu0 %3292, %v3259
        %v3294 = vpop.permute.xlu0 %3293
        %3297 = vset.pattern.permute.xlu0 0
        %3298 = vperm.xlu0 %3297, %v3260
        %v3299 = vpop.permute.xlu0 %3298
        %v3302 = vsel %vm1951, %v3244, 0
        %v3305 = vsel %vm1951, %v3245, 0
        %v3308 = vsel %vm1951, %v3246, 0
        %v3311 = vsel %vm1951, %v3247, 0
        %v3314 = vsel %vm1951, %v3248, 0
        %v3317 = vsel %vm1951, %v3249, 0
        %v3320 = vsel %vm1951, %v3250, 0
        %v3323 = vsel %vm1951, %v3251, 0
        %3325 = vmatpush.msra.mxu0 0.0
        %3326 = vmatpush.msra.mxu0 0.0
        %3327 = vmatpush.msra.mxu0 0.0
        %3328 = vmatpush.msra.mxu0 0.0
        %3329 = vmatpush.msra.mxu0 0.0
        %3330 = vmatpush.msra.mxu0 0.0
        %3331 = vmatpush.msra.mxu0 0.0
        %3332 = vmatpush.msra.mxu0 0.0
        %3333 = vmatpush.msra.mxu0 %v3241
        %3334 = vmatpush.msra.mxu0 %v3239
        %3335 = vmatpush.msra.mxu0 %v3237
        %3336 = vmatpush.msra.mxu0 %v3235
        %3337 = vmatpush.msra.mxu0 %v2669
        %3338 = vmatpush.msra.mxu0 %v2667
        %3339 = vmatpush.msra.mxu0 %v2665
        %3340 = vmatpush.msra.mxu0 %v2663
        %3341 = vmatmul.f32.gmra.mxu0 %v3302
        %v3342 = vpop.f32.mrf.mxu0
        %v3343 = vadd.f32 %v3264, %v3342
        %3344 = vmatmul.f32.gmra.mxu0 %v3305
        %v3345 = vpop.f32.mrf.mxu0
        %v3346 = vadd.f32 %v3269, %v3345
        %3347 = vmatmul.f32.gmra.mxu0 %v3308
        %v3348 = vpop.f32.mrf.mxu0
        %v3349 = vadd.f32 %v3274, %v3348
        %3350 = vmatmul.f32.gmra.mxu0 %v3311
        %v3351 = vpop.f32.mrf.mxu0
        %v3352 = vadd.f32 %v3279, %v3351
        %3353 = vmatmul.f32.gmra.mxu0 %v3314
        %v3354 = vpop.f32.mrf.mxu0
        %v3355 = vadd.f32 %v3284, %v3354
        %3356 = vmatmul.f32.gmra.mxu0 %v3317
        %v3357 = vpop.f32.mrf.mxu0
        %v3358 = vadd.f32 %v3289, %v3357
        %3359 = vmatmul.f32.gmra.mxu0 %v3320
        %v3360 = vpop.f32.mrf.mxu0
        %v3361 = vadd.f32 %v3294, %v3360
        %3362 = vmatmul.f32.gmra.mxu0 %v3323
        %v3363 = vpop.f32.mrf.mxu0
        %v3364 = vadd.f32 %v3299, %v3363
        %3365 = vdwg.mxu0
        %3366 = vmatpush.msra.mxu0 0.0
        %3367 = vmatpush.msra.mxu0 0.0
        %3368 = vmatpush.msra.mxu0 0.0
        %3369 = vmatpush.msra.mxu0 0.0
        %3370 = vmatpush.msra.mxu0 0.0
        %3371 = vmatpush.msra.mxu0 0.0
        %3372 = vmatpush.msra.mxu0 0.0
        %3373 = vmatpush.msra.mxu0 0.0
        %3374 = vmatpush.msra.mxu0 %v3242
        %3375 = vmatpush.msra.mxu0 %v3240
        %3376 = vmatpush.msra.mxu0 %v3238
        %3377 = vmatpush.msra.mxu0 %v3236
        %3378 = vmatpush.msra.mxu0 %v2670
        %3379 = vmatpush.msra.mxu0 %v2668
        %3380 = vmatpush.msra.mxu0 %v2666
        %3381 = vmatpush.msra.mxu0 %v2664
        %3382 = vmatmul.f32.gmra.mxu0 %v3302
        %v3383 = vpop.f32.mrf.mxu0
        %v3384 = vadd.f32 %v3264, %v3383
        %3385 = vmatmul.f32.gmra.mxu0 %v3305
        %v3386 = vpop.f32.mrf.mxu0
        %v3387 = vadd.f32 %v3269, %v3386
        %3388 = vmatmul.f32.gmra.mxu0 %v3308
        %v3389 = vpop.f32.mrf.mxu0
        %v3390 = vadd.f32 %v3274, %v3389
        %3391 = vmatmul.f32.gmra.mxu0 %v3311
        %v3392 = vpop.f32.mrf.mxu0
        %v3393 = vadd.f32 %v3279, %v3392
        %3394 = vmatmul.f32.gmra.mxu0 %v3314
        %v3395 = vpop.f32.mrf.mxu0
        %v3396 = vadd.f32 %v3284, %v3395
        %3397 = vmatmul.f32.gmra.mxu0 %v3317
        %v3398 = vpop.f32.mrf.mxu0
        %v3399 = vadd.f32 %v3289, %v3398
        %3400 = vmatmul.f32.gmra.mxu0 %v3320
        %v3401 = vpop.f32.mrf.mxu0
        %v3402 = vadd.f32 %v3294, %v3401
        %3403 = vmatmul.f32.gmra.mxu0 %v3323
        %v3404 = vpop.f32.mrf.mxu0
        %v3405 = vadd.f32 %v3299, %v3404
        %3406 = vdwg.mxu0
        %v3407 = vmax.f32 %v3343, 0.0
        %v3408 = vmax.f32 %v3384, 0.0
        %v3409 = vmax.f32 %v3346, 0.0
        %v3410 = vmax.f32 %v3387, 0.0
        %v3411 = vmax.f32 %v3349, 0.0
        %v3412 = vmax.f32 %v3390, 0.0
        %v3413 = vmax.f32 %v3352, 0.0
        %v3414 = vmax.f32 %v3393, 0.0
        %v3415 = vmax.f32 %v3355, 0.0
        %v3416 = vmax.f32 %v3396, 0.0
        %v3417 = vmax.f32 %v3358, 0.0
        %v3418 = vmax.f32 %v3399, 0.0
        %v3419 = vmax.f32 %v3361, 0.0
        %v3420 = vmax.f32 %v3402, 0.0
        %v3421 = vmax.f32 %v3364, 0.0
        %v3422 = vmax.f32 %v3405, 0.0
        %v3423 = vadd.f32 %v3407, %v2074
        %v3424 = vadd.f32 %v3408, %v2075
        %v3425 = vadd.f32 %v3409, %v2076
        %v3426 = vadd.f32 %v3410, %v2077
        %v3427 = vadd.f32 %v3411, %v2078
        %v3428 = vadd.f32 %v3412, %v2079
        %v3429 = vadd.f32 %v3413, %v2080
        %v3430 = vadd.f32 %v3414, %v2081
        %v3431 = vadd.f32 %v3415, %v2082
        %v3432 = vadd.f32 %v3416, %v2083
        %v3433 = vadd.f32 %v3417, %v2084
        %v3434 = vadd.f32 %v3418, %v2085
        %v3435 = vadd.f32 %v3419, %v2086
        %v3436 = vadd.f32 %v3420, %v2087
        %v3437 = vadd.f32 %v3421, %v2088
        %v3438 = vadd.f32 %v3422, %v2089
        %v3439 = vld [vmem:[%s9] sm:$0xff]
        %3441 = vset.pattern.permute.xlu0 0
        %3442 = vperm.xlu0 %3441, %v3439
        %v3443 = vpop.permute.xlu0 %3442
        %v3445 = vadd.f32 %v375, %v3443
        %v3446 = vadd.f32 %v376, %v3443
        %3447 = vrot.lane.b32.xlu0 %v3423, 17
        %v3448 = vpop.permute.xlu0 %3447
        %3449 = vrot.lane.b32.xlu0 %v3425, 17
        %v3450 = vpop.permute.xlu0 %3449
        %3451 = vrot.lane.b32.xlu0 %v3427, 17
        %v3452 = vpop.permute.xlu0 %3451
        %3453 = vrot.lane.b32.xlu0 %v3429, 17
        %v3454 = vpop.permute.xlu0 %3453
        %3455 = vrot.lane.b32.xlu0 %v3431, 17
        %v3456 = vpop.permute.xlu0 %3455
        %3457 = vrot.lane.b32.xlu0 %v3433, 17
        %v3458 = vpop.permute.xlu0 %3457
        %3459 = vrot.lane.b32.xlu0 %v3435, 17
        %v3460 = vpop.permute.xlu0 %3459
        %3461 = vrot.lane.b32.xlu0 %v3437, 17
        %v3462 = vpop.permute.xlu0 %3461
        %3463 = vrot.lane.b32.xlu0 %v3424, 17
        %v3464 = vpop.permute.xlu0 %3463
        %3465 = vrot.lane.b32.xlu0 %v3426, 17
        %v3466 = vpop.permute.xlu0 %3465
        %3467 = vrot.lane.b32.xlu0 %v3428, 17
        %v3468 = vpop.permute.xlu0 %3467
        %3469 = vrot.lane.b32.xlu0 %v3430, 17
        %v3470 = vpop.permute.xlu0 %3469
        %3471 = vrot.lane.b32.xlu0 %v3432, 17
        %v3472 = vpop.permute.xlu0 %3471
        %3473 = vrot.lane.b32.xlu0 %v3434, 17
        %v3474 = vpop.permute.xlu0 %3473
        %3475 = vrot.lane.b32.xlu0 %v3436, 17
        %v3476 = vpop.permute.xlu0 %3475
        %3477 = vrot.lane.b32.xlu0 %v3438, 17
        %v3478 = vpop.permute.xlu0 %3477
        %v3479 = vsel %vm383, %v3448, %v3464
        %v3480 = vsel %vm383, %v3450, %v3466
        %v3481 = vsel %vm383, %v3452, %v3468
        %v3482 = vsel %vm383, %v3454, %v3470
        %v3483 = vsel %vm383, %v3456, %v3472
        %v3484 = vsel %vm383, %v3458, %v3474
        %v3485 = vsel %vm383, %v3460, %v3476
        %v3486 = vsel %vm383, %v3462, %v3478
        %v3487 = vsel %vm383, %v3464, %v3448
        %v3488 = vsel %vm383, %v3466, %v3450
        %v3489 = vsel %vm383, %v3468, %v3452
        %v3490 = vsel %vm383, %v3470, %v3454
        %v3491 = vsel %vm383, %v3472, %v3456
        %v3492 = vsel %vm383, %v3474, %v3458
        %v3493 = vsel %vm383, %v3476, %v3460
        %v3494 = vsel %vm383, %v3478, %v3462
        %v3495 = vld [vmem:[%s8] sm:$0xff]
        %v3497 = vsel %vm1951, %v3495, 0
        %3499 = vmatpush.msra.mxu0 0.0
        %3500 = vmatpush.msra.mxu0 0.0
        %3501 = vmatpush.msra.mxu0 0.0
        %3502 = vmatpush.msra.mxu0 0.0
        %3503 = vmatpush.msra.mxu0 0.0
        %3504 = vmatpush.msra.mxu0 0.0
        %3505 = vmatpush.msra.mxu0 0.0
        %3506 = vmatpush.msra.mxu0 0.0
        %3507 = vmatpush.msra.mxu0 %v3494
        %3508 = vmatpush.msra.mxu0 %v3493
        %3509 = vmatpush.msra.mxu0 %v3492
        %3510 = vmatpush.msra.mxu0 %v3491
        %3511 = vmatpush.msra.mxu0 %v3490
        %3512 = vmatpush.msra.mxu0 %v3489
        %3513 = vmatpush.msra.mxu0 %v3488
        %3514 = vmatpush.msra.mxu0 %v3487
        %3515 = vmatmul.f32.gmra.mxu0 %v3497
        %v3516 = vpop.f32.mrf.mxu0
        %v3517 = vadd.f32 0.0, %v3516
        %3518 = vdwg.mxu0
        %3519 = vmatpush.msra.mxu0 0.0
        %3520 = vmatpush.msra.mxu0 0.0
        %3521 = vmatpush.msra.mxu0 0.0
        %3522 = vmatpush.msra.mxu0 0.0
        %3523 = vmatpush.msra.mxu0 0.0
        %3524 = vmatpush.msra.mxu0 0.0
        %3525 = vmatpush.msra.mxu0 0.0
        %3526 = vmatpush.msra.mxu0 0.0
        %3527 = vmatpush.msra.mxu0 %v3486
        %3528 = vmatpush.msra.mxu0 %v3485
        %3529 = vmatpush.msra.mxu0 %v3484
        %3530 = vmatpush.msra.mxu0 %v3483
        %3531 = vmatpush.msra.mxu0 %v3482
        %3532 = vmatpush.msra.mxu0 %v3481
        %3533 = vmatpush.msra.mxu0 %v3480
        %3534 = vmatpush.msra.mxu0 %v3479
        %3535 = vmatmul.f32.gmra.mxu0 %v3497
        %v3536 = vpop.f32.mrf.mxu0
        %v3537 = vadd.f32 0.0, %v3536
        %3538 = vdwg.mxu0
        %v3539 = vmul.f32 %v3517, %v388
        %v3540 = vmul.f32 %v3537, %v389
        %v3541 = vadd.f32 %v3445, %v3539
        %v3542 = vadd.f32 %v3446, %v3540
        %3543 = vrot.lane.b32.xlu0 %v3423, 16
        %v3544 = vpop.permute.xlu0 %3543
        %3545 = vrot.lane.b32.xlu0 %v3425, 16
        %v3546 = vpop.permute.xlu0 %3545
        %3547 = vrot.lane.b32.xlu0 %v3427, 16
        %v3548 = vpop.permute.xlu0 %3547
        %3549 = vrot.lane.b32.xlu0 %v3429, 16
        %v3550 = vpop.permute.xlu0 %3549
        %3551 = vrot.lane.b32.xlu0 %v3431, 16
        %v3552 = vpop.permute.xlu0 %3551
        %3553 = vrot.lane.b32.xlu0 %v3433, 16
        %v3554 = vpop.permute.xlu0 %3553
        %3555 = vrot.lane.b32.xlu0 %v3435, 16
        %v3556 = vpop.permute.xlu0 %3555
        %3557 = vrot.lane.b32.xlu0 %v3437, 16
        %v3558 = vpop.permute.xlu0 %3557
        %3559 = vrot.lane.b32.xlu0 %v3424, 16
        %v3560 = vpop.permute.xlu0 %3559
        %3561 = vrot.lane.b32.xlu0 %v3426, 16
        %v3562 = vpop.permute.xlu0 %3561
        %3563 = vrot.lane.b32.xlu0 %v3428, 16
        %v3564 = vpop.permute.xlu0 %3563
        %3565 = vrot.lane.b32.xlu0 %v3430, 16
        %v3566 = vpop.permute.xlu0 %3565
        %3567 = vrot.lane.b32.xlu0 %v3432, 16
        %v3568 = vpop.permute.xlu0 %3567
        %3569 = vrot.lane.b32.xlu0 %v3434, 16
        %v3570 = vpop.permute.xlu0 %3569
        %3571 = vrot.lane.b32.xlu0 %v3436, 16
        %v3572 = vpop.permute.xlu0 %3571
        %3573 = vrot.lane.b32.xlu0 %v3438, 16
        %v3574 = vpop.permute.xlu0 %3573
        %v3575 = vsel %vm398, %v3544, %v3560
        %v3576 = vsel %vm398, %v3546, %v3562
        %v3577 = vsel %vm398, %v3548, %v3564
        %v3578 = vsel %vm398, %v3550, %v3566
        %v3579 = vsel %vm398, %v3552, %v3568
        %v3580 = vsel %vm398, %v3554, %v3570
        %v3581 = vsel %vm398, %v3556, %v3572
        %v3582 = vsel %vm398, %v3558, %v3574
        %v3583 = vsel %vm398, %v3560, %v3544
        %v3584 = vsel %vm398, %v3562, %v3546
        %v3585 = vsel %vm398, %v3564, %v3548
        %v3586 = vsel %vm398, %v3566, %v3550
        %v3587 = vsel %vm398, %v3568, %v3552
        %v3588 = vsel %vm398, %v3570, %v3554
        %v3589 = vsel %vm398, %v3572, %v3556
        %v3590 = vsel %vm398, %v3574, %v3558
        %s3591 = scalar_lea.vmem %s8, 8
        %v3592 = vld [vmem:[%s3591] sm:$0xff]
        %v3594 = vsel %vm1951, %v3592, 0
        %3596 = vmatpush.msra.mxu0 0.0
        %3597 = vmatpush.msra.mxu0 0.0
        %3598 = vmatpush.msra.mxu0 0.0
        %3599 = vmatpush.msra.mxu0 0.0
        %3600 = vmatpush.msra.mxu0 0.0
        %3601 = vmatpush.msra.mxu0 0.0
        %3602 = vmatpush.msra.mxu0 0.0
        %3603 = vmatpush.msra.mxu0 0.0
        %3604 = vmatpush.msra.mxu0 %v3590
        %3605 = vmatpush.msra.mxu0 %v3589
        %3606 = vmatpush.msra.mxu0 %v3588
        %3607 = vmatpush.msra.mxu0 %v3587
        %3608 = vmatpush.msra.mxu0 %v3586
        %3609 = vmatpush.msra.mxu0 %v3585
        %3610 = vmatpush.msra.mxu0 %v3584
        %3611 = vmatpush.msra.mxu0 %v3583
        %3612 = vmatmul.f32.gmra.mxu0 %v3594
        %v3613 = vpop.f32.mrf.mxu0
        %v3614 = vadd.f32 0.0, %v3613
        %3615 = vdwg.mxu0
        %3616 = vmatpush.msra.mxu0 0.0
        %3617 = vmatpush.msra.mxu0 0.0
        %3618 = vmatpush.msra.mxu0 0.0
        %3619 = vmatpush.msra.mxu0 0.0
        %3620 = vmatpush.msra.mxu0 0.0
        %3621 = vmatpush.msra.mxu0 0.0
        %3622 = vmatpush.msra.mxu0 0.0
        %3623 = vmatpush.msra.mxu0 0.0
        %3624 = vmatpush.msra.mxu0 %v3582
        %3625 = vmatpush.msra.mxu0 %v3581
        %3626 = vmatpush.msra.mxu0 %v3580
        %3627 = vmatpush.msra.mxu0 %v3579
        %3628 = vmatpush.msra.mxu0 %v3578
        %3629 = vmatpush.msra.mxu0 %v3577
        %3630 = vmatpush.msra.mxu0 %v3576
        %3631 = vmatpush.msra.mxu0 %v3575
        %3632 = vmatmul.f32.gmra.mxu0 %v3594
        %v3633 = vpop.f32.mrf.mxu0
        %v3634 = vadd.f32 0.0, %v3633
        %3635 = vdwg.mxu0
        %v3636 = vmul.f32 %v3614, %v404
        %v3637 = vmul.f32 %v3634, %v405
        %v3638 = vadd.f32 %v3541, %v3636
        %v3639 = vadd.f32 %v3542, %v3637
        %3640 = vrot.lane.b32.xlu0 %v3423, 15
        %v3641 = vpop.permute.xlu0 %3640
        %3642 = vrot.lane.b32.xlu0 %v3425, 15
        %v3643 = vpop.permute.xlu0 %3642
        %3644 = vrot.lane.b32.xlu0 %v3427, 15
        %v3645 = vpop.permute.xlu0 %3644
        %3646 = vrot.lane.b32.xlu0 %v3429, 15
        %v3647 = vpop.permute.xlu0 %3646
        %3648 = vrot.lane.b32.xlu0 %v3431, 15
        %v3649 = vpop.permute.xlu0 %3648
        %3650 = vrot.lane.b32.xlu0 %v3433, 15
        %v3651 = vpop.permute.xlu0 %3650
        %3652 = vrot.lane.b32.xlu0 %v3435, 15
        %v3653 = vpop.permute.xlu0 %3652
        %3654 = vrot.lane.b32.xlu0 %v3437, 15
        %v3655 = vpop.permute.xlu0 %3654
        %3656 = vrot.lane.b32.xlu0 %v3424, 15
        %v3657 = vpop.permute.xlu0 %3656
        %3658 = vrot.lane.b32.xlu0 %v3426, 15
        %v3659 = vpop.permute.xlu0 %3658
        %3660 = vrot.lane.b32.xlu0 %v3428, 15
        %v3661 = vpop.permute.xlu0 %3660
        %3662 = vrot.lane.b32.xlu0 %v3430, 15
        %v3663 = vpop.permute.xlu0 %3662
        %3664 = vrot.lane.b32.xlu0 %v3432, 15
        %v3665 = vpop.permute.xlu0 %3664
        %3666 = vrot.lane.b32.xlu0 %v3434, 15
        %v3667 = vpop.permute.xlu0 %3666
        %3668 = vrot.lane.b32.xlu0 %v3436, 15
        %v3669 = vpop.permute.xlu0 %3668
        %3670 = vrot.lane.b32.xlu0 %v3438, 15
        %v3671 = vpop.permute.xlu0 %3670
        %v3672 = vsel %vm414, %v3641, %v3657
        %v3673 = vsel %vm414, %v3643, %v3659
        %v3674 = vsel %vm414, %v3645, %v3661
        %v3675 = vsel %vm414, %v3647, %v3663
        %v3676 = vsel %vm414, %v3649, %v3665
        %v3677 = vsel %vm414, %v3651, %v3667
        %v3678 = vsel %vm414, %v3653, %v3669
        %v3679 = vsel %vm414, %v3655, %v3671
        %v3680 = vsel %vm414, %v3657, %v3641
        %v3681 = vsel %vm414, %v3659, %v3643
        %v3682 = vsel %vm414, %v3661, %v3645
        %v3683 = vsel %vm414, %v3663, %v3647
        %v3684 = vsel %vm414, %v3665, %v3649
        %v3685 = vsel %vm414, %v3667, %v3651
        %v3686 = vsel %vm414, %v3669, %v3653
        %v3687 = vsel %vm414, %v3671, %v3655
        %s3688 = scalar_lea.vmem %s8, 16
        %v3689 = vld [vmem:[%s3688] sm:$0xff]
        %v3691 = vsel %vm1951, %v3689, 0
        %3693 = vmatpush.msra.mxu0 0.0
        %3694 = vmatpush.msra.mxu0 0.0
        %3695 = vmatpush.msra.mxu0 0.0
        %3696 = vmatpush.msra.mxu0 0.0
        %3697 = vmatpush.msra.mxu0 0.0
        %3698 = vmatpush.msra.mxu0 0.0
        %3699 = vmatpush.msra.mxu0 0.0
        %3700 = vmatpush.msra.mxu0 0.0
        %3701 = vmatpush.msra.mxu0 %v3687
        %3702 = vmatpush.msra.mxu0 %v3686
        %3703 = vmatpush.msra.mxu0 %v3685
        %3704 = vmatpush.msra.mxu0 %v3684
        %3705 = vmatpush.msra.mxu0 %v3683
        %3706 = vmatpush.msra.mxu0 %v3682
        %3707 = vmatpush.msra.mxu0 %v3681
        %3708 = vmatpush.msra.mxu0 %v3680
        %3709 = vmatmul.f32.gmra.mxu0 %v3691
        %v3710 = vpop.f32.mrf.mxu0
        %v3711 = vadd.f32 0.0, %v3710
        %3712 = vdwg.mxu0
        %3713 = vmatpush.msra.mxu0 0.0
        %3714 = vmatpush.msra.mxu0 0.0
        %3715 = vmatpush.msra.mxu0 0.0
        %3716 = vmatpush.msra.mxu0 0.0
        %3717 = vmatpush.msra.mxu0 0.0
        %3718 = vmatpush.msra.mxu0 0.0
        %3719 = vmatpush.msra.mxu0 0.0
        %3720 = vmatpush.msra.mxu0 0.0
        %3721 = vmatpush.msra.mxu0 %v3679
        %3722 = vmatpush.msra.mxu0 %v3678
        %3723 = vmatpush.msra.mxu0 %v3677
        %3724 = vmatpush.msra.mxu0 %v3676
        %3725 = vmatpush.msra.mxu0 %v3675
        %3726 = vmatpush.msra.mxu0 %v3674
        %3727 = vmatpush.msra.mxu0 %v3673
        %3728 = vmatpush.msra.mxu0 %v3672
        %3729 = vmatmul.f32.gmra.mxu0 %v3691
        %v3730 = vpop.f32.mrf.mxu0
        %v3731 = vadd.f32 0.0, %v3730
        %3732 = vdwg.mxu0
        %v3733 = vmul.f32 %v3711, %v420
        %v3734 = vmul.f32 %v3731, %v421
        %v3735 = vadd.f32 %v3638, %v3733
        %v3736 = vadd.f32 %v3639, %v3734
        %3737 = vrot.lane.b32.xlu0 %v3423, 1
        %v3738 = vpop.permute.xlu0 %3737
        %3739 = vrot.lane.b32.xlu0 %v3425, 1
        %v3740 = vpop.permute.xlu0 %3739
        %3741 = vrot.lane.b32.xlu0 %v3427, 1
        %v3742 = vpop.permute.xlu0 %3741
        %3743 = vrot.lane.b32.xlu0 %v3429, 1
        %v3744 = vpop.permute.xlu0 %3743
        %3745 = vrot.lane.b32.xlu0 %v3431, 1
        %v3746 = vpop.permute.xlu0 %3745
        %3747 = vrot.lane.b32.xlu0 %v3433, 1
        %v3748 = vpop.permute.xlu0 %3747
        %3749 = vrot.lane.b32.xlu0 %v3435, 1
        %v3750 = vpop.permute.xlu0 %3749
        %3751 = vrot.lane.b32.xlu0 %v3437, 1
        %v3752 = vpop.permute.xlu0 %3751
        %3753 = vrot.lane.b32.xlu0 %v3424, 1
        %v3754 = vpop.permute.xlu0 %3753
        %3755 = vrot.lane.b32.xlu0 %v3426, 1
        %v3756 = vpop.permute.xlu0 %3755
        %3757 = vrot.lane.b32.xlu0 %v3428, 1
        %v3758 = vpop.permute.xlu0 %3757
        %3759 = vrot.lane.b32.xlu0 %v3430, 1
        %v3760 = vpop.permute.xlu0 %3759
        %3761 = vrot.lane.b32.xlu0 %v3432, 1
        %v3762 = vpop.permute.xlu0 %3761
        %3763 = vrot.lane.b32.xlu0 %v3434, 1
        %v3764 = vpop.permute.xlu0 %3763
        %3765 = vrot.lane.b32.xlu0 %v3436, 1
        %v3766 = vpop.permute.xlu0 %3765
        %3767 = vrot.lane.b32.xlu0 %v3438, 1
        %v3768 = vpop.permute.xlu0 %3767
        %v3769 = vsel %vm430, %v3738, %v3754
        %v3770 = vsel %vm430, %v3740, %v3756
        %v3771 = vsel %vm430, %v3742, %v3758
        %v3772 = vsel %vm430, %v3744, %v3760
        %v3773 = vsel %vm430, %v3746, %v3762
        %v3774 = vsel %vm430, %v3748, %v3764
        %v3775 = vsel %vm430, %v3750, %v3766
        %v3776 = vsel %vm430, %v3752, %v3768
        %v3777 = vsel %vm430, %v3754, %v3738
        %v3778 = vsel %vm430, %v3756, %v3740
        %v3779 = vsel %vm430, %v3758, %v3742
        %v3780 = vsel %vm430, %v3760, %v3744
        %v3781 = vsel %vm430, %v3762, %v3746
        %v3782 = vsel %vm430, %v3764, %v3748
        %v3783 = vsel %vm430, %v3766, %v3750
        %v3784 = vsel %vm430, %v3768, %v3752
        %s3785 = scalar_lea.vmem %s8, 24
        %v3786 = vld [vmem:[%s3785] sm:$0xff]
        %v3788 = vsel %vm1951, %v3786, 0
        %3790 = vmatpush.msra.mxu0 0.0
        %3791 = vmatpush.msra.mxu0 0.0
        %3792 = vmatpush.msra.mxu0 0.0
        %3793 = vmatpush.msra.mxu0 0.0
        %3794 = vmatpush.msra.mxu0 0.0
        %3795 = vmatpush.msra.mxu0 0.0
        %3796 = vmatpush.msra.mxu0 0.0
        %3797 = vmatpush.msra.mxu0 0.0
        %3798 = vmatpush.msra.mxu0 %v3784
        %3799 = vmatpush.msra.mxu0 %v3783
        %3800 = vmatpush.msra.mxu0 %v3782
        %3801 = vmatpush.msra.mxu0 %v3781
        %3802 = vmatpush.msra.mxu0 %v3780
        %3803 = vmatpush.msra.mxu0 %v3779
        %3804 = vmatpush.msra.mxu0 %v3778
        %3805 = vmatpush.msra.mxu0 %v3777
        %3806 = vmatmul.f32.gmra.mxu0 %v3788
        %v3807 = vpop.f32.mrf.mxu0
        %v3808 = vadd.f32 0.0, %v3807
        %3809 = vdwg.mxu0
        %3810 = vmatpush.msra.mxu0 0.0
        %3811 = vmatpush.msra.mxu0 0.0
        %3812 = vmatpush.msra.mxu0 0.0
        %3813 = vmatpush.msra.mxu0 0.0
        %3814 = vmatpush.msra.mxu0 0.0
        %3815 = vmatpush.msra.mxu0 0.0
        %3816 = vmatpush.msra.mxu0 0.0
        %3817 = vmatpush.msra.mxu0 0.0
        %3818 = vmatpush.msra.mxu0 %v3776
        %3819 = vmatpush.msra.mxu0 %v3775
        %3820 = vmatpush.msra.mxu0 %v3774
        %3821 = vmatpush.msra.mxu0 %v3773
        %3822 = vmatpush.msra.mxu0 %v3772
        %3823 = vmatpush.msra.mxu0 %v3771
        %3824 = vmatpush.msra.mxu0 %v3770
        %3825 = vmatpush.msra.mxu0 %v3769
        %3826 = vmatmul.f32.gmra.mxu0 %v3788
        %v3827 = vpop.f32.mrf.mxu0
        %v3828 = vadd.f32 0.0, %v3827
        %3829 = vdwg.mxu0
        %v3830 = vmul.f32 %v3808, %v436
        %v3831 = vmul.f32 %v3828, %v437
        %v3832 = vadd.f32 %v3735, %v3830
        %v3833 = vadd.f32 %v3736, %v3831
        %s3834 = scalar_lea.vmem %s8, 32
        %v3835 = vld [vmem:[%s3834] sm:$0xff]
        %v3837 = vsel %vm1951, %v3835, 0
        %3839 = vmatpush.msra.mxu0 0.0
        %3840 = vmatpush.msra.mxu0 0.0
        %3841 = vmatpush.msra.mxu0 0.0
        %3842 = vmatpush.msra.mxu0 0.0
        %3843 = vmatpush.msra.mxu0 0.0
        %3844 = vmatpush.msra.mxu0 0.0
        %3845 = vmatpush.msra.mxu0 0.0
        %3846 = vmatpush.msra.mxu0 0.0
        %3847 = vmatpush.msra.mxu0 %v3437
        %3848 = vmatpush.msra.mxu0 %v3435
        %3849 = vmatpush.msra.mxu0 %v3433
        %3850 = vmatpush.msra.mxu0 %v3431
        %3851 = vmatpush.msra.mxu0 %v3429
        %3852 = vmatpush.msra.mxu0 %v3427
        %3853 = vmatpush.msra.mxu0 %v3425
        %3854 = vmatpush.msra.mxu0 %v3423
        %3855 = vmatmul.f32.gmra.mxu0 %v3837
        %v3856 = vpop.f32.mrf.mxu0
        %v3857 = vadd.f32 0.0, %v3856
        %3858 = vdwg.mxu0
        %3859 = vmatpush.msra.mxu0 0.0
        %3860 = vmatpush.msra.mxu0 0.0
        %3861 = vmatpush.msra.mxu0 0.0
        %3862 = vmatpush.msra.mxu0 0.0
        %3863 = vmatpush.msra.mxu0 0.0
        %3864 = vmatpush.msra.mxu0 0.0
        %3865 = vmatpush.msra.mxu0 0.0
        %3866 = vmatpush.msra.mxu0 0.0
        %3867 = vmatpush.msra.mxu0 %v3438
        %3868 = vmatpush.msra.mxu0 %v3436
        %3869 = vmatpush.msra.mxu0 %v3434
        %3870 = vmatpush.msra.mxu0 %v3432
        %3871 = vmatpush.msra.mxu0 %v3430
        %3872 = vmatpush.msra.mxu0 %v3428
        %3873 = vmatpush.msra.mxu0 %v3426
        %3874 = vmatpush.msra.mxu0 %v3424
        %3875 = vmatmul.f32.gmra.mxu0 %v3837
        %v3876 = vpop.f32.mrf.mxu0
        %v3877 = vadd.f32 0.0, %v3876
        %3878 = vdwg.mxu0
        %v3879 = vmul.f32 %v3857, %v445
        %v3880 = vmul.f32 %v3877, %v446
        %v3881 = vadd.f32 %v3832, %v3879
        %v3882 = vadd.f32 %v3833, %v3880
        %3883 = vrot.lane.b32.xlu0 %v3423, 127
        %v3884 = vpop.permute.xlu0 %3883
        %3885 = vrot.lane.b32.xlu0 %v3425, 127
        %v3886 = vpop.permute.xlu0 %3885
        %3887 = vrot.lane.b32.xlu0 %v3427, 127
        %v3888 = vpop.permute.xlu0 %3887
        %3889 = vrot.lane.b32.xlu0 %v3429, 127
        %v3890 = vpop.permute.xlu0 %3889
        %3891 = vrot.lane.b32.xlu0 %v3431, 127
        %v3892 = vpop.permute.xlu0 %3891
        %3893 = vrot.lane.b32.xlu0 %v3433, 127
        %v3894 = vpop.permute.xlu0 %3893
        %3895 = vrot.lane.b32.xlu0 %v3435, 127
        %v3896 = vpop.permute.xlu0 %3895
        %3897 = vrot.lane.b32.xlu0 %v3437, 127
        %v3898 = vpop.permute.xlu0 %3897
        %3899 = vrot.lane.b32.xlu0 %v3424, 127
        %v3900 = vpop.permute.xlu0 %3899
        %3901 = vrot.lane.b32.xlu0 %v3426, 127
        %v3902 = vpop.permute.xlu0 %3901
        %3903 = vrot.lane.b32.xlu0 %v3428, 127
        %v3904 = vpop.permute.xlu0 %3903
        %3905 = vrot.lane.b32.xlu0 %v3430, 127
        %v3906 = vpop.permute.xlu0 %3905
        %3907 = vrot.lane.b32.xlu0 %v3432, 127
        %v3908 = vpop.permute.xlu0 %3907
        %3909 = vrot.lane.b32.xlu0 %v3434, 127
        %v3910 = vpop.permute.xlu0 %3909
        %3911 = vrot.lane.b32.xlu0 %v3436, 127
        %v3912 = vpop.permute.xlu0 %3911
        %3913 = vrot.lane.b32.xlu0 %v3438, 127
        %v3914 = vpop.permute.xlu0 %3913
        %v3915 = vsel %vm455, %v3884, %v3900
        %v3916 = vsel %vm455, %v3886, %v3902
        %v3917 = vsel %vm455, %v3888, %v3904
        %v3918 = vsel %vm455, %v3890, %v3906
        %v3919 = vsel %vm455, %v3892, %v3908
        %v3920 = vsel %vm455, %v3894, %v3910
        %v3921 = vsel %vm455, %v3896, %v3912
        %v3922 = vsel %vm455, %v3898, %v3914
        %v3923 = vsel %vm455, %v3900, %v3884
        %v3924 = vsel %vm455, %v3902, %v3886
        %v3925 = vsel %vm455, %v3904, %v3888
        %v3926 = vsel %vm455, %v3906, %v3890
        %v3927 = vsel %vm455, %v3908, %v3892
        %v3928 = vsel %vm455, %v3910, %v3894
        %v3929 = vsel %vm455, %v3912, %v3896
        %v3930 = vsel %vm455, %v3914, %v3898
        %s3931 = scalar_lea.vmem %s8, 40
        %v3932 = vld [vmem:[%s3931] sm:$0xff]
        %v3934 = vsel %vm1951, %v3932, 0
        %3936 = vmatpush.msra.mxu0 0.0
        %3937 = vmatpush.msra.mxu0 0.0
        %3938 = vmatpush.msra.mxu0 0.0
        %3939 = vmatpush.msra.mxu0 0.0
        %3940 = vmatpush.msra.mxu0 0.0
        %3941 = vmatpush.msra.mxu0 0.0
        %3942 = vmatpush.msra.mxu0 0.0
        %3943 = vmatpush.msra.mxu0 0.0
        %3944 = vmatpush.msra.mxu0 %v3922
        %3945 = vmatpush.msra.mxu0 %v3921
        %3946 = vmatpush.msra.mxu0 %v3920
        %3947 = vmatpush.msra.mxu0 %v3919
        %3948 = vmatpush.msra.mxu0 %v3918
        %3949 = vmatpush.msra.mxu0 %v3917
        %3950 = vmatpush.msra.mxu0 %v3916
        %3951 = vmatpush.msra.mxu0 %v3915
        %3952 = vmatmul.f32.gmra.mxu0 %v3934
        %v3953 = vpop.f32.mrf.mxu0
        %v3954 = vadd.f32 0.0, %v3953
        %3955 = vdwg.mxu0
        %3956 = vmatpush.msra.mxu0 0.0
        %3957 = vmatpush.msra.mxu0 0.0
        %3958 = vmatpush.msra.mxu0 0.0
        %3959 = vmatpush.msra.mxu0 0.0
        %3960 = vmatpush.msra.mxu0 0.0
        %3961 = vmatpush.msra.mxu0 0.0
        %3962 = vmatpush.msra.mxu0 0.0
        %3963 = vmatpush.msra.mxu0 0.0
        %3964 = vmatpush.msra.mxu0 %v3930
        %3965 = vmatpush.msra.mxu0 %v3929
        %3966 = vmatpush.msra.mxu0 %v3928
        %3967 = vmatpush.msra.mxu0 %v3927
        %3968 = vmatpush.msra.mxu0 %v3926
        %3969 = vmatpush.msra.mxu0 %v3925
        %3970 = vmatpush.msra.mxu0 %v3924
        %3971 = vmatpush.msra.mxu0 %v3923
        %3972 = vmatmul.f32.gmra.mxu0 %v3934
        %v3973 = vpop.f32.mrf.mxu0
        %v3974 = vadd.f32 0.0, %v3973
        %3975 = vdwg.mxu0
        %v3976 = vmul.f32 %v3954, %v461
        %v3977 = vmul.f32 %v3974, %v462
        %v3978 = vadd.f32 %v3881, %v3976
        %v3979 = vadd.f32 %v3882, %v3977
        %3980 = vrot.lane.b32.xlu0 %v3423, 113
        %v3981 = vpop.permute.xlu0 %3980
        %3982 = vrot.lane.b32.xlu0 %v3425, 113
        %v3983 = vpop.permute.xlu0 %3982
        %3984 = vrot.lane.b32.xlu0 %v3427, 113
        %v3985 = vpop.permute.xlu0 %3984
        %3986 = vrot.lane.b32.xlu0 %v3429, 113
        %v3987 = vpop.permute.xlu0 %3986
        %3988 = vrot.lane.b32.xlu0 %v3431, 113
        %v3989 = vpop.permute.xlu0 %3988
        %3990 = vrot.lane.b32.xlu0 %v3433, 113
        %v3991 = vpop.permute.xlu0 %3990
        %3992 = vrot.lane.b32.xlu0 %v3435, 113
        %v3993 = vpop.permute.xlu0 %3992
        %3994 = vrot.lane.b32.xlu0 %v3437, 113
        %v3995 = vpop.permute.xlu0 %3994
        %3996 = vrot.lane.b32.xlu0 %v3424, 113
        %v3997 = vpop.permute.xlu0 %3996
        %3998 = vrot.lane.b32.xlu0 %v3426, 113
        %v3999 = vpop.permute.xlu0 %3998
        %4000 = vrot.lane.b32.xlu0 %v3428, 113
        %v4001 = vpop.permute.xlu0 %4000
        %4002 = vrot.lane.b32.xlu0 %v3430, 113
        %v4003 = vpop.permute.xlu0 %4002
        %4004 = vrot.lane.b32.xlu0 %v3432, 113
        %v4005 = vpop.permute.xlu0 %4004
        %4006 = vrot.lane.b32.xlu0 %v3434, 113
        %v4007 = vpop.permute.xlu0 %4006
        %4008 = vrot.lane.b32.xlu0 %v3436, 113
        %v4009 = vpop.permute.xlu0 %4008
        %4010 = vrot.lane.b32.xlu0 %v3438, 113
        %v4011 = vpop.permute.xlu0 %4010
        %v4012 = vsel %vm471, %v3981, %v3997
        %v4013 = vsel %vm471, %v3983, %v3999
        %v4014 = vsel %vm471, %v3985, %v4001
        %v4015 = vsel %vm471, %v3987, %v4003
        %v4016 = vsel %vm471, %v3989, %v4005
        %v4017 = vsel %vm471, %v3991, %v4007
        %v4018 = vsel %vm471, %v3993, %v4009
        %v4019 = vsel %vm471, %v3995, %v4011
        %v4020 = vsel %vm471, %v3997, %v3981
        %v4021 = vsel %vm471, %v3999, %v3983
        %v4022 = vsel %vm471, %v4001, %v3985
        %v4023 = vsel %vm471, %v4003, %v3987
        %v4024 = vsel %vm471, %v4005, %v3989
        %v4025 = vsel %vm471, %v4007, %v3991
        %v4026 = vsel %vm471, %v4009, %v3993
        %v4027 = vsel %vm471, %v4011, %v3995
        %s4028 = scalar_lea.vmem %s8, 48
        %v4029 = vld [vmem:[%s4028] sm:$0xff]
        %v4031 = vsel %vm1951, %v4029, 0
        %4033 = vmatpush.msra.mxu0 0.0
        %4034 = vmatpush.msra.mxu0 0.0
        %4035 = vmatpush.msra.mxu0 0.0
        %4036 = vmatpush.msra.mxu0 0.0
        %4037 = vmatpush.msra.mxu0 0.0
        %4038 = vmatpush.msra.mxu0 0.0
        %4039 = vmatpush.msra.mxu0 0.0
        %4040 = vmatpush.msra.mxu0 0.0
        %4041 = vmatpush.msra.mxu0 %v4019
        %4042 = vmatpush.msra.mxu0 %v4018
        %4043 = vmatpush.msra.mxu0 %v4017
        %4044 = vmatpush.msra.mxu0 %v4016
        %4045 = vmatpush.msra.mxu0 %v4015
        %4046 = vmatpush.msra.mxu0 %v4014
        %4047 = vmatpush.msra.mxu0 %v4013
        %4048 = vmatpush.msra.mxu0 %v4012
        %4049 = vmatmul.f32.gmra.mxu0 %v4031
        %v4050 = vpop.f32.mrf.mxu0
        %v4051 = vadd.f32 0.0, %v4050
        %4052 = vdwg.mxu0
        %4053 = vmatpush.msra.mxu0 0.0
        %4054 = vmatpush.msra.mxu0 0.0
        %4055 = vmatpush.msra.mxu0 0.0
        %4056 = vmatpush.msra.mxu0 0.0
        %4057 = vmatpush.msra.mxu0 0.0
        %4058 = vmatpush.msra.mxu0 0.0
        %4059 = vmatpush.msra.mxu0 0.0
        %4060 = vmatpush.msra.mxu0 0.0
        %4061 = vmatpush.msra.mxu0 %v4027
        %4062 = vmatpush.msra.mxu0 %v4026
        %4063 = vmatpush.msra.mxu0 %v4025
        %4064 = vmatpush.msra.mxu0 %v4024
        %4065 = vmatpush.msra.mxu0 %v4023
        %4066 = vmatpush.msra.mxu0 %v4022
        %4067 = vmatpush.msra.mxu0 %v4021
        %4068 = vmatpush.msra.mxu0 %v4020
        %4069 = vmatmul.f32.gmra.mxu0 %v4031
        %v4070 = vpop.f32.mrf.mxu0
        %v4071 = vadd.f32 0.0, %v4070
        %4072 = vdwg.mxu0
        %v4073 = vmul.f32 %v4051, %v477
        %v4074 = vmul.f32 %v4071, %v478
        %v4075 = vadd.f32 %v3978, %v4073
        %v4076 = vadd.f32 %v3979, %v4074
        %4077 = vrot.lane.b32.xlu0 %v3423, 112
        %v4078 = vpop.permute.xlu0 %4077
        %4079 = vrot.lane.b32.xlu0 %v3425, 112
        %v4080 = vpop.permute.xlu0 %4079
        %4081 = vrot.lane.b32.xlu0 %v3427, 112
        %v4082 = vpop.permute.xlu0 %4081
        %4083 = vrot.lane.b32.xlu0 %v3429, 112
        %v4084 = vpop.permute.xlu0 %4083
        %4085 = vrot.lane.b32.xlu0 %v3431, 112
        %v4086 = vpop.permute.xlu0 %4085
        %4087 = vrot.lane.b32.xlu0 %v3433, 112
        %v4088 = vpop.permute.xlu0 %4087
        %4089 = vrot.lane.b32.xlu0 %v3435, 112
        %v4090 = vpop.permute.xlu0 %4089
        %4091 = vrot.lane.b32.xlu0 %v3437, 112
        %v4092 = vpop.permute.xlu0 %4091
        %4093 = vrot.lane.b32.xlu0 %v3424, 112
        %v4094 = vpop.permute.xlu0 %4093
        %4095 = vrot.lane.b32.xlu0 %v3426, 112
        %v4096 = vpop.permute.xlu0 %4095
        %4097 = vrot.lane.b32.xlu0 %v3428, 112
        %v4098 = vpop.permute.xlu0 %4097
        %4099 = vrot.lane.b32.xlu0 %v3430, 112
        %v4100 = vpop.permute.xlu0 %4099
        %4101 = vrot.lane.b32.xlu0 %v3432, 112
        %v4102 = vpop.permute.xlu0 %4101
        %4103 = vrot.lane.b32.xlu0 %v3434, 112
        %v4104 = vpop.permute.xlu0 %4103
        %4105 = vrot.lane.b32.xlu0 %v3436, 112
        %v4106 = vpop.permute.xlu0 %4105
        %4107 = vrot.lane.b32.xlu0 %v3438, 112
        %v4108 = vpop.permute.xlu0 %4107
        %v4109 = vsel %vm487, %v4078, %v4094
        %v4110 = vsel %vm487, %v4080, %v4096
        %v4111 = vsel %vm487, %v4082, %v4098
        %v4112 = vsel %vm487, %v4084, %v4100
        %v4113 = vsel %vm487, %v4086, %v4102
        %v4114 = vsel %vm487, %v4088, %v4104
        %v4115 = vsel %vm487, %v4090, %v4106
        %v4116 = vsel %vm487, %v4092, %v4108
        %v4117 = vsel %vm487, %v4094, %v4078
        %v4118 = vsel %vm487, %v4096, %v4080
        %v4119 = vsel %vm487, %v4098, %v4082
        %v4120 = vsel %vm487, %v4100, %v4084
        %v4121 = vsel %vm487, %v4102, %v4086
        %v4122 = vsel %vm487, %v4104, %v4088
        %v4123 = vsel %vm487, %v4106, %v4090
        %v4124 = vsel %vm487, %v4108, %v4092
        %s4125 = scalar_lea.vmem %s8, 56
        %v4126 = vld [vmem:[%s4125] sm:$0xff]
        %v4128 = vsel %vm1951, %v4126, 0
        %4130 = vmatpush.msra.mxu0 0.0
        %4131 = vmatpush.msra.mxu0 0.0
        %4132 = vmatpush.msra.mxu0 0.0
        %4133 = vmatpush.msra.mxu0 0.0
        %4134 = vmatpush.msra.mxu0 0.0
        %4135 = vmatpush.msra.mxu0 0.0
        %4136 = vmatpush.msra.mxu0 0.0
        %4137 = vmatpush.msra.mxu0 0.0
        %4138 = vmatpush.msra.mxu0 %v4116
        %4139 = vmatpush.msra.mxu0 %v4115
        %4140 = vmatpush.msra.mxu0 %v4114
        %4141 = vmatpush.msra.mxu0 %v4113
        %4142 = vmatpush.msra.mxu0 %v4112
        %4143 = vmatpush.msra.mxu0 %v4111
        %4144 = vmatpush.msra.mxu0 %v4110
        %4145 = vmatpush.msra.mxu0 %v4109
        %4146 = vmatmul.f32.gmra.mxu0 %v4128
        %v4147 = vpop.f32.mrf.mxu0
        %v4148 = vadd.f32 0.0, %v4147
        %4149 = vdwg.mxu0
        %4150 = vmatpush.msra.mxu0 0.0
        %4151 = vmatpush.msra.mxu0 0.0
        %4152 = vmatpush.msra.mxu0 0.0
        %4153 = vmatpush.msra.mxu0 0.0
        %4154 = vmatpush.msra.mxu0 0.0
        %4155 = vmatpush.msra.mxu0 0.0
        %4156 = vmatpush.msra.mxu0 0.0
        %4157 = vmatpush.msra.mxu0 0.0
        %4158 = vmatpush.msra.mxu0 %v4124
        %4159 = vmatpush.msra.mxu0 %v4123
        %4160 = vmatpush.msra.mxu0 %v4122
        %4161 = vmatpush.msra.mxu0 %v4121
        %4162 = vmatpush.msra.mxu0 %v4120
        %4163 = vmatpush.msra.mxu0 %v4119
        %4164 = vmatpush.msra.mxu0 %v4118
        %4165 = vmatpush.msra.mxu0 %v4117
        %4166 = vmatmul.f32.gmra.mxu0 %v4128
        %v4167 = vpop.f32.mrf.mxu0
        %v4168 = vadd.f32 0.0, %v4167
        %4169 = vdwg.mxu0
        %v4170 = vmul.f32 %v4148, %v493
        %v4171 = vmul.f32 %v4168, %v494
        %v4172 = vadd.f32 %v4075, %v4170
        %v4173 = vadd.f32 %v4076, %v4171
        %4174 = vrot.lane.b32.xlu0 %v3423, 111
        %v4175 = vpop.permute.xlu0 %4174
        %4176 = vrot.lane.b32.xlu0 %v3425, 111
        %v4177 = vpop.permute.xlu0 %4176
        %4178 = vrot.lane.b32.xlu0 %v3427, 111
        %v4179 = vpop.permute.xlu0 %4178
        %4180 = vrot.lane.b32.xlu0 %v3429, 111
        %v4181 = vpop.permute.xlu0 %4180
        %4182 = vrot.lane.b32.xlu0 %v3431, 111
        %v4183 = vpop.permute.xlu0 %4182
        %4184 = vrot.lane.b32.xlu0 %v3433, 111
        %v4185 = vpop.permute.xlu0 %4184
        %4186 = vrot.lane.b32.xlu0 %v3435, 111
        %v4187 = vpop.permute.xlu0 %4186
        %4188 = vrot.lane.b32.xlu0 %v3437, 111
        %v4189 = vpop.permute.xlu0 %4188
        %4190 = vrot.lane.b32.xlu0 %v3424, 111
        %v4191 = vpop.permute.xlu0 %4190
        %4192 = vrot.lane.b32.xlu0 %v3426, 111
        %v4193 = vpop.permute.xlu0 %4192
        %4194 = vrot.lane.b32.xlu0 %v3428, 111
        %v4195 = vpop.permute.xlu0 %4194
        %4196 = vrot.lane.b32.xlu0 %v3430, 111
        %v4197 = vpop.permute.xlu0 %4196
        %4198 = vrot.lane.b32.xlu0 %v3432, 111
        %v4199 = vpop.permute.xlu0 %4198
        %4200 = vrot.lane.b32.xlu0 %v3434, 111
        %v4201 = vpop.permute.xlu0 %4200
        %4202 = vrot.lane.b32.xlu0 %v3436, 111
        %v4203 = vpop.permute.xlu0 %4202
        %4204 = vrot.lane.b32.xlu0 %v3438, 111
        %v4205 = vpop.permute.xlu0 %4204
        %v4206 = vsel %vm503, %v4175, %v4191
        %v4207 = vsel %vm503, %v4177, %v4193
        %v4208 = vsel %vm503, %v4179, %v4195
        %v4209 = vsel %vm503, %v4181, %v4197
        %v4210 = vsel %vm503, %v4183, %v4199
        %v4211 = vsel %vm503, %v4185, %v4201
        %v4212 = vsel %vm503, %v4187, %v4203
        %v4213 = vsel %vm503, %v4189, %v4205
        %v4214 = vsel %vm503, %v4191, %v4175
        %v4215 = vsel %vm503, %v4193, %v4177
        %v4216 = vsel %vm503, %v4195, %v4179
        %v4217 = vsel %vm503, %v4197, %v4181
        %v4218 = vsel %vm503, %v4199, %v4183
        %v4219 = vsel %vm503, %v4201, %v4185
        %v4220 = vsel %vm503, %v4203, %v4187
        %v4221 = vsel %vm503, %v4205, %v4189
        %s4222 = scalar_lea.vmem %s8, 64
        %v4223 = vld [vmem:[%s4222] sm:$0xff]
        %v4225 = vsel %vm1951, %v4223, 0
        %4227 = vmatpush.msra.mxu0 0.0
        %4228 = vmatpush.msra.mxu0 0.0
        %4229 = vmatpush.msra.mxu0 0.0
        %4230 = vmatpush.msra.mxu0 0.0
        %4231 = vmatpush.msra.mxu0 0.0
        %4232 = vmatpush.msra.mxu0 0.0
        %4233 = vmatpush.msra.mxu0 0.0
        %4234 = vmatpush.msra.mxu0 0.0
        %4235 = vmatpush.msra.mxu0 %v4213
        %4236 = vmatpush.msra.mxu0 %v4212
        %4237 = vmatpush.msra.mxu0 %v4211
        %4238 = vmatpush.msra.mxu0 %v4210
        %4239 = vmatpush.msra.mxu0 %v4209
        %4240 = vmatpush.msra.mxu0 %v4208
        %4241 = vmatpush.msra.mxu0 %v4207
        %4242 = vmatpush.msra.mxu0 %v4206
        %4243 = vmatmul.f32.gmra.mxu0 %v4225
        %v4244 = vpop.f32.mrf.mxu0
        %v4245 = vadd.f32 0.0, %v4244
        %4246 = vdwg.mxu0
        %4247 = vmatpush.msra.mxu0 0.0
        %4248 = vmatpush.msra.mxu0 0.0
        %4249 = vmatpush.msra.mxu0 0.0
        %4250 = vmatpush.msra.mxu0 0.0
        %4251 = vmatpush.msra.mxu0 0.0
        %4252 = vmatpush.msra.mxu0 0.0
        %4253 = vmatpush.msra.mxu0 0.0
        %4254 = vmatpush.msra.mxu0 0.0
        %4255 = vmatpush.msra.mxu0 %v4221
        %4256 = vmatpush.msra.mxu0 %v4220
        %4257 = vmatpush.msra.mxu0 %v4219
        %4258 = vmatpush.msra.mxu0 %v4218
        %4259 = vmatpush.msra.mxu0 %v4217
        %4260 = vmatpush.msra.mxu0 %v4216
        %4261 = vmatpush.msra.mxu0 %v4215
        %4262 = vmatpush.msra.mxu0 %v4214
        %4263 = vmatmul.f32.gmra.mxu0 %v4225
        %v4264 = vpop.f32.mrf.mxu0
        %v4265 = vadd.f32 0.0, %v4264
        %4266 = vdwg.mxu0
        %v4267 = vmul.f32 %v4245, %v509
        %v4268 = vmul.f32 %v4265, %v510
        %v4269 = vadd.f32 %v4172, %v4267
        %v4270 = vadd.f32 %v4173, %v4268
        %4271 = vst [vmem:[%s369] sm:$0xff] %v4269
        %4272 = vst [vmem:[%s369 + $0x8] sm:$0xff] %v4270
        %s4273 = sand.u32 %s248, 1
        %s4274 = scalar_lea.sflag [#allocation4], %s4273
        %s4275 = sand.u32 %s248, 1
        %s4276 = smul.addr %s4275, 16
        %s4277 = scalar_lea.vmem [#allocation5], %s4276
        // Predicated region
        $region65: #{tpu_custom_call.1} parent=59 // pred_check
          %p4278 = pneg %p258
        $region66: #{tpu_custom_call.1} parent=59 // pred_check_branch
          %4280 = sbr.rel (%p4278) target = $region68
        $region67: #{tpu_custom_call.1} parent=59 // pred_region
          %4282 = vsyncadd %s4274, 0
          %s4283 = smul.addr %s25, 2
          %s4284 = smul.addr %s4283, 8
          %s4285 = scalar_lea.hbm %s10, %s4284
          %s4287 = sshll.u32 %s4277, 4
          %s4288 = int_to_ptr.vmem [resolvable:$true] %s4287
          %s4289 = sshll.u32 %s4285, 4
          %s4290 = int_to_ptr.hbm [resolvable:$true] %s4289
          %4292 = dma.vmem_to_hbm [thread:$0]  %s4288, 256, %s4290, %s4274
        $region68: #{tpu_custom_call.1} parent=59 // pred_fallthru
          _
      $region60: #{tpu_custom_call.1} parent=5 // pred_fallthru
        _
      %p4293 = scmp.le.s32.totalorder 2, %s20
      // Predicated region
      $region69: #{tpu_custom_call.1} parent=5 // pred_check
        %p4294 = pneg %p4293
      $region70: #{tpu_custom_call.1} parent=5 // pred_check_branch
        %4296 = sbr.rel (%p4294) target = $region72
      $region71: #{tpu_custom_call.1} parent=5 // pred_region
        %s4297 = ssub.s32 %s20, 2
        // Predicated region
        $region73: #{tpu_custom_call.1} parent=71 // pred_check
          %p4298 = pneg %p264
        $region74: #{tpu_custom_call.1} parent=71 // pred_check_branch
          %4300 = sbr.rel (%p4298) target = $region76
        $region75: #{tpu_custom_call.1} parent=71 // pred_region
          %s4301 = sand.u32 %s249, 1
          %s4302 = scalar_lea.sflag [#allocation4], %s4301
          %s4303 = sand.u32 %s249, 1
          %s4304 = smul.addr %s4303, 16
          %s4305 = scalar_lea.vmem [#allocation5], %s4304
          %4307 = dma.done %s4302, 256
        $region76: #{tpu_custom_call.1} parent=71 // pred_fallthru
          _
      $region72: #{tpu_custom_call.1} parent=5 // pred_fallthru
        _
    $region6: #{tpu_custom_call.1} parent=1 // loop_footer
      %s24 = sadd.s32 1, %s20
    $region7: #{tpu_custom_call.1} parent=1 // loop_footer_branch
      %19 = sbr.rel target = $region3
    $region8: #{tpu_custom_call.1} parent=1 // loop_exit
      _
    %4308 = vsyncpa [#allocation3], 1
    %s4309 = scalar_lea.sflag [#allocation3], 1
    %4310 = vsyncpa %s4309, 1
    %4311 = vsyncpa [#allocation4], 1
    %s4312 = scalar_lea.sflag [#allocation4], 1
    %4313 = vsyncpa %s4312, 1

</llo_original>
